<compile_context>
chip_gen: v7x
topology: tpu7x:2x2x1
jax: 0.10.0
libtpu: 0.0.40
codegen_flags: <defaults>
</compile_context>

<pallas_src>
import functools

import jax
import jax.numpy as jnp
from jax.experimental import pallas as pl
from jax.experimental.pallas import tpu as pltpu


def _round_up(x, m):
    return (x + m - 1) // m * m


def _prelu(v, alpha):
    return jnp.where(v >= 0.0, v, alpha * v)


def nn_model2aplus_kernel(
    # scalar inputs (SMEM)
    alphas_ref,                                   # (8,) f32: 5 PReLU alphas
    # tensor inputs (VMEM; weights resident via constant index_maps)
    x_ref,                                        # (1, TN, Fp) bf16
    w1_ref, b1_ref,                               # (Fp, 1024) bf16, (1, 1024) f32
    w2_ref, b2_ref,                               # (1024, 512) bf16, (1, 512) f32
    w3_ref, b3_ref,                               # (512, FC1P) bf16, (1, FC1P) f32
    wa_ref, ba_ref,                               # (FC1P, FC2P) bf16, (1, FC2P) f32
    wb_row_ref, bb_ref,                           # (1, FC2P) f32, (1, 1) f32
    wc1_ref, bc1_ref,                             # (FC1P, FC2P) bf16, (1, FC2P) f32
    wc2_ref, bc2_ref,                             # (FC2P, FC2HP) bf16, (1, FC2HP) f32
    wc3_row_ref, bc3_ref,                         # (1, FC2HP) f32, (1, 1) f32
    # outputs
    y_ref,                                        # (1, 1, 1) f32
    attn_ref,                                     # (1, T, TN) f32, resident across tiles
    # scratch
    m_ref, l_ref, acc_ref,                        # (1,1), (1,1), (1, FC1P) f32
    *, n_valid, tile_n,
):
    t = pl.program_id(1)
    nt = pl.num_programs(1)

    a1, a2, a3 = alphas_ref[0], alphas_ref[1], alphas_ref[2]
    ac1, ac2 = alphas_ref[3], alphas_ref[4]

    @pl.when(t == 0)
    def _init():
        m_ref[...] = jnp.full_like(m_ref, -jnp.inf)
        l_ref[...] = jnp.zeros_like(l_ref)
        acc_ref[...] = jnp.zeros_like(acc_ref)

    x_t = x_ref[0]                                # (TN, Fp) bf16

    # conv_extractor (two Conv1d(k=1) == Linear) + fc_extractor.  Dropout == identity.
    h = _prelu(jnp.dot(x_t, w1_ref[...],
                       preferred_element_type=jnp.float32) + b1_ref[...], a1)       # (TN,1024)
    h = _prelu(jnp.dot(h.astype(jnp.bfloat16), w2_ref[...],
                       preferred_element_type=jnp.float32) + b2_ref[...], a2)       # (TN,512)
    h = _prelu(jnp.dot(h.astype(jnp.bfloat16), w3_ref[...],
                       preferred_element_type=jnp.float32) + b3_ref[...], a3)       # (TN,FC1P)

    # Attention(fc1, fc2, 1): Linear -> tanh -> Linear -> softmax over instances.
    # The second linear is emitted as a lane-dense (1, TN) row (no width-1 output).
    t_act = jnp.tanh(jnp.dot(h.astype(jnp.bfloat16), wa_ref[...],
                             preferred_element_type=jnp.float32) + ba_ref[...])     # (TN,FC2P)
    logits = jnp.dot(wb_row_ref[...], t_act.T,
                     preferred_element_type=jnp.float32) + bb_ref[...]              # (1, TN)

    # mask zero-padded instance rows
    col = t * tile_n + jax.lax.broadcasted_iota(jnp.int32, (1, tile_n), 1)
    logits = jnp.where(col < n_valid, logits, -1e30)

    # online softmax over the bag (running max / sum / attention-weighted feature)
    m_prev = m_ref[...]
    m_new = jnp.maximum(m_prev, jnp.max(logits, axis=-1, keepdims=True))
    corr = jnp.exp(m_prev - m_new)
    p = jnp.exp(logits - m_new)                                                     # (1, TN)
    l_ref[...] = l_ref[...] * corr + jnp.sum(p, axis=-1, keepdims=True)
    acc_ref[...] = acc_ref[...] * corr + jnp.dot(p, h,
                                                 preferred_element_type=jnp.float32)
    m_ref[...] = m_new

    # keep the *raw* logits resident lane-dense; one finalize pass makes the softmax
    attn_ref[:, pl.ds(t, 1), :] = jnp.reshape(logits, (1, 1, tile_n))

    @pl.when(t == nt - 1)
    def _finalize():
        inv_l = pl.reciprocal(l_ref[...], approx=True)                              # (1, 1)
        m_fin = jnp.reshape(m_ref[...], (1, 1, 1))
        attn_ref[...] = jnp.exp(attn_ref[...] - m_fin) * jnp.reshape(inv_l, (1, 1, 1))
        z = acc_ref[...] * inv_l                                                    # (1,FC1P)
        # classifier: Linear+PReLU -> Linear+PReLU -> Linear -> Sigmoid
        c = _prelu(jnp.dot(z.astype(jnp.bfloat16), wc1_ref[...],
                           preferred_element_type=jnp.float32) + bc1_ref[...], ac1)
        c = _prelu(jnp.dot(c.astype(jnp.bfloat16), wc2_ref[...],
                           preferred_element_type=jnp.float32) + bc2_ref[...], ac2)
        logit = jnp.sum(c * wc3_row_ref[...], axis=-1, keepdims=True) + bc3_ref[...]
        y_ref[...] = jnp.reshape(1.0 / (1.0 + jnp.exp(-logit)), (1, 1, 1))


def init_params(key, in_features=2048, fc_1=200, fc_2=100, fc_output=1):
    """Deterministic synthetic init mirroring the PyTorch module's shapes (f32)."""
    def lin(k, fan_in, fan_out):
        kw, kb = jax.random.split(k)
        bound = 1.0 / jnp.sqrt(jnp.float32(fan_in))
        w = jax.random.uniform(kw, (fan_in, fan_out), jnp.float32, -bound, bound)
        b = jax.random.uniform(kb, (1, fan_out), jnp.float32, -bound, bound)
        return w, b

    ks = jax.random.split(key, 8)
    p = {}
    p["w1"], p["b1"] = lin(ks[0], in_features, 1024)       # Conv1d(F,1024,1)
    p["w2"], p["b2"] = lin(ks[1], 1024, 512)                # Conv1d(1024,512,1)
    p["w3"], p["b3"] = lin(ks[2], 512, fc_1)                # Linear(512,fc1)
    p["wa"], p["ba"] = lin(ks[3], fc_1, fc_2)               # Attention linear 1
    p["wb"], p["bb"] = lin(ks[4], fc_2, 1)                  # Attention linear 2
    p["wc1"], p["bc1"] = lin(ks[5], fc_1, fc_2)             # classifier 1
    p["wc2"], p["bc2"] = lin(ks[6], fc_2, fc_2 // 2)        # classifier 2
    p["wc3"], p["bc3"] = lin(ks[7], fc_2 // 2, fc_output)   # classifier 3
    # 5 PReLU layers, default scalar alpha = 0.25 (PReLU(num_parameters=1))
    p["alphas"] = jnp.full((8,), 0.25, dtype=jnp.float32)
    return p


def pack_params(raw, in_features, fc_1=200, fc_2=100):
    """Zero-pad hidden dims to lane multiples and cast matmul weights to bf16."""
    fp = _round_up(in_features, 128)
    fc1p = _round_up(fc_1, 128)
    fc2p = _round_up(fc_2, 128)
    fc2hp = _round_up(fc_2 // 2, 128)

    def pad2(a, rows, cols):
        return jnp.zeros((rows, cols), a.dtype).at[: a.shape[0], : a.shape[1]].set(a)

    return {
        "alphas": raw["alphas"],
        "w1": pad2(raw["w1"], fp, 1024).astype(jnp.bfloat16),
        "b1": raw["b1"],
        "w2": raw["w2"].astype(jnp.bfloat16),
        "b2": raw["b2"],
        "w3": pad2(raw["w3"], 512, fc1p).astype(jnp.bfloat16),
        "b3": pad2(raw["b3"], 1, fc1p),
        "wa": pad2(raw["wa"], fc1p, fc2p).astype(jnp.bfloat16),
        "ba": pad2(raw["ba"], 1, fc2p),
        "wb_row": pad2(raw["wb"].T, 1, fc2p),          # f32 row (used against t_act.T)
        "bb": raw["bb"],
        "wc1": pad2(raw["wc1"], fc1p, fc2p).astype(jnp.bfloat16),
        "bc1": pad2(raw["bc1"], 1, fc2p),
        "wc2": pad2(raw["wc2"], fc2p, fc2hp).astype(jnp.bfloat16),
        "bc2": pad2(raw["bc2"], 1, fc2hp),
        "wc3_row": pad2(raw["wc3"].T, 1, fc2hp),       # f32 row (VPU reduce)
        "bc3": raw["bc3"],
        "dims": {"Fp": fp, "FC1P": fc1p, "FC2P": fc2p, "FC2HP": fc2hp,
                 "in_features": in_features},
    }


_WEIGHT_ORDER = ("w1", "b1", "w2", "b2", "w3", "b3", "wa", "ba", "wb_row", "bb",
                 "wc1", "bc1", "wc2", "bc2", "wc3_row", "bc3")


def nn_model2aplus_forward_batched(packed, x_bags):
    """x_bags: (B, N, F) f32 — B independent bags of N instances.
    Returns (y_prob (B, 1), attention (B, N))."""
    b_bags, n, f = x_bags.shape
    dims = packed["dims"]
    fp, fc1p = dims["Fp"], dims["FC1P"]

    tile_n = min(256, _round_up(max(n, 1), 128))     # full MXU rows (128 v5e / 256 v6e+)
    n_pad = _round_up(n, tile_n)
    num_tiles = n_pad // tile_n

    # zero-pad instances to the tile grid and features to the padded width; bf16 halves
    # the x DMA and feeds the MXU at bf16 rate (f32 accumulation in-kernel).
    xp = jnp.zeros((b_bags, n_pad, fp), jnp.bfloat16)
    xp = xp.at[:, :n, :f].set(x_bags.astype(jnp.bfloat16))

    weights = [packed[k] for k in _WEIGHT_ORDER]

    def resident(arr):   # same block index every grid step -> DMA'd once, stays in VMEM
        return pl.BlockSpec(arr.shape, lambda b, t: (0,) * arr.ndim)

    in_specs = (
        [pl.BlockSpec(memory_space=pltpu.MemorySpace.SMEM)]                # alphas
        + [pl.BlockSpec((1, tile_n, fp), lambda b, t: (b, t, 0))]          # x tiles
        + [resident(w) for w in weights]
    )
    out_specs = (
        pl.BlockSpec((1, 1, 1), lambda b, t: (b, 0, 0)),                   # y_prob
        pl.BlockSpec((1, num_tiles, tile_n), lambda b, t: (b, 0, 0)),      # attention
    )
    out_shape = (
        jax.ShapeDtypeStruct((b_bags, 1, 1), jnp.float32),
        jax.ShapeDtypeStruct((b_bags, num_tiles, tile_n), jnp.float32),
    )

    kernel = functools.partial(nn_model2aplus_kernel, n_valid=n, tile_n=tile_n)

    y, attn = pl.pallas_call(
        kernel,
        grid=(b_bags, num_tiles),
        in_specs=in_specs,
        out_specs=out_specs,
        out_shape=out_shape,
        scratch_shapes=[
            pltpu.VMEM((1, 1), jnp.float32),      # running max
            pltpu.VMEM((1, 1), jnp.float32),      # running sum
            pltpu.VMEM((1, fc1p), jnp.float32),   # running attention-weighted feature
        ],
        compiler_params=pltpu.CompilerParams(
            dimension_semantics=("parallel", "arbitrary"),  # bags shard across v7x cores
            vmem_limit_bytes=48 * 1024 * 1024,
        ),
    )(packed["alphas"], xp, *weights)

    return y[:, 0, :], attn.reshape(b_bags, n_pad)[:, :n]


def nn_model2aplus_forward(packed, x):
    """Module-compatible entry point.  x: (1, N, F) as in the PyTorch model.
    Returns (y_prob (1, 1), x_attention (1, N))."""
    return nn_model2aplus_forward_batched(packed, x)


def reference_forward(packed, x_bags):
    """Pure-JAX reference mirroring the kernel's numeric path (bf16 matmul inputs)."""
    dims = packed["dims"]
    f = dims["in_features"]
    al = packed["alphas"]

    def dot(a, w):
        return jnp.dot(a.astype(jnp.bfloat16), w, preferred_element_type=jnp.float32)

    def one_bag(x):
        xb = jnp.zeros((x.shape[0], dims["Fp"]), jnp.float32).at[:, :f].set(x)
        h = _prelu(dot(xb, packed["w1"]) + packed["b1"], al[0])
        h = _prelu(dot(h, packed["w2"]) + packed["b2"], al[1])
        h = _prelu(dot(h, packed["w3"]) + packed["b3"], al[2])
        t_act = jnp.tanh(dot(h, packed["wa"]) + packed["ba"])
        logits = jnp.sum(t_act * packed["wb_row"], axis=-1) + packed["bb"][0, 0]   # (N,)
        attn = jax.nn.softmax(logits)                                              # (N,)
        z = attn[None, :] @ h                                                      # (1, FC1P)
        c = _prelu(dot(z, packed["wc1"]) + packed["bc1"], al[3])
        c = _prelu(dot(c, packed["wc2"]) + packed["bc2"], al[4])
        logit = jnp.sum(c * packed["wc3_row"], axis=-1, keepdims=True) + packed["bc3"]
        return jax.nn.sigmoid(logit)[0], attn

    ys, attns = jax.vmap(one_bag)(x_bags)
    return ys, attns


if __name__ == "__main__":
    key = jax.random.PRNGKey(0)
    k_params, k_x1, k_x2 = jax.random.split(key, 3)

    in_features = 256            # small demo size (module default is 2048)
    raw = init_params(k_params, in_features=in_features, fc_1=200, fc_2=100, fc_output=1)
    packed = pack_params(raw, in_features=in_features, fc_1=200, fc_2=100)

    # Single bag, module-compatible call: x (1, N, F)
    n_instances = 8
    x = jax.random.normal(k_x1, (1, n_instances, in_features), jnp.float32)
    y_prob, x_attention = nn_model2aplus_forward(packed, x)
    jax.block_until_ready((y_prob, x_attention))
    assert y_prob.shape == (1, 1)
    assert x_attention.shape == (1, n_instances)
    assert bool(jnp.abs(jnp.sum(x_attention) - 1.0) < 1e-2)

    y_ref, a_ref = reference_forward(packed, x)
    assert bool(jnp.max(jnp.abs(y_prob - y_ref)) < 5e-2)
    assert bool(jnp.max(jnp.abs(x_attention - a_ref)) < 5e-2)

    # Multi-bag / multi-N-tile path: exercises the bag grid + online softmax tiling.
    xb = jax.random.normal(k_x2, (2, 300, in_features), jnp.float32)
    yb, ab = nn_model2aplus_forward_batched(packed, xb)
    jax.block_until_ready((yb, ab))
    assert yb.shape == (2, 1) and ab.shape == (2, 300)
    assert bool(jnp.all(jnp.abs(jnp.sum(ab, axis=-1) - 1.0) < 1e-2))

    yb_ref, ab_ref = reference_forward(packed, xb)
    assert bool(jnp.max(jnp.abs(yb - yb_ref)) < 5e-2)
    assert bool(jnp.max(jnp.abs(ab - ab_ref)) < 5e-2)

    print("KERNEL_OK")
</pallas_src>

<mosaic_0001>
module attributes {stable_mosaic.version = 11 : i64} {
  func.func @nn_model2aplus_kernel(%arg0: i32, %arg1: i32, %arg2: memref<8xf32, #tpu.memory_space<smem>>, %arg3: memref<1x128x256xbf16, #tpu.memory_space<vmem>>, %arg4: memref<256x1024xbf16, #tpu.memory_space<vmem>>, %arg5: memref<1x1024xf32, #tpu.memory_space<vmem>>, %arg6: memref<1024x512xbf16, #tpu.memory_space<vmem>>, %arg7: memref<1x512xf32, #tpu.memory_space<vmem>>, %arg8: memref<512x256xbf16, #tpu.memory_space<vmem>>, %arg9: memref<1x256xf32, #tpu.memory_space<vmem>>, %arg10: memref<256x128xbf16, #tpu.memory_space<vmem>>, %arg11: memref<1x128xf32, #tpu.memory_space<vmem>>, %arg12: memref<1x128xf32, #tpu.memory_space<vmem>>, %arg13: memref<1x1xf32, #tpu.memory_space<vmem>>, %arg14: memref<256x128xbf16, #tpu.memory_space<vmem>>, %arg15: memref<1x128xf32, #tpu.memory_space<vmem>>, %arg16: memref<128x128xbf16, #tpu.memory_space<vmem>>, %arg17: memref<1x128xf32, #tpu.memory_space<vmem>>, %arg18: memref<1x128xf32, #tpu.memory_space<vmem>>, %arg19: memref<1x1xf32, #tpu.memory_space<vmem>>, %arg20: memref<1x1x1xf32, #tpu.memory_space<vmem>>, %arg21: memref<1x1x128xf32, #tpu.memory_space<vmem>>, %arg22: memref<1x1xf32, #tpu.memory_space<vmem>>, %arg23: memref<1x1xf32, #tpu.memory_space<vmem>>, %arg24: memref<1x256xf32, #tpu.memory_space<vmem>>) attributes {dimension_semantics = [#tpu.dimension_semantics<parallel>, #tpu.dimension_semantics<arbitrary>], iteration_bounds = array<i64: 1, 1>, scalar_prefetch = 0 : i64, scratch_operands = 3 : i64, tpu.core_type = #tpu.core_type<tc>, window_params = [{transform_indices = @transform_0, window_bounds = array<i64: 8>}, {transform_indices = @transform_1, window_bounds = array<i64: 1, 128, 256>}, {pipeline_mode = #tpu.pipeline_mode<synchronous>, transform_indices = @transform_2, window_bounds = array<i64: 256, 1024>}, {pipeline_mode = #tpu.pipeline_mode<synchronous>, transform_indices = @transform_3, window_bounds = array<i64: 1, 1024>}, {pipeline_mode = #tpu.pipeline_mode<synchronous>, transform_indices = @transform_4, window_bounds = array<i64: 1024, 512>}, {pipeline_mode = #tpu.pipeline_mode<synchronous>, transform_indices = @transform_5, window_bounds = array<i64: 1, 512>}, {pipeline_mode = #tpu.pipeline_mode<synchronous>, transform_indices = @transform_6, window_bounds = array<i64: 512, 256>}, {pipeline_mode = #tpu.pipeline_mode<synchronous>, transform_indices = @transform_7, window_bounds = array<i64: 1, 256>}, {pipeline_mode = #tpu.pipeline_mode<synchronous>, transform_indices = @transform_8, window_bounds = array<i64: 256, 128>}, {pipeline_mode = #tpu.pipeline_mode<synchronous>, transform_indices = @transform_9, window_bounds = array<i64: 1, 128>}, {pipeline_mode = #tpu.pipeline_mode<synchronous>, transform_indices = @transform_10, window_bounds = array<i64: 1, 128>}, {pipeline_mode = #tpu.pipeline_mode<synchronous>, transform_indices = @transform_11, window_bounds = array<i64: 1, 1>}, {pipeline_mode = #tpu.pipeline_mode<synchronous>, transform_indices = @transform_12, window_bounds = array<i64: 256, 128>}, {pipeline_mode = #tpu.pipeline_mode<synchronous>, transform_indices = @transform_13, window_bounds = array<i64: 1, 128>}, {pipeline_mode = #tpu.pipeline_mode<synchronous>, transform_indices = @transform_14, window_bounds = array<i64: 128, 128>}, {pipeline_mode = #tpu.pipeline_mode<synchronous>, transform_indices = @transform_15, window_bounds = array<i64: 1, 128>}, {pipeline_mode = #tpu.pipeline_mode<synchronous>, transform_indices = @transform_16, window_bounds = array<i64: 1, 128>}, {pipeline_mode = #tpu.pipeline_mode<synchronous>, transform_indices = @transform_17, window_bounds = array<i64: 1, 1>}, {transform_indices = @transform_18, window_bounds = array<i64: 1, 1, 1>}, {transform_indices = @transform_19, window_bounds = array<i64: 1, 1, 128>}]} {
    %c0 = arith.constant 0 : index
    %0 = memref.load %arg2[%c0] : memref<8xf32, #tpu.memory_space<smem>>
    %c1 = arith.constant 1 : index
    %1 = memref.load %arg2[%c1] : memref<8xf32, #tpu.memory_space<smem>>
    %c2 = arith.constant 2 : index
    %2 = memref.load %arg2[%c2] : memref<8xf32, #tpu.memory_space<smem>>
    %c3 = arith.constant 3 : index
    %3 = memref.load %arg2[%c3] : memref<8xf32, #tpu.memory_space<smem>>
    %c4 = arith.constant 4 : index
    %4 = memref.load %arg2[%c4] : memref<8xf32, #tpu.memory_space<smem>>
    %c0_i32 = arith.constant 0 : i32
    %5 = arith.cmpi eq, %arg1, %c0_i32 : i32
    %6 = arith.extui %5 : i1 to i32
    %c0_i32_0 = arith.constant 0 : i32
    %7 = arith.cmpi ne, %6, %c0_i32_0 : i32
    scf.if %7 {
      %cst_51 = arith.constant 0xFF800000 : f32
      %91 = vector.broadcast %cst_51 : f32 to vector<1x1xf32>
      %c0_52 = arith.constant 0 : index
      %c0_53 = arith.constant 0 : index
      %92 = vector.load %arg22[%c0_52, %c0_53] : memref<1x1xf32, #tpu.memory_space<vmem>>, vector<1x1xf32>
      tpu.vector_store %arg22[%c0_52, %c0_53], %91 {strides = array<i32>} : memref<1x1xf32, #tpu.memory_space<vmem>>, vector<1x1xf32>,
      %cst_54 = arith.constant 0.000000e+00 : f32
      %93 = vector.broadcast %cst_54 : f32 to vector<1x1xf32>
      %c0_55 = arith.constant 0 : index
      %c0_56 = arith.constant 0 : index
      %94 = vector.load %arg23[%c0_55, %c0_56] : memref<1x1xf32, #tpu.memory_space<vmem>>, vector<1x1xf32>
      tpu.vector_store %arg23[%c0_55, %c0_56], %93 {strides = array<i32>} : memref<1x1xf32, #tpu.memory_space<vmem>>, vector<1x1xf32>,
      %cst_57 = arith.constant 0.000000e+00 : f32
      %95 = vector.broadcast %cst_57 : f32 to vector<1x256xf32>
      %c0_58 = arith.constant 0 : index
      %c0_59 = arith.constant 0 : index
      %96 = vector.load %arg24[%c0_58, %c0_59] : memref<1x256xf32, #tpu.memory_space<vmem>>, vector<1x256xf32>
      tpu.vector_store %arg24[%c0_58, %c0_59], %95 {strides = array<i32>} : memref<1x256xf32, #tpu.memory_space<vmem>>, vector<1x256xf32>,
    } else {
    }
    %c0_1 = arith.constant 0 : index
    %c0_2 = arith.constant 0 : index
    %c0_3 = arith.constant 0 : index
    %8 = vector.load %arg3[%c0_1, %c0_2, %c0_3] : memref<1x128x256xbf16, #tpu.memory_space<vmem>>, vector<1x128x256xbf16>
    %9 = vector.shape_cast %8 : vector<1x128x256xbf16> to vector<128x256xbf16>
    %c0_4 = arith.constant 0 : index
    %c0_5 = arith.constant 0 : index
    %10 = vector.load %arg4[%c0_4, %c0_5] : memref<256x1024xbf16, #tpu.memory_space<vmem>>, vector<256x1024xbf16>
    %cst = arith.constant dense<0.000000e+00> : vector<128x1024xf32>
    %11 = tpu.matmul %9, %10, %cst {dimension_numbers = #tpu.dot_dimension_numbers<[1], [0], [0], [1], [0, 0, 1, 1], [], []>} : vector<128x256xbf16>, vector<256x1024xbf16>, vector<128x1024xf32> -> vector<128x1024xf32>
    %c0_6 = arith.constant 0 : index
    %c0_7 = arith.constant 0 : index
    %12 = vector.load %arg5[%c0_6, %c0_7] : memref<1x1024xf32, #tpu.memory_space<vmem>>, vector<1x1024xf32>
    %13 = vector.broadcast %12 : vector<1x1024xf32> to vector<128x1024xf32>
    %14 = arith.addf %11, %13 : vector<128x1024xf32>
    %cst_8 = arith.constant 0.000000e+00 : f32
    %15 = vector.broadcast %cst_8 : f32 to vector<128x1024xf32>
    %16 = arith.cmpf oge, %14, %15 : vector<128x1024xf32>
    %17 = vector.broadcast %0 : f32 to vector<128x1024xf32>
    %18 = arith.mulf %17, %14 : vector<128x1024xf32>
    %19 = arith.select %16, %14, %18 : vector<128x1024xi1>, vector<128x1024xf32>
    %20 = arith.truncf %19 : vector<128x1024xf32> to vector<128x1024xbf16>
    %c0_9 = arith.constant 0 : index
    %c0_10 = arith.constant 0 : index
    %21 = vector.load %arg6[%c0_9, %c0_10] : memref<1024x512xbf16, #tpu.memory_space<vmem>>, vector<1024x512xbf16>
    %cst_11 = arith.constant dense<0.000000e+00> : vector<128x512xf32>
    %22 = tpu.matmul %20, %21, %cst_11 {dimension_numbers = #tpu.dot_dimension_numbers<[1], [0], [0], [1], [0, 0, 1, 1], [], []>} : vector<128x1024xbf16>, vector<1024x512xbf16>, vector<128x512xf32> -> vector<128x512xf32>
    %c0_12 = arith.constant 0 : index
    %c0_13 = arith.constant 0 : index
    %23 = vector.load %arg7[%c0_12, %c0_13] : memref<1x512xf32, #tpu.memory_space<vmem>>, vector<1x512xf32>
    %24 = vector.broadcast %23 : vector<1x512xf32> to vector<128x512xf32>
    %25 = arith.addf %22, %24 : vector<128x512xf32>
    %cst_14 = arith.constant 0.000000e+00 : f32
    %26 = vector.broadcast %cst_14 : f32 to vector<128x512xf32>
    %27 = arith.cmpf oge, %25, %26 : vector<128x512xf32>
    %28 = vector.broadcast %1 : f32 to vector<128x512xf32>
    %29 = arith.mulf %28, %25 : vector<128x512xf32>
    %30 = arith.select %27, %25, %29 : vector<128x512xi1>, vector<128x512xf32>
    %31 = arith.truncf %30 : vector<128x512xf32> to vector<128x512xbf16>
    %c0_15 = arith.constant 0 : index
    %c0_16 = arith.constant 0 : index
    %32 = vector.load %arg8[%c0_15, %c0_16] : memref<512x256xbf16, #tpu.memory_space<vmem>>, vector<512x256xbf16>
    %cst_17 = arith.constant dense<0.000000e+00> : vector<128x256xf32>
    %33 = tpu.matmul %31, %32, %cst_17 {dimension_numbers = #tpu.dot_dimension_numbers<[1], [0], [0], [1], [0, 0, 1, 1], [], []>} : vector<128x512xbf16>, vector<512x256xbf16>, vector<128x256xf32> -> vector<128x256xf32>
    %c0_18 = arith.constant 0 : index
    %c0_19 = arith.constant 0 : index
    %34 = vector.load %arg9[%c0_18, %c0_19] : memref<1x256xf32, #tpu.memory_space<vmem>>, vector<1x256xf32>
    %35 = vector.broadcast %34 : vector<1x256xf32> to vector<128x256xf32>
    %36 = arith.addf %33, %35 : vector<128x256xf32>
    %cst_20 = arith.constant 0.000000e+00 : f32
    %37 = vector.broadcast %cst_20 : f32 to vector<128x256xf32>
    %38 = arith.cmpf oge, %36, %37 : vector<128x256xf32>
    %39 = vector.broadcast %2 : f32 to vector<128x256xf32>
    %40 = arith.mulf %39, %36 : vector<128x256xf32>
    %41 = arith.select %38, %36, %40 : vector<128x256xi1>, vector<128x256xf32>
    %42 = arith.truncf %41 : vector<128x256xf32> to vector<128x256xbf16>
    %c0_21 = arith.constant 0 : index
    %c0_22 = arith.constant 0 : index
    %43 = vector.load %arg10[%c0_21, %c0_22] : memref<256x128xbf16, #tpu.memory_space<vmem>>, vector<256x128xbf16>
    %cst_23 = arith.constant dense<0.000000e+00> : vector<128x128xf32>
    %44 = tpu.matmul %42, %43, %cst_23 {dimension_numbers = #tpu.dot_dimension_numbers<[1], [0], [0], [1], [0, 0, 1, 1], [], []>} : vector<128x256xbf16>, vector<256x128xbf16>, vector<128x128xf32> -> vector<128x128xf32>
    %c0_24 = arith.constant 0 : index
    %c0_25 = arith.constant 0 : index
    %45 = vector.load %arg11[%c0_24, %c0_25] : memref<1x128xf32, #tpu.memory_space<vmem>>, vector<1x128xf32>
    %46 = vector.broadcast %45 : vector<1x128xf32> to vector<128x128xf32>
    %47 = arith.addf %44, %46 : vector<128x128xf32>
    %48 = math.tanh %47 : vector<128x128xf32>
    %c0_26 = arith.constant 0 : index
    %c0_27 = arith.constant 0 : index
    %49 = vector.load %arg12[%c0_26, %c0_27] : memref<1x128xf32, #tpu.memory_space<vmem>>, vector<1x128xf32>
    %50 = tpu.transpose %48, [1, 0] : vector<128x128xf32> -> vector<128x128xf32>
    %cst_28 = arith.constant dense<0.000000e+00> : vector<1x128xf32>
    %51 = tpu.matmul %49, %50, %cst_28 {dimension_numbers = #tpu.dot_dimension_numbers<[1], [0], [0], [1], [0, 0, 1, 1], [], []>} : vector<1x128xf32>, vector<128x128xf32>, vector<1x128xf32> -> vector<1x128xf32>
    %c0_29 = arith.constant 0 : index
    %c0_30 = arith.constant 0 : index
    %52 = vector.load %arg13[%c0_29, %c0_30] : memref<1x1xf32, #tpu.memory_space<vmem>>, vector<1x1xf32>
    %53 = vector.broadcast %52 : vector<1x1xf32> to vector<1x128xf32>
    %54 = arith.addf %51, %53 : vector<1x128xf32>
    %c128_i32 = arith.constant 128 : i32
    %55 = arith.muli %arg1, %c128_i32 : i32
    %56 = tpu.iota {dimensions = array<i32: 1>} : vector<1x128xi32>
    %57 = vector.broadcast %55 : i32 to vector<1x128xi32>
    %58 = arith.addi %57, %56 : vector<1x128xi32>
    %c8_i32 = arith.constant 8 : i32
    %59 = vector.broadcast %c8_i32 : i32 to vector<1x128xi32>
    %60 = arith.cmpi slt, %58, %59 : vector<1x128xi32>
    %cst_31 = arith.constant -1.000000e+30 : f32
    %61 = vector.broadcast %cst_31 : f32 to vector<1x128xf32>
    %62 = arith.select %60, %54, %61 : vector<1x128xi1>, vector<1x128xf32>
    %c0_32 = arith.constant 0 : index
    %c0_33 = arith.constant 0 : index
    %63 = vector.load %arg22[%c0_32, %c0_33] : memref<1x1xf32, #tpu.memory_space<vmem>>, vector<1x1xf32>
    %cst_34 = arith.constant dense<0xFF800000> : vector<1xf32>
    %64 = vector.multi_reduction <maximumf>, %62, %cst_34 [1] : vector<1x128xf32> to vector<1xf32>
    %65 = vector.shape_cast %64 : vector<1xf32> to vector<1x1xf32>
    %66 = arith.maximumf %63, %65 : vector<1x1xf32>
    %67 = arith.subf %63, %66 : vector<1x1xf32>
    %68 = math.exp %67 : vector<1x1xf32>
    %69 = vector.broadcast %66 : vector<1x1xf32> to vector<1x128xf32>
    %70 = arith.subf %62, %69 : vector<1x128xf32>
    %71 = math.exp %70 : vector<1x128xf32>
    %c0_35 = arith.constant 0 : index
    %c0_36 = arith.constant 0 : index
    %72 = vector.load %arg23[%c0_35, %c0_36] : memref<1x1xf32, #tpu.memory_space<vmem>>, vector<1x1xf32>
    %73 = arith.mulf %72, %68 : vector<1x1xf32>
    %cst_37 = arith.constant dense<0.000000e+00> : vector<1xf32>
    %74 = vector.multi_reduction <add>, %71, %cst_37 [1] : vector<1x128xf32> to vector<1xf32>
    %75 = vector.shape_cast %74 : vector<1xf32> to vector<1x1xf32>
    %76 = arith.addf %73, %75 : vector<1x1xf32>
    %c0_38 = arith.constant 0 : index
    %c0_39 = arith.constant 0 : index
    %77 = vector.load %arg23[%c0_38, %c0_39] : memref<1x1xf32, #tpu.memory_space<vmem>>, vector<1x1xf32>
    tpu.vector_store %arg23[%c0_38, %c0_39], %76 {strides = array<i32>} : memref<1x1xf32, #tpu.memory_space<vmem>>, vector<1x1xf32>,
    %c0_40 = arith.constant 0 : index
    %c0_41 = arith.constant 0 : index
    %78 = vector.load %arg24[%c0_40, %c0_41] : memref<1x256xf32, #tpu.memory_space<vmem>>, vector<1x256xf32>
    %79 = vector.broadcast %68 : vector<1x1xf32> to vector<1x256xf32>
    %80 = arith.mulf %78, %79 : vector<1x256xf32>
    %cst_42 = arith.constant dense<0.000000e+00> : vector<1x256xf32>
    %81 = tpu.matmul %71, %41, %cst_42 {dimension_numbers = #tpu.dot_dimension_numbers<[1], [0], [0], [1], [0, 0, 1, 1], [], []>} : vector<1x128xf32>, vector<128x256xf32>, vector<1x256xf32> -> vector<1x256xf32>
    %82 = arith.addf %80, %81 : vector<1x256xf32>
    %c0_43 = arith.constant 0 : index
    %c0_44 = arith.constant 0 : index
    %83 = vector.load %arg24[%c0_43, %c0_44] : memref<1x256xf32, #tpu.memory_space<vmem>>, vector<1x256xf32>
    tpu.vector_store %arg24[%c0_43, %c0_44], %82 {strides = array<i32>} : memref<1x256xf32, #tpu.memory_space<vmem>>, vector<1x256xf32>,
    %c0_45 = arith.constant 0 : index
    %c0_46 = arith.constant 0 : index
    %84 = vector.load %arg22[%c0_45, %c0_46] : memref<1x1xf32, #tpu.memory_space<vmem>>, vector<1x1xf32>
    tpu.vector_store %arg22[%c0_45, %c0_46], %66 {strides = array<i32>} : memref<1x1xf32, #tpu.memory_space<vmem>>, vector<1x1xf32>,
    %85 = vector.shape_cast %62 : vector<1x128xf32> to vector<1x1x128xf32>
    %c0_47 = arith.constant 0 : index
    %86 = arith.index_cast %arg1 : i32 to index
    %c0_48 = arith.constant 0 : index
    %87 = vector.load %arg21[%c0_47, %86, %c0_48] : memref<1x1x128xf32, #tpu.memory_space<vmem>>, vector<1x1x128xf32>
    tpu.vector_store %arg21[%c0_47, %86, %c0_48], %85 {strides = array<i32>} : memref<1x1x128xf32, #tpu.memory_space<vmem>>, vector<1x1x128xf32>,
    %c0_i32_49 = arith.constant 0 : i32
    %88 = arith.cmpi eq, %arg1, %c0_i32_49 : i32
    %89 = arith.extui %88 : i1 to i32
    %c0_i32_50 = arith.constant 0 : i32
    %90 = arith.cmpi ne, %89, %c0_i32_50 : i32
    scf.if %90 {
      %c0_51 = arith.constant 0 : index
      %c0_52 = arith.constant 0 : index
      %91 = vector.load %arg23[%c0_51, %c0_52] : memref<1x1xf32, #tpu.memory_space<vmem>>, vector<1x1xf32>
      %92 = tpu.reciprocal %91 {approx = true} : vector<1x1xf32> -> vector<1x1xf32>
      %c0_53 = arith.constant 0 : index
      %c0_54 = arith.constant 0 : index
      %93 = vector.load %arg22[%c0_53, %c0_54] : memref<1x1xf32, #tpu.memory_space<vmem>>, vector<1x1xf32>
      %94 = vector.shape_cast %93 : vector<1x1xf32> to vector<1x1x1xf32>
      %c0_55 = arith.constant 0 : index
      %c0_56 = arith.constant 0 : index
      %c0_57 = arith.constant 0 : index
      %95 = vector.load %arg21[%c0_55, %c0_56, %c0_57] : memref<1x1x128xf32, #tpu.memory_space<vmem>>, vector<1x1x128xf32>
      %96 = vector.broadcast %94 : vector<1x1x1xf32> to vector<1x1x128xf32>
      %97 = arith.subf %95, %96 : vector<1x1x128xf32>
      %98 = math.exp %97 : vector<1x1x128xf32>
      %99 = vector.shape_cast %92 : vector<1x1xf32> to vector<1x1x1xf32>
      %100 = vector.broadcast %99 : vector<1x1x1xf32> to vector<1x1x128xf32>
      %101 = arith.mulf %98, %100 : vector<1x1x128xf32>
      %c0_58 = arith.constant 0 : index
      %c0_59 = arith.constant 0 : index
      %c0_60 = arith.constant 0 : index
      %102 = vector.load %arg21[%c0_58, %c0_59, %c0_60] : memref<1x1x128xf32, #tpu.memory_space<vmem>>, vector<1x1x128xf32>
      tpu.vector_store %arg21[%c0_58, %c0_59, %c0_60], %101 {strides = array<i32>} : memref<1x1x128xf32, #tpu.memory_space<vmem>>, vector<1x1x128xf32>,
      %c0_61 = arith.constant 0 : index
      %c0_62 = arith.constant 0 : index
      %103 = vector.load %arg24[%c0_61, %c0_62] : memref<1x256xf32, #tpu.memory_space<vmem>>, vector<1x256xf32>
      %104 = vector.broadcast %92 : vector<1x1xf32> to vector<1x256xf32>
      %105 = arith.mulf %103, %104 : vector<1x256xf32>
      %106 = arith.truncf %105 : vector<1x256xf32> to vector<1x256xbf16>
      %c0_63 = arith.constant 0 : index
      %c0_64 = arith.constant 0 : index
      %107 = vector.load %arg14[%c0_63, %c0_64] : memref<256x128xbf16, #tpu.memory_space<vmem>>, vector<256x128xbf16>
      %cst_65 = arith.constant dense<0.000000e+00> : vector<1x128xf32>
      %108 = tpu.matmul %106, %107, %cst_65 {dimension_numbers = #tpu.dot_dimension_numbers<[1], [0], [0], [1], [0, 0, 1, 1], [], []>} : vector<1x256xbf16>, vector<256x128xbf16>, vector<1x128xf32> -> vector<1x128xf32>
      %c0_66 = arith.constant 0 : index
      %c0_67 = arith.constant 0 : index
      %109 = vector.load %arg15[%c0_66, %c0_67] : memref<1x128xf32, #tpu.memory_space<vmem>>, vector<1x128xf32>
      %110 = arith.addf %108, %109 : vector<1x128xf32>
      %cst_68 = arith.constant 0.000000e+00 : f32
      %111 = vector.broadcast %cst_68 : f32 to vector<1x128xf32>
      %112 = arith.cmpf oge, %110, %111 : vector<1x128xf32>
      %113 = vector.broadcast %3 : f32 to vector<1x128xf32>
      %114 = arith.mulf %113, %110 : vector<1x128xf32>
      %115 = arith.select %112, %110, %114 : vector<1x128xi1>, vector<1x128xf32>
      %116 = arith.truncf %115 : vector<1x128xf32> to vector<1x128xbf16>
      %c0_69 = arith.constant 0 : index
      %c0_70 = arith.constant 0 : index
      %117 = vector.load %arg16[%c0_69, %c0_70] : memref<128x128xbf16, #tpu.memory_space<vmem>>, vector<128x128xbf16>
      %cst_71 = arith.constant dense<0.000000e+00> : vector<1x128xf32>
      %118 = tpu.matmul %116, %117, %cst_71 {dimension_numbers = #tpu.dot_dimension_numbers<[1], [0], [0], [1], [0, 0, 1, 1], [], []>} : vector<1x128xbf16>, vector<128x128xbf16>, vector<1x128xf32> -> vector<1x128xf32>
      %c0_72 = arith.constant 0 : index
      %c0_73 = arith.constant 0 : index
      %119 = vector.load %arg17[%c0_72, %c0_73] : memref<1x128xf32, #tpu.memory_space<vmem>>, vector<1x128xf32>
      %120 = arith.addf %118, %119 : vector<1x128xf32>
      %cst_74 = arith.constant 0.000000e+00 : f32
      %121 = vector.broadcast %cst_74 : f32 to vector<1x128xf32>
      %122 = arith.cmpf oge, %120, %121 : vector<1x128xf32>
      %123 = vector.broadcast %4 : f32 to vector<1x128xf32>
      %124 = arith.mulf %123, %120 : vector<1x128xf32>
      %125 = arith.select %122, %120, %124 : vector<1x128xi1>, vector<1x128xf32>
      %c0_75 = arith.constant 0 : index
      %c0_76 = arith.constant 0 : index
      %126 = vector.load %arg18[%c0_75, %c0_76] : memref<1x128xf32, #tpu.memory_space<vmem>>, vector<1x128xf32>
      %127 = arith.mulf %125, %126 : vector<1x128xf32>
      %cst_77 = arith.constant dense<0.000000e+00> : vector<1xf32>
      %128 = vector.multi_reduction <add>, %127, %cst_77 [1] : vector<1x128xf32> to vector<1xf32>
      %129 = vector.shape_cast %128 : vector<1xf32> to vector<1x1xf32>
      %c0_78 = arith.constant 0 : index
      %c0_79 = arith.constant 0 : index
      %130 = vector.load %arg19[%c0_78, %c0_79] : memref<1x1xf32, #tpu.memory_space<vmem>>, vector<1x1xf32>
      %131 = arith.addf %129, %130 : vector<1x1xf32>
      %cst_80 = arith.constant 0.000000e+00 : f32
      %132 = vector.broadcast %cst_80 : f32 to vector<1x1xf32>
      %133 = arith.subf %132, %131 : vector<1x1xf32>
      %134 = math.exp %133 : vector<1x1xf32>
      %cst_81 = arith.constant 1.000000e+00 : f32
      %135 = vector.broadcast %cst_81 : f32 to vector<1x1xf32>
      %136 = arith.addf %135, %134 : vector<1x1xf32>
      %cst_82 = arith.constant 1.000000e+00 : f32
      %137 = vector.broadcast %cst_82 : f32 to vector<1x1xf32>
      %138 = arith.divf %137, %136 : vector<1x1xf32>
      %139 = vector.shape_cast %138 : vector<1x1xf32> to vector<1x1x1xf32>
      %c0_83 = arith.constant 0 : index
      %c0_84 = arith.constant 0 : index
      %c0_85 = arith.constant 0 : index
      %140 = vector.load %arg20[%c0_83, %c0_84, %c0_85] : memref<1x1x1xf32, #tpu.memory_space<vmem>>, vector<1x1x1xf32>
      tpu.vector_store %arg20[%c0_83, %c0_84, %c0_85], %139 {strides = array<i32>} : memref<1x1x1xf32, #tpu.memory_space<vmem>>, vector<1x1x1xf32>,
    } else {
    }
    return
  }
  func.func @transform_0(%arg0: i32, %arg1: i32) -> i32 {
    %c0_i32 = arith.constant 0 : i32
    %c0_i32_0 = arith.constant 0 : i32
    return %c0_i32 : i32
  }
  func.func @transform_1(%arg0: i32, %arg1: i32) -> (i32, i32, i32) {
    %c0_i32 = arith.constant 0 : i32
    %c0_i32_0 = arith.constant 0 : i32
    return %arg0, %arg1, %c0_i32 : i32, i32, i32
  }
  func.func @transform_2(%arg0: i32, %arg1: i32) -> (i32, i32) {
    %c0_i32 = arith.constant 0 : i32
    %c0_i32_0 = arith.constant 0 : i32
    %c0_i32_1 = arith.constant 0 : i32
    return %c0_i32, %c0_i32_0 : i32, i32
  }
  func.func @transform_3(%arg0: i32, %arg1: i32) -> (i32, i32) {
    %c0_i32 = arith.constant 0 : i32
    %c0_i32_0 = arith.constant 0 : i32
    %c0_i32_1 = arith.constant 0 : i32
    return %c0_i32, %c0_i32_0 : i32, i32
  }
  func.func @transform_4(%arg0: i32, %arg1: i32) -> (i32, i32) {
    %c0_i32 = arith.constant 0 : i32
    %c0_i32_0 = arith.constant 0 : i32
    %c0_i32_1 = arith.constant 0 : i32
    return %c0_i32, %c0_i32_0 : i32, i32
  }
  func.func @transform_5(%arg0: i32, %arg1: i32) -> (i32, i32) {
    %c0_i32 = arith.constant 0 : i32
    %c0_i32_0 = arith.constant 0 : i32
    %c0_i32_1 = arith.constant 0 : i32
    return %c0_i32, %c0_i32_0 : i32, i32
  }
  func.func @transform_6(%arg0: i32, %arg1: i32) -> (i32, i32) {
    %c0_i32 = arith.constant 0 : i32
    %c0_i32_0 = arith.constant 0 : i32
    %c0_i32_1 = arith.constant 0 : i32
    return %c0_i32, %c0_i32_0 : i32, i32
  }
  func.func @transform_7(%arg0: i32, %arg1: i32) -> (i32, i32) {
    %c0_i32 = arith.constant 0 : i32
    %c0_i32_0 = arith.constant 0 : i32
    %c0_i32_1 = arith.constant 0 : i32
    return %c0_i32, %c0_i32_0 : i32, i32
  }
  func.func @transform_8(%arg0: i32, %arg1: i32) -> (i32, i32) {
    %c0_i32 = arith.constant 0 : i32
    %c0_i32_0 = arith.constant 0 : i32
    %c0_i32_1 = arith.constant 0 : i32
    return %c0_i32, %c0_i32_0 : i32, i32
  }
  func.func @transform_9(%arg0: i32, %arg1: i32) -> (i32, i32) {
    %c0_i32 = arith.constant 0 : i32
    %c0_i32_0 = arith.constant 0 : i32
    %c0_i32_1 = arith.constant 0 : i32
    return %c0_i32, %c0_i32_0 : i32, i32
  }
  func.func @transform_10(%arg0: i32, %arg1: i32) -> (i32, i32) {
    %c0_i32 = arith.constant 0 : i32
    %c0_i32_0 = arith.constant 0 : i32
    %c0_i32_1 = arith.constant 0 : i32
    return %c0_i32, %c0_i32_0 : i32, i32
  }
  func.func @transform_11(%arg0: i32, %arg1: i32) -> (i32, i32) {
    %c0_i32 = arith.constant 0 : i32
    %c0_i32_0 = arith.constant 0 : i32
    %c0_i32_1 = arith.constant 0 : i32
    return %c0_i32, %c0_i32_0 : i32, i32
  }
  func.func @transform_12(%arg0: i32, %arg1: i32) -> (i32, i32) {
    %c0_i32 = arith.constant 0 : i32
    %c0_i32_0 = arith.constant 0 : i32
    %c0_i32_1 = arith.constant 0 : i32
    return %c0_i32, %c0_i32_0 : i32, i32
  }
  func.func @transform_13(%arg0: i32, %arg1: i32) -> (i32, i32) {
    %c0_i32 = arith.constant 0 : i32
    %c0_i32_0 = arith.constant 0 : i32
    %c0_i32_1 = arith.constant 0 : i32
    return %c0_i32, %c0_i32_0 : i32, i32
  }
  func.func @transform_14(%arg0: i32, %arg1: i32) -> (i32, i32) {
    %c0_i32 = arith.constant 0 : i32
    %c0_i32_0 = arith.constant 0 : i32
    %c0_i32_1 = arith.constant 0 : i32
    return %c0_i32, %c0_i32_0 : i32, i32
  }
  func.func @transform_15(%arg0: i32, %arg1: i32) -> (i32, i32) {
    %c0_i32 = arith.constant 0 : i32
    %c0_i32_0 = arith.constant 0 : i32
    %c0_i32_1 = arith.constant 0 : i32
    return %c0_i32, %c0_i32_0 : i32, i32
  }
  func.func @transform_16(%arg0: i32, %arg1: i32) -> (i32, i32) {
    %c0_i32 = arith.constant 0 : i32
    %c0_i32_0 = arith.constant 0 : i32
    %c0_i32_1 = arith.constant 0 : i32
    return %c0_i32, %c0_i32_0 : i32, i32
  }
  func.func @transform_17(%arg0: i32, %arg1: i32) -> (i32, i32) {
    %c0_i32 = arith.constant 0 : i32
    %c0_i32_0 = arith.constant 0 : i32
    %c0_i32_1 = arith.constant 0 : i32
    return %c0_i32, %c0_i32_0 : i32, i32
  }
  func.func @transform_18(%arg0: i32, %arg1: i32) -> (i32, i32, i32) {
    %c0_i32 = arith.constant 0 : i32
    %c0_i32_0 = arith.constant 0 : i32
    %c0_i32_1 = arith.constant 0 : i32
    return %arg0, %c0_i32, %c0_i32_0 : i32, i32, i32
  }
  func.func @transform_19(%arg0: i32, %arg1: i32) -> (i32, i32, i32) {
    %c0_i32 = arith.constant 0 : i32
    %c0_i32_0 = arith.constant 0 : i32
    %c0_i32_1 = arith.constant 0 : i32
    return %arg0, %c0_i32, %c0_i32_0 : i32, i32, i32
  }
}

</mosaic_0001>

<llo_original>
// kernel: tpu_custom_call.1
$region0: #{tpu_custom_call.1}
  #allocation0 [shape = 'u32[]', space=smem, size = 0x4, offset = 0x4, fixed_abs, tag = 'smem constant byte address 0x4 - core index']
  #allocation1 [shape = 'u32[144,128]{1,0:T(1,128)}', space=vmem, size = 0x12000, scoped, tag = 'internal scratch']
  #allocation2 [shape = 'f32[1,1]{1,0:T(1,128)}', space=vmem, size = 0x200, scoped, tag = 'scratch operand']
  #allocation3 [shape = 'f32[1,1]{1,0:T(1,128)}', space=vmem, size = 0x200, scoped, tag = 'scratch operand']
  #allocation4 [shape = 'f32[1,256]{1,0:T(1,128)}', space=vmem, size = 0x400, scoped, tag = 'scratch operand']
  #allocation5 [shape = 'f32[1,1]{1,0:T(1,128)S(1)}', space=vmem, size = 0x200, scoped, tag = 'scoped memory for tpu_custom_call.1']
  #allocation6 [shape = 'f32[1,1]{1,0:T(1,128)S(1)}', space=vmem, size = 0x200, scoped, tag = 'scoped memory for tpu_custom_call.1']
  %s0 = inlined_call_operand.vmem [shape: f32[8], index: 0, kind: input, shape index: {}]
  %s1 = inlined_call_operand.hbm [shape: bf16[1,128,256], index: 1, kind: input, shape index: {}]
  %s2 = inlined_call_operand.hbm [shape: bf16[256,1024], index: 2, kind: input, shape index: {}]
  %s3 = inlined_call_operand.vmem [shape: f32[1,1024], index: 3, kind: input, shape index: {}]
  %s4 = inlined_call_operand.hbm [shape: bf16[1024,512], index: 4, kind: input, shape index: {}]
  %s5 = inlined_call_operand.vmem [shape: f32[1,512], index: 5, kind: input, shape index: {}]
  %s6 = inlined_call_operand.hbm [shape: bf16[512,256], index: 6, kind: input, shape index: {}]
  %s7 = inlined_call_operand.vmem [shape: f32[1,256], index: 7, kind: input, shape index: {}]
  %s8 = inlined_call_operand.hbm [shape: bf16[256,128], index: 8, kind: input, shape index: {}]
  %s9 = inlined_call_operand.vmem [shape: f32[1,128], index: 9, kind: input, shape index: {}]
  %s10 = inlined_call_operand.vmem [shape: f32[1,128], index: 10, kind: input, shape index: {}]
  %s11 = inlined_call_operand.<no memory space> [shape: f32[1,1], index: 11, kind: input, shape index: {}]
  %s12 = inlined_call_operand.hbm [shape: bf16[256,128], index: 12, kind: input, shape index: {}]
  %s13 = inlined_call_operand.vmem [shape: f32[1,128], index: 13, kind: input, shape index: {}]
  %s14 = inlined_call_operand.hbm [shape: bf16[128,128], index: 14, kind: input, shape index: {}]
  %s15 = inlined_call_operand.vmem [shape: f32[1,128], index: 15, kind: input, shape index: {}]
  %s16 = inlined_call_operand.vmem [shape: f32[1,128], index: 16, kind: input, shape index: {}]
  %s17 = inlined_call_operand.<no memory space> [shape: f32[1,1], index: 17, kind: input, shape index: {}]
  %s18 = inlined_call_operand.hbm [shape: f32[1,1,1], index: 18, kind: output, shape index: {0}]
  %s19 = inlined_call_operand.hbm [shape: f32[1,1,128], index: 19, kind: output, shape index: {1}]
  %20 = xla_tuple %s18, %s19
  %s21 = sld [smem:[#allocation0]]
  $region130: #{tpu_custom_call.1} parent=0
    _
  %s23 = ssub.s32 1, %s21
  %s24 = scalar_select 0, %s23, %s21
  %v25 = vstv %s11
  %26 = vst [vmem:[#allocation5] sm:$0x1] %v25
  %v27 = vstv %s17
  %28 = vst [vmem:[#allocation6] sm:$0x1] %v27
  $region1: #{tpu_custom_call.1} parent=0
    #allocation7 [shape = 'u8[512]{0}', space=smem, size = 0x200, scoped, tag = 'input window, operand 0, single buffered']
    #allocation8 [shape = 's32[1]{0}', space=sflag, size = 0x4, scoped, tag = 'scoped memory for tpu_custom_call.1']
    #allocation9 [shape = 's32[1]{0}', space=sflag, size = 0x4, scoped, tag = 'scoped memory for tpu_custom_call.1']
    #allocation10 [shape = 's32[1]{0}', space=sflag, size = 0x4, scoped, tag = 'scoped memory for tpu_custom_call.1']
    #allocation11 [shape = 'u8[65536]{0}', space=vmem, size = 0x10000, scoped, tag = 'input window, operand 1, single buffered']
    #allocation12 [shape = 'u8[524288]{0}', space=vmem, size = 0x80000, scoped, tag = 'input window, operand 2, single buffered']
    #allocation13 [shape = 's32[1]{0}', space=sflag, size = 0x4, scoped, tag = 'scoped memory for tpu_custom_call.1']
    #allocation14 [shape = 'u8[1048576]{0}', space=vmem, size = 0x100000, scoped, tag = 'input window, operand 4, single buffered']
    #allocation15 [shape = 'u8[262144]{0}', space=vmem, size = 0x40000, scoped, tag = 'input window, operand 6, single buffered']
    #allocation16 [shape = 's32[1]{0}', space=sflag, size = 0x4, scoped, tag = 'scoped memory for tpu_custom_call.1']
    #allocation17 [shape = 'u8[65536]{0}', space=vmem, size = 0x10000, scoped, tag = 'input window, operand 8, single buffered']
    #allocation18 [shape = 'u8[65536]{0}', space=vmem, size = 0x10000, scoped, tag = 'input window, operand 12, single buffered']
    #allocation19 [shape = 's32[1]{0}', space=sflag, size = 0x4, scoped, tag = 'scoped memory for tpu_custom_call.1']
    #allocation20 [shape = 'u8[32768]{0}', space=vmem, size = 0x8000, scoped, tag = 'input window, operand 14, single buffered']
    #allocation21 [shape = 'u8[512]{0}', space=vmem, size = 0x400, scoped, tag = 'output window, operand 0, single buffered']
    #allocation22 [shape = 'u8[512]{0}', space=vmem, size = 0x400, scoped, tag = 'output window, operand 1, single buffered']
    #allocation23 [shape = 's32[1]{0}', space=sflag, size = 0x4, scoped, tag = 'scoped memory for tpu_custom_call.1']
    %29 = vsyncpa [#allocation10], 0
    %30 = vsyncpa [#allocation8], 0
    %31 = vsyncpa [#allocation13], 0
    %32 = vsyncpa [#allocation16], 0
    %33 = vsyncpa [#allocation19], 0
    %34 = vsyncpa [#allocation9], 0
    %35 = vsyncpa [#allocation23], 0
    // Predicated region
    $region2: #{tpu_custom_call.1} parent=1 // pred_check
      _
    $region3: #{tpu_custom_call.1} parent=1 // pred_check_branch
      %37 = sbr.rel (0) target = $region5
    $region4: #{tpu_custom_call.1} parent=1 // pred_region
      %s39 = ssub.s32 16, 16
      %40 = vsyncadd [#allocation10], %s39
      %s42 = sshll.u32 %s0, 4
      %s43 = int_to_ptr.vmem [resolvable:$true] %s42
      %45 = dma.vmem_to_smem %s43, 16, [#allocation7], [#allocation10]
    $region5: #{tpu_custom_call.1} parent=1 // pred_fallthru
      _
    // Predicated region
    $region6: #{tpu_custom_call.1} parent=1 // pred_check
      _
    $region7: #{tpu_custom_call.1} parent=1 // pred_check_branch
      %47 = sbr.rel (0) target = $region9
    $region8: #{tpu_custom_call.1} parent=1 // pred_region
      %s49 = ssub.s32 2048, 2048
      %50 = vsyncadd [#allocation8], %s49
      %s51 = sshll.u32 [#allocation11], 4
      %s52 = int_to_ptr.vmem [resolvable:$true] %s51
      %57 = dma.hbm_to_vmem [thread:$0]  %s1, 2048, %s52, [#allocation8], 128, 128, 8
    $region9: #{tpu_custom_call.1} parent=1 // pred_fallthru
      _
    // Predicated region
    $region10: #{tpu_custom_call.1} parent=1 // pred_check
      _
    $region11: #{tpu_custom_call.1} parent=1 // pred_check_branch
      %59 = sbr.rel (0) target = $region13
    $region12: #{tpu_custom_call.1} parent=1 // pred_region
      %s61 = ssub.s32 16384, 16384
      %62 = vsyncadd [#allocation13], %s61
      %s63 = sshll.u32 [#allocation12], 4
      %s64 = int_to_ptr.vmem [resolvable:$true] %s63
      %69 = dma.hbm_to_vmem [thread:$0]  %s2, 16384, %s64, [#allocation13], 512, 512, 32
    $region13: #{tpu_custom_call.1} parent=1 // pred_fallthru
      _
    // Predicated region
    $region14: #{tpu_custom_call.1} parent=1 // pred_check
      _
    $region15: #{tpu_custom_call.1} parent=1 // pred_check_branch
      %71 = sbr.rel (0) target = $region17
    $region16: #{tpu_custom_call.1} parent=1 // pred_region
      _
    $region17: #{tpu_custom_call.1} parent=1 // pred_fallthru
      _
    // Predicated region
    $region18: #{tpu_custom_call.1} parent=1 // pred_check
      _
    $region19: #{tpu_custom_call.1} parent=1 // pred_check_branch
      %73 = sbr.rel (0) target = $region21
    $region20: #{tpu_custom_call.1} parent=1 // pred_region
      %s75 = ssub.s32 32768, 32768
      %76 = vsyncadd [#allocation13], %s75
      %s77 = sshll.u32 [#allocation14], 4
      %s78 = int_to_ptr.vmem [resolvable:$true] %s77
      %83 = dma.hbm_to_vmem [thread:$0]  %s4, 32768, %s78, [#allocation13], 256, 256, 16
    $region21: #{tpu_custom_call.1} parent=1 // pred_fallthru
      _
    // Predicated region
    $region22: #{tpu_custom_call.1} parent=1 // pred_check
      _
    $region23: #{tpu_custom_call.1} parent=1 // pred_check_branch
      %85 = sbr.rel (0) target = $region25
    $region24: #{tpu_custom_call.1} parent=1 // pred_region
      _
    $region25: #{tpu_custom_call.1} parent=1 // pred_fallthru
      _
    // Predicated region
    $region26: #{tpu_custom_call.1} parent=1 // pred_check
      _
    $region27: #{tpu_custom_call.1} parent=1 // pred_check_branch
      %87 = sbr.rel (0) target = $region29
    $region28: #{tpu_custom_call.1} parent=1 // pred_region
      %s89 = ssub.s32 8192, 8192
      %90 = vsyncadd [#allocation16], %s89
      %s91 = sshll.u32 [#allocation15], 4
      %s92 = int_to_ptr.vmem [resolvable:$true] %s91
      %97 = dma.hbm_to_vmem [thread:$0]  %s6, 8192, %s92, [#allocation16], 128, 128, 8
    $region29: #{tpu_custom_call.1} parent=1 // pred_fallthru
      _
    // Predicated region
    $region30: #{tpu_custom_call.1} parent=1 // pred_check
      _
    $region31: #{tpu_custom_call.1} parent=1 // pred_check_branch
      %99 = sbr.rel (0) target = $region33
    $region32: #{tpu_custom_call.1} parent=1 // pred_region
      _
    $region33: #{tpu_custom_call.1} parent=1 // pred_fallthru
      _
    // Predicated region
    $region34: #{tpu_custom_call.1} parent=1 // pred_check
      _
    $region35: #{tpu_custom_call.1} parent=1 // pred_check_branch
      %101 = sbr.rel (0) target = $region37
    $region36: #{tpu_custom_call.1} parent=1 // pred_region
      %s103 = ssub.s32 2048, 2048
      %104 = vsyncadd [#allocation16], %s103
      %s105 = sshll.u32 [#allocation17], 4
      %s106 = int_to_ptr.vmem [resolvable:$true] %s105
      %111 = dma.hbm_to_vmem [thread:$0]  %s8, 2048, %s106, [#allocation16], 64, 64, 4
    $region37: #{tpu_custom_call.1} parent=1 // pred_fallthru
      _
    // Predicated region
    $region38: #{tpu_custom_call.1} parent=1 // pred_check
      _
    $region39: #{tpu_custom_call.1} parent=1 // pred_check_branch
      %113 = sbr.rel (0) target = $region41
    $region40: #{tpu_custom_call.1} parent=1 // pred_region
      _
    $region41: #{tpu_custom_call.1} parent=1 // pred_fallthru
      _
    // Predicated region
    $region42: #{tpu_custom_call.1} parent=1 // pred_check
      _
    $region43: #{tpu_custom_call.1} parent=1 // pred_check_branch
      %115 = sbr.rel (0) target = $region45
    $region44: #{tpu_custom_call.1} parent=1 // pred_region
      _
    $region45: #{tpu_custom_call.1} parent=1 // pred_fallthru
      _
    // Predicated region
    $region46: #{tpu_custom_call.1} parent=1 // pred_check
      _
    $region47: #{tpu_custom_call.1} parent=1 // pred_check_branch
      %117 = sbr.rel (0) target = $region49
    $region48: #{tpu_custom_call.1} parent=1 // pred_region
      _
    $region49: #{tpu_custom_call.1} parent=1 // pred_fallthru
      _
    // Predicated region
    $region50: #{tpu_custom_call.1} parent=1 // pred_check
      _
    $region51: #{tpu_custom_call.1} parent=1 // pred_check_branch
      %119 = sbr.rel (0) target = $region53
    $region52: #{tpu_custom_call.1} parent=1 // pred_region
      %s121 = ssub.s32 2048, 2048
      %122 = vsyncadd [#allocation19], %s121
      %s123 = sshll.u32 [#allocation18], 4
      %s124 = int_to_ptr.vmem [resolvable:$true] %s123
      %129 = dma.hbm_to_vmem [thread:$0]  %s12, 2048, %s124, [#allocation19], 64, 64, 4
    $region53: #{tpu_custom_call.1} parent=1 // pred_fallthru
      _
    // Predicated region
    $region54: #{tpu_custom_call.1} parent=1 // pred_check
      _
    $region55: #{tpu_custom_call.1} parent=1 // pred_check_branch
      %131 = sbr.rel (0) target = $region57
    $region56: #{tpu_custom_call.1} parent=1 // pred_region
      _
    $region57: #{tpu_custom_call.1} parent=1 // pred_fallthru
      _
    // Predicated region
    $region58: #{tpu_custom_call.1} parent=1 // pred_check
      _
    $region59: #{tpu_custom_call.1} parent=1 // pred_check_branch
      %133 = sbr.rel (0) target = $region61
    $region60: #{tpu_custom_call.1} parent=1 // pred_region
      %s135 = ssub.s32 1024, 1024
      %136 = vsyncadd [#allocation19], %s135
      %s137 = sshll.u32 [#allocation20], 4
      %s138 = int_to_ptr.vmem [resolvable:$true] %s137
      %143 = dma.hbm_to_vmem [thread:$0]  %s14, 1024, %s138, [#allocation19], 64, 64, 4
    $region61: #{tpu_custom_call.1} parent=1 // pred_fallthru
      _
    // Predicated region
    $region62: #{tpu_custom_call.1} parent=1 // pred_check
      _
    $region63: #{tpu_custom_call.1} parent=1 // pred_check_branch
      %145 = sbr.rel (0) target = $region65
    $region64: #{tpu_custom_call.1} parent=1 // pred_region
      _
    $region65: #{tpu_custom_call.1} parent=1 // pred_fallthru
      _
    // Predicated region
    $region66: #{tpu_custom_call.1} parent=1 // pred_check
      _
    $region67: #{tpu_custom_call.1} parent=1 // pred_check_branch
      %147 = sbr.rel (0) target = $region69
    $region68: #{tpu_custom_call.1} parent=1 // pred_region
      _
    $region69: #{tpu_custom_call.1} parent=1 // pred_fallthru
      _
    // Predicated region
    $region70: #{tpu_custom_call.1} parent=1 // pred_check
      _
    $region71: #{tpu_custom_call.1} parent=1 // pred_check_branch
      %149 = sbr.rel (0) target = $region73
    $region72: #{tpu_custom_call.1} parent=1 // pred_region
      _
    $region73: #{tpu_custom_call.1} parent=1 // pred_fallthru
      _
    // Predicated region
    $region74: #{tpu_custom_call.1} parent=1 // pred_check
      _
    $region75: #{tpu_custom_call.1} parent=1 // pred_check_branch
      %151 = sbr.rel (0) target = $region77
    $region76: #{tpu_custom_call.1} parent=1 // pred_region
      %152 = dma.done [#allocation10], 16
    $region77: #{tpu_custom_call.1} parent=1 // pred_fallthru
      _
    // Predicated region
    $region78: #{tpu_custom_call.1} parent=1 // pred_check
      _
    $region79: #{tpu_custom_call.1} parent=1 // pred_check_branch
      %154 = sbr.rel (0) target = $region81
    $region80: #{tpu_custom_call.1} parent=1 // pred_region
      %155 = dma.done [#allocation8], 2048
    $region81: #{tpu_custom_call.1} parent=1 // pred_fallthru
      _
    // Predicated region
    $region82: #{tpu_custom_call.1} parent=1 // pred_check
      _
    $region83: #{tpu_custom_call.1} parent=1 // pred_check_branch
      %157 = sbr.rel (0) target = $region85
    $region84: #{tpu_custom_call.1} parent=1 // pred_region
      %158 = dma.done [#allocation13], 16384
    $region85: #{tpu_custom_call.1} parent=1 // pred_fallthru
      _
    // Predicated region
    $region86: #{tpu_custom_call.1} parent=1 // pred_check
      _
    $region87: #{tpu_custom_call.1} parent=1 // pred_check_branch
      %160 = sbr.rel (0) target = $region89
    $region88: #{tpu_custom_call.1} parent=1 // pred_region
      %161 = dma.done [#allocation13], 32768
    $region89: #{tpu_custom_call.1} parent=1 // pred_fallthru
      _
    // Predicated region
    $region90: #{tpu_custom_call.1} parent=1 // pred_check
      _
    $region91: #{tpu_custom_call.1} parent=1 // pred_check_branch
      %163 = sbr.rel (0) target = $region93
    $region92: #{tpu_custom_call.1} parent=1 // pred_region
      %164 = dma.done [#allocation16], 8192
    $region93: #{tpu_custom_call.1} parent=1 // pred_fallthru
      _
    // Predicated region
    $region94: #{tpu_custom_call.1} parent=1 // pred_check
      _
    $region95: #{tpu_custom_call.1} parent=1 // pred_check_branch
      %166 = sbr.rel (0) target = $region97
    $region96: #{tpu_custom_call.1} parent=1 // pred_region
      %167 = dma.done [#allocation16], 2048
    $region97: #{tpu_custom_call.1} parent=1 // pred_fallthru
      _
    // Predicated region
    $region98: #{tpu_custom_call.1} parent=1 // pred_check
      _
    $region99: #{tpu_custom_call.1} parent=1 // pred_check_branch
      %169 = sbr.rel (0) target = $region101
    $region100: #{tpu_custom_call.1} parent=1 // pred_region
      %170 = dma.done [#allocation19], 2048
    $region101: #{tpu_custom_call.1} parent=1 // pred_fallthru
      _
    // Predicated region
    $region102: #{tpu_custom_call.1} parent=1 // pred_check
      _
    $region103: #{tpu_custom_call.1} parent=1 // pred_check_branch
      %172 = sbr.rel (0) target = $region105
    $region104: #{tpu_custom_call.1} parent=1 // pred_region
      %173 = dma.done [#allocation19], 1024
    $region105: #{tpu_custom_call.1} parent=1 // pred_fallthru
      _
    %174 = sfence
    %s176 = sld [smem:[#allocation7]]
    %s177 = sld [smem:[#allocation7 + $0x1]]
    %s178 = sld [smem:[#allocation7 + $0x2]]
    %s179 = sld [smem:[#allocation7 + $0x3]]
    %s180 = sld [smem:[#allocation7 + $0x4]]
    %p181 = scmp.eq.s32.totalorder 0, 0
    // Predicated region
    $region106: #{tpu_custom_call.1} parent=1 // pred_check
      %p182 = pneg %p181
    $region107: #{tpu_custom_call.1} parent=1 // pred_check_branch
      %184 = sbr.rel (%p182) target = $region109
    $region108: #{tpu_custom_call.1} parent=1 // pred_region
      %vm185 = vcmask 0
      %186 = vst.msk [vmem:[#allocation2] sm:$0x1] %vm185, -inf
      %187 = vst.msk [vmem:[#allocation3] sm:$0x1] %vm185, 0.0
      %v188 = vlaneseq
      %vm189 = vcmp.ge.s32.totalorder %v188, 0
      %vm190 = vcmp.lt.s32.totalorder %v188, 256
      %vm191 = vmand %vm189, %vm190
      %192 = vst.msk [vmem:[#allocation4] sm:$0x3] %vm191, 0.0
    $region109: #{tpu_custom_call.1} parent=1 // pred_fallthru
      _
    %v193 = vld [vmem:[#allocation11] sm:$0xff]
    %v194 = vld [vmem:[#allocation11 + $0x8] sm:$0xff]
    %v195 = vld [vmem:[#allocation11 + $0x10] sm:$0xff]
    %v196 = vld [vmem:[#allocation11 + $0x18] sm:$0xff]
    %v197 = vld [vmem:[#allocation11 + $0x20] sm:$0xff]
    %v198 = vld [vmem:[#allocation11 + $0x28] sm:$0xff]
    %v199 = vld [vmem:[#allocation11 + $0x30] sm:$0xff]
    %v200 = vld [vmem:[#allocation11 + $0x38] sm:$0xff]
    %v201 = vld [vmem:[#allocation11 + $0x40] sm:$0xff]
    %v202 = vld [vmem:[#allocation11 + $0x48] sm:$0xff]
    %v203 = vld [vmem:[#allocation11 + $0x50] sm:$0xff]
    %v204 = vld [vmem:[#allocation11 + $0x58] sm:$0xff]
    %v205 = vld [vmem:[#allocation11 + $0x60] sm:$0xff]
    %v206 = vld [vmem:[#allocation11 + $0x68] sm:$0xff]
    %v207 = vld [vmem:[#allocation11 + $0x70] sm:$0xff]
    %v208 = vld [vmem:[#allocation11 + $0x78] sm:$0xff]
    %v209 = vld [vmem:[#allocation12] sm:$0xff]
    %v210 = vld [vmem:[#allocation12 + $0x8] sm:$0xff]
    %v211 = vld [vmem:[#allocation12 + $0x10] sm:$0xff]
    %v212 = vld [vmem:[#allocation12 + $0x18] sm:$0xff]
    %v213 = vld [vmem:[#allocation12 + $0x20] sm:$0xff]
    %v214 = vld [vmem:[#allocation12 + $0x28] sm:$0xff]
    %v215 = vld [vmem:[#allocation12 + $0x30] sm:$0xff]
    %v216 = vld [vmem:[#allocation12 + $0x38] sm:$0xff]
    %v217 = vld [vmem:[#allocation12 + $0x40] sm:$0xff]
    %v218 = vld [vmem:[#allocation12 + $0x48] sm:$0xff]
    %v219 = vld [vmem:[#allocation12 + $0x50] sm:$0xff]
    %v220 = vld [vmem:[#allocation12 + $0x58] sm:$0xff]
    %v221 = vld [vmem:[#allocation12 + $0x60] sm:$0xff]
    %v222 = vld [vmem:[#allocation12 + $0x68] sm:$0xff]
    %v223 = vld [vmem:[#allocation12 + $0x70] sm:$0xff]
    %v224 = vld [vmem:[#allocation12 + $0x78] sm:$0xff]
    %v225 = vld [vmem:[#allocation12 + $0x80] sm:$0xff]
    %v226 = vld [vmem:[#allocation12 + $0x88] sm:$0xff]
    %v227 = vld [vmem:[#allocation12 + $0x90] sm:$0xff]
    %v228 = vld [vmem:[#allocation12 + $0x98] sm:$0xff]
    %v229 = vld [vmem:[#allocation12 + $0xa0] sm:$0xff]
    %v230 = vld [vmem:[#allocation12 + $0xa8] sm:$0xff]
    %v231 = vld [vmem:[#allocation12 + $0xb0] sm:$0xff]
    %v232 = vld [vmem:[#allocation12 + $0xb8] sm:$0xff]
    %v233 = vld [vmem:[#allocation12 + $0xc0] sm:$0xff]
    %v234 = vld [vmem:[#allocation12 + $0xc8] sm:$0xff]
    %v235 = vld [vmem:[#allocation12 + $0xd0] sm:$0xff]
    %v236 = vld [vmem:[#allocation12 + $0xd8] sm:$0xff]
    %v237 = vld [vmem:[#allocation12 + $0xe0] sm:$0xff]
    %v238 = vld [vmem:[#allocation12 + $0xe8] sm:$0xff]
    %v239 = vld [vmem:[#allocation12 + $0xf0] sm:$0xff]
    %v240 = vld [vmem:[#allocation12 + $0xf8] sm:$0xff]
    %v241 = vld [vmem:[#allocation12 + $0x100] sm:$0xff]
    %v242 = vld [vmem:[#allocation12 + $0x108] sm:$0xff]
    %v243 = vld [vmem:[#allocation12 + $0x110] sm:$0xff]
    %v244 = vld [vmem:[#allocation12 + $0x118] sm:$0xff]
    %v245 = vld [vmem:[#allocation12 + $0x120] sm:$0xff]
    %v246 = vld [vmem:[#allocation12 + $0x128] sm:$0xff]
    %v247 = vld [vmem:[#allocation12 + $0x130] sm:$0xff]
    %v248 = vld [vmem:[#allocation12 + $0x138] sm:$0xff]
    %v249 = vld [vmem:[#allocation12 + $0x140] sm:$0xff]
    %v250 = vld [vmem:[#allocation12 + $0x148] sm:$0xff]
    %v251 = vld [vmem:[#allocation12 + $0x150] sm:$0xff]
    %v252 = vld [vmem:[#allocation12 + $0x158] sm:$0xff]
    %v253 = vld [vmem:[#allocation12 + $0x160] sm:$0xff]
    %v254 = vld [vmem:[#allocation12 + $0x168] sm:$0xff]
    %v255 = vld [vmem:[#allocation12 + $0x170] sm:$0xff]
    %v256 = vld [vmem:[#allocation12 + $0x178] sm:$0xff]
    %v257 = vld [vmem:[#allocation12 + $0x180] sm:$0xff]
    %v258 = vld [vmem:[#allocation12 + $0x188] sm:$0xff]
    %v259 = vld [vmem:[#allocation12 + $0x190] sm:$0xff]
    %v260 = vld [vmem:[#allocation12 + $0x198] sm:$0xff]
    %v261 = vld [vmem:[#allocation12 + $0x1a0] sm:$0xff]
    %v262 = vld [vmem:[#allocation12 + $0x1a8] sm:$0xff]
    %v263 = vld [vmem:[#allocation12 + $0x1b0] sm:$0xff]
    %v264 = vld [vmem:[#allocation12 + $0x1b8] sm:$0xff]
    %v265 = vld [vmem:[#allocation12 + $0x1c0] sm:$0xff]
    %v266 = vld [vmem:[#allocation12 + $0x1c8] sm:$0xff]
    %v267 = vld [vmem:[#allocation12 + $0x1d0] sm:$0xff]
    %v268 = vld [vmem:[#allocation12 + $0x1d8] sm:$0xff]
    %v269 = vld [vmem:[#allocation12 + $0x1e0] sm:$0xff]
    %v270 = vld [vmem:[#allocation12 + $0x1e8] sm:$0xff]
    %v271 = vld [vmem:[#allocation12 + $0x1f0] sm:$0xff]
    %v272 = vld [vmem:[#allocation12 + $0x1f8] sm:$0xff]
    %v273 = vld [vmem:[#allocation12 + $0x200] sm:$0xff]
    %v274 = vld [vmem:[#allocation12 + $0x208] sm:$0xff]
    %v275 = vld [vmem:[#allocation12 + $0x210] sm:$0xff]
    %v276 = vld [vmem:[#allocation12 + $0x218] sm:$0xff]
    %v277 = vld [vmem:[#allocation12 + $0x220] sm:$0xff]
    %v278 = vld [vmem:[#allocation12 + $0x228] sm:$0xff]
    %v279 = vld [vmem:[#allocation12 + $0x230] sm:$0xff]
    %v280 = vld [vmem:[#allocation12 + $0x238] sm:$0xff]
    %v281 = vld [vmem:[#allocation12 + $0x240] sm:$0xff]
    %v282 = vld [vmem:[#allocation12 + $0x248] sm:$0xff]
    %v283 = vld [vmem:[#allocation12 + $0x250] sm:$0xff]
    %v284 = vld [vmem:[#allocation12 + $0x258] sm:$0xff]
    %v285 = vld [vmem:[#allocation12 + $0x260] sm:$0xff]
    %v286 = vld [vmem:[#allocation12 + $0x268] sm:$0xff]
    %v287 = vld [vmem:[#allocation12 + $0x270] sm:$0xff]
    %v288 = vld [vmem:[#allocation12 + $0x278] sm:$0xff]
    %v289 = vld [vmem:[#allocation12 + $0x280] sm:$0xff]
    %v290 = vld [vmem:[#allocation12 + $0x288] sm:$0xff]
    %v291 = vld [vmem:[#allocation12 + $0x290] sm:$0xff]
    %v292 = vld [vmem:[#allocation12 + $0x298] sm:$0xff]
    %v293 = vld [vmem:[#allocation12 + $0x2a0] sm:$0xff]
    %v294 = vld [vmem:[#allocation12 + $0x2a8] sm:$0xff]
    %v295 = vld [vmem:[#allocation12 + $0x2b0] sm:$0xff]
    %v296 = vld [vmem:[#allocation12 + $0x2b8] sm:$0xff]
    %v297 = vld [vmem:[#allocation12 + $0x2c0] sm:$0xff]
    %v298 = vld [vmem:[#allocation12 + $0x2c8] sm:$0xff]
    %v299 = vld [vmem:[#allocation12 + $0x2d0] sm:$0xff]
    %v300 = vld [vmem:[#allocation12 + $0x2d8] sm:$0xff]
    %v301 = vld [vmem:[#allocation12 + $0x2e0] sm:$0xff]
    %v302 = vld [vmem:[#allocation12 + $0x2e8] sm:$0xff]
    %v303 = vld [vmem:[#allocation12 + $0x2f0] sm:$0xff]
    %v304 = vld [vmem:[#allocation12 + $0x2f8] sm:$0xff]
    %v305 = vld [vmem:[#allocation12 + $0x300] sm:$0xff]
    %v306 = vld [vmem:[#allocation12 + $0x308] sm:$0xff]
    %v307 = vld [vmem:[#allocation12 + $0x310] sm:$0xff]
    %v308 = vld [vmem:[#allocation12 + $0x318] sm:$0xff]
    %v309 = vld [vmem:[#allocation12 + $0x320] sm:$0xff]
    %v310 = vld [vmem:[#allocation12 + $0x328] sm:$0xff]
    %v311 = vld [vmem:[#allocation12 + $0x330] sm:$0xff]
    %v312 = vld [vmem:[#allocation12 + $0x338] sm:$0xff]
    %v313 = vld [vmem:[#allocation12 + $0x340] sm:$0xff]
    %v314 = vld [vmem:[#allocation12 + $0x348] sm:$0xff]
    %v315 = vld [vmem:[#allocation12 + $0x350] sm:$0xff]
    %v316 = vld [vmem:[#allocation12 + $0x358] sm:$0xff]
    %v317 = vld [vmem:[#allocation12 + $0x360] sm:$0xff]
    %v318 = vld [vmem:[#allocation12 + $0x368] sm:$0xff]
    %v319 = vld [vmem:[#allocation12 + $0x370] sm:$0xff]
    %v320 = vld [vmem:[#allocation12 + $0x378] sm:$0xff]
    %v321 = vld [vmem:[#allocation12 + $0x380] sm:$0xff]
    %v322 = vld [vmem:[#allocation12 + $0x388] sm:$0xff]
    %v323 = vld [vmem:[#allocation12 + $0x390] sm:$0xff]
    %v324 = vld [vmem:[#allocation12 + $0x398] sm:$0xff]
    %v325 = vld [vmem:[#allocation12 + $0x3a0] sm:$0xff]
    %v326 = vld [vmem:[#allocation12 + $0x3a8] sm:$0xff]
    %v327 = vld [vmem:[#allocation12 + $0x3b0] sm:$0xff]
    %v328 = vld [vmem:[#allocation12 + $0x3b8] sm:$0xff]
    %v329 = vld [vmem:[#allocation12 + $0x3c0] sm:$0xff]
    %v330 = vld [vmem:[#allocation12 + $0x3c8] sm:$0xff]
    %v331 = vld [vmem:[#allocation12 + $0x3d0] sm:$0xff]
    %v332 = vld [vmem:[#allocation12 + $0x3d8] sm:$0xff]
    %v333 = vld [vmem:[#allocation12 + $0x3e0] sm:$0xff]
    %v334 = vld [vmem:[#allocation12 + $0x3e8] sm:$0xff]
    %v335 = vld [vmem:[#allocation12 + $0x3f0] sm:$0xff]
    %v336 = vld [vmem:[#allocation12 + $0x3f8] sm:$0xff]
    %v337 = vld [vmem:[%s3] sm:$0xff]
    %v339 = vlaneseq
    %v340 = vshrl.u32 %v339, 7
    %v341 = vsub.s32 0, %v340
    %v342 = vrot.slane %v337, %v341
    %v343 = vlaneseq
    %v344 = vshrl.u32 %v343, 7
    %v345 = vsub.s32 1, %v344
    %v346 = vrot.slane %v337, %v345
    %v347 = vlaneseq
    %v348 = vshrl.u32 %v347, 7
    %v349 = vsub.s32 2, %v348
    %v350 = vrot.slane %v337, %v349
    %v351 = vlaneseq
    %v352 = vshrl.u32 %v351, 7
    %v353 = vsub.s32 3, %v352
    %v354 = vrot.slane %v337, %v353
    %v355 = vlaneseq
    %v356 = vshrl.u32 %v355, 7
    %v357 = vsub.s32 4, %v356
    %v358 = vrot.slane %v337, %v357
    %v359 = vlaneseq
    %v360 = vshrl.u32 %v359, 7
    %v361 = vsub.s32 5, %v360
    %v362 = vrot.slane %v337, %v361
    %v363 = vlaneseq
    %v364 = vshrl.u32 %v363, 7
    %v365 = vsub.s32 6, %v364
    %v366 = vrot.slane %v337, %v365
    %v367 = vlaneseq
    %v368 = vshrl.u32 %v367, 7
    %v369 = vsub.s32 7, %v368
    %v370 = vrot.slane %v337, %v369
    %v395 = vunpack.c.l.b16 %v193
    %v396 = vunpack.c.h.b16 %v193
    %v397 = vunpack.c.l.b16 %v194
    %v398 = vunpack.c.h.b16 %v194
    %v399 = vunpack.c.l.b16 %v195
    %v400 = vunpack.c.h.b16 %v195
    %v401 = vunpack.c.l.b16 %v196
    %v402 = vunpack.c.h.b16 %v196
    %v403 = vunpack.c.l.b16 %v197
    %v404 = vunpack.c.h.b16 %v197
    %v405 = vunpack.c.l.b16 %v198
    %v406 = vunpack.c.h.b16 %v198
    %v407 = vunpack.c.l.b16 %v199
    %v408 = vunpack.c.h.b16 %v199
    %v409 = vunpack.c.l.b16 %v200
    %v410 = vunpack.c.h.b16 %v200
    %v411 = vunpack.c.l.b16 %v201
    %v412 = vunpack.c.h.b16 %v201
    %v413 = vunpack.c.l.b16 %v202
    %v414 = vunpack.c.h.b16 %v202
    %v415 = vunpack.c.l.b16 %v203
    %v416 = vunpack.c.h.b16 %v203
    %v417 = vunpack.c.l.b16 %v204
    %v418 = vunpack.c.h.b16 %v204
    %v419 = vunpack.c.l.b16 %v205
    %v420 = vunpack.c.h.b16 %v205
    %v421 = vunpack.c.l.b16 %v206
    %v422 = vunpack.c.h.b16 %v206
    %v423 = vunpack.c.l.b16 %v207
    %v424 = vunpack.c.h.b16 %v207
    %v425 = vunpack.c.l.b16 %v208
    %v426 = vunpack.c.h.b16 %v208
    %v427 = vpack.c.b16 %v397, %v395
    %v428 = vpack.c.b16 %v398, %v396
    %v429 = vpack.c.b16 %v401, %v399
    %v430 = vpack.c.b16 %v402, %v400
    %v431 = vpack.c.b16 %v405, %v403
    %v432 = vpack.c.b16 %v406, %v404
    %v433 = vpack.c.b16 %v409, %v407
    %v434 = vpack.c.b16 %v410, %v408
    %v435 = vpack.c.b16 %v413, %v411
    %v436 = vpack.c.b16 %v414, %v412
    %v437 = vpack.c.b16 %v417, %v415
    %v438 = vpack.c.b16 %v418, %v416
    %v439 = vpack.c.b16 %v421, %v419
    %v440 = vpack.c.b16 %v422, %v420
    %v441 = vpack.c.b16 %v425, %v423
    %v442 = vpack.c.b16 %v426, %v424
    %v587 = vunpack.c.l.b16 %v209
    %v588 = vunpack.c.h.b16 %v209
    %v589 = vunpack.c.l.b16 %v210
    %v590 = vunpack.c.h.b16 %v210
    %v591 = vunpack.c.l.b16 %v211
    %v592 = vunpack.c.h.b16 %v211
    %v593 = vunpack.c.l.b16 %v212
    %v594 = vunpack.c.h.b16 %v212
    %v595 = vunpack.c.l.b16 %v213
    %v596 = vunpack.c.h.b16 %v213
    %v597 = vunpack.c.l.b16 %v214
    %v598 = vunpack.c.h.b16 %v214
    %v599 = vunpack.c.l.b16 %v215
    %v600 = vunpack.c.h.b16 %v215
    %v601 = vunpack.c.l.b16 %v216
    %v602 = vunpack.c.h.b16 %v216
    %v603 = vunpack.c.l.b16 %v217
    %v604 = vunpack.c.h.b16 %v217
    %v605 = vunpack.c.l.b16 %v218
    %v606 = vunpack.c.h.b16 %v218
    %v607 = vunpack.c.l.b16 %v219
    %v608 = vunpack.c.h.b16 %v219
    %v609 = vunpack.c.l.b16 %v220
    %v610 = vunpack.c.h.b16 %v220
    %v611 = vunpack.c.l.b16 %v221
    %v612 = vunpack.c.h.b16 %v221
    %v613 = vunpack.c.l.b16 %v222
    %v614 = vunpack.c.h.b16 %v222
    %v615 = vunpack.c.l.b16 %v223
    %v616 = vunpack.c.h.b16 %v223
    %v617 = vunpack.c.l.b16 %v224
    %v618 = vunpack.c.h.b16 %v224
    %v619 = vunpack.c.l.b16 %v225
    %v620 = vunpack.c.h.b16 %v225
    %v621 = vunpack.c.l.b16 %v226
    %v622 = vunpack.c.h.b16 %v226
    %v623 = vunpack.c.l.b16 %v227
    %v624 = vunpack.c.h.b16 %v227
    %v625 = vunpack.c.l.b16 %v228
    %v626 = vunpack.c.h.b16 %v228
    %v627 = vunpack.c.l.b16 %v229
    %v628 = vunpack.c.h.b16 %v229
    %v629 = vunpack.c.l.b16 %v230
    %v630 = vunpack.c.h.b16 %v230
    %v631 = vunpack.c.l.b16 %v231
    %v632 = vunpack.c.h.b16 %v231
    %v633 = vunpack.c.l.b16 %v232
    %v634 = vunpack.c.h.b16 %v232
    %v635 = vunpack.c.l.b16 %v233
    %v636 = vunpack.c.h.b16 %v233
    %v637 = vunpack.c.l.b16 %v234
    %v638 = vunpack.c.h.b16 %v234
    %v639 = vunpack.c.l.b16 %v235
    %v640 = vunpack.c.h.b16 %v235
    %v641 = vunpack.c.l.b16 %v236
    %v642 = vunpack.c.h.b16 %v236
    %v643 = vunpack.c.l.b16 %v237
    %v644 = vunpack.c.h.b16 %v237
    %v645 = vunpack.c.l.b16 %v238
    %v646 = vunpack.c.h.b16 %v238
    %v647 = vunpack.c.l.b16 %v239
    %v648 = vunpack.c.h.b16 %v239
    %v649 = vunpack.c.l.b16 %v240
    %v650 = vunpack.c.h.b16 %v240
    %v651 = vunpack.c.l.b16 %v241
    %v652 = vunpack.c.h.b16 %v241
    %v653 = vunpack.c.l.b16 %v242
    %v654 = vunpack.c.h.b16 %v242
    %v655 = vunpack.c.l.b16 %v243
    %v656 = vunpack.c.h.b16 %v243
    %v657 = vunpack.c.l.b16 %v244
    %v658 = vunpack.c.h.b16 %v244
    %v659 = vunpack.c.l.b16 %v245
    %v660 = vunpack.c.h.b16 %v245
    %v661 = vunpack.c.l.b16 %v246
    %v662 = vunpack.c.h.b16 %v246
    %v663 = vunpack.c.l.b16 %v247
    %v664 = vunpack.c.h.b16 %v247
    %v665 = vunpack.c.l.b16 %v248
    %v666 = vunpack.c.h.b16 %v248
    %v667 = vunpack.c.l.b16 %v249
    %v668 = vunpack.c.h.b16 %v249
    %v669 = vunpack.c.l.b16 %v250
    %v670 = vunpack.c.h.b16 %v250
    %v671 = vunpack.c.l.b16 %v251
    %v672 = vunpack.c.h.b16 %v251
    %v673 = vunpack.c.l.b16 %v252
    %v674 = vunpack.c.h.b16 %v252
    %v675 = vunpack.c.l.b16 %v253
    %v676 = vunpack.c.h.b16 %v253
    %v677 = vunpack.c.l.b16 %v254
    %v678 = vunpack.c.h.b16 %v254
    %v679 = vunpack.c.l.b16 %v255
    %v680 = vunpack.c.h.b16 %v255
    %v681 = vunpack.c.l.b16 %v256
    %v682 = vunpack.c.h.b16 %v256
    %v683 = vunpack.c.l.b16 %v257
    %v684 = vunpack.c.h.b16 %v257
    %v685 = vunpack.c.l.b16 %v258
    %v686 = vunpack.c.h.b16 %v258
    %v687 = vunpack.c.l.b16 %v259
    %v688 = vunpack.c.h.b16 %v259
    %v689 = vunpack.c.l.b16 %v260
    %v690 = vunpack.c.h.b16 %v260
    %v691 = vunpack.c.l.b16 %v261
    %v692 = vunpack.c.h.b16 %v261
    %v693 = vunpack.c.l.b16 %v262
    %v694 = vunpack.c.h.b16 %v262
    %v695 = vunpack.c.l.b16 %v263
    %v696 = vunpack.c.h.b16 %v263
    %v697 = vunpack.c.l.b16 %v264
    %v698 = vunpack.c.h.b16 %v264
    %v699 = vunpack.c.l.b16 %v265
    %v700 = vunpack.c.h.b16 %v265
    %v701 = vunpack.c.l.b16 %v266
    %v702 = vunpack.c.h.b16 %v266
    %v703 = vunpack.c.l.b16 %v267
    %v704 = vunpack.c.h.b16 %v267
    %v705 = vunpack.c.l.b16 %v268
    %v706 = vunpack.c.h.b16 %v268
    %v707 = vunpack.c.l.b16 %v269
    %v708 = vunpack.c.h.b16 %v269
    %v709 = vunpack.c.l.b16 %v270
    %v710 = vunpack.c.h.b16 %v270
    %v711 = vunpack.c.l.b16 %v271
    %v712 = vunpack.c.h.b16 %v271
    %v713 = vunpack.c.l.b16 %v272
    %v714 = vunpack.c.h.b16 %v272
    %v715 = vunpack.c.l.b16 %v273
    %v716 = vunpack.c.h.b16 %v273
    %v717 = vunpack.c.l.b16 %v274
    %v718 = vunpack.c.h.b16 %v274
    %v719 = vunpack.c.l.b16 %v275
    %v720 = vunpack.c.h.b16 %v275
    %v721 = vunpack.c.l.b16 %v276
    %v722 = vunpack.c.h.b16 %v276
    %v723 = vunpack.c.l.b16 %v277
    %v724 = vunpack.c.h.b16 %v277
    %v725 = vunpack.c.l.b16 %v278
    %v726 = vunpack.c.h.b16 %v278
    %v727 = vunpack.c.l.b16 %v279
    %v728 = vunpack.c.h.b16 %v279
    %v729 = vunpack.c.l.b16 %v280
    %v730 = vunpack.c.h.b16 %v280
    %v731 = vunpack.c.l.b16 %v281
    %v732 = vunpack.c.h.b16 %v281
    %v733 = vunpack.c.l.b16 %v282
    %v734 = vunpack.c.h.b16 %v282
    %v735 = vunpack.c.l.b16 %v283
    %v736 = vunpack.c.h.b16 %v283
    %v737 = vunpack.c.l.b16 %v284
    %v738 = vunpack.c.h.b16 %v284
    %v739 = vunpack.c.l.b16 %v285
    %v740 = vunpack.c.h.b16 %v285
    %v741 = vunpack.c.l.b16 %v286
    %v742 = vunpack.c.h.b16 %v286
    %v743 = vunpack.c.l.b16 %v287
    %v744 = vunpack.c.h.b16 %v287
    %v745 = vunpack.c.l.b16 %v288
    %v746 = vunpack.c.h.b16 %v288
    %v747 = vunpack.c.l.b16 %v289
    %v748 = vunpack.c.h.b16 %v289
    %v749 = vunpack.c.l.b16 %v290
    %v750 = vunpack.c.h.b16 %v290
    %v751 = vunpack.c.l.b16 %v291
    %v752 = vunpack.c.h.b16 %v291
    %v753 = vunpack.c.l.b16 %v292
    %v754 = vunpack.c.h.b16 %v292
    %v755 = vunpack.c.l.b16 %v293
    %v756 = vunpack.c.h.b16 %v293
    %v757 = vunpack.c.l.b16 %v294
    %v758 = vunpack.c.h.b16 %v294
    %v759 = vunpack.c.l.b16 %v295
    %v760 = vunpack.c.h.b16 %v295
    %v761 = vunpack.c.l.b16 %v296
    %v762 = vunpack.c.h.b16 %v296
    %v763 = vunpack.c.l.b16 %v297
    %v764 = vunpack.c.h.b16 %v297
    %v765 = vunpack.c.l.b16 %v298
    %v766 = vunpack.c.h.b16 %v298
    %v767 = vunpack.c.l.b16 %v299
    %v768 = vunpack.c.h.b16 %v299
    %v769 = vunpack.c.l.b16 %v300
    %v770 = vunpack.c.h.b16 %v300
    %v771 = vunpack.c.l.b16 %v301
    %v772 = vunpack.c.h.b16 %v301
    %v773 = vunpack.c.l.b16 %v302
    %v774 = vunpack.c.h.b16 %v302
    %v775 = vunpack.c.l.b16 %v303
    %v776 = vunpack.c.h.b16 %v303
    %v777 = vunpack.c.l.b16 %v304
    %v778 = vunpack.c.h.b16 %v304
    %v779 = vunpack.c.l.b16 %v305
    %v780 = vunpack.c.h.b16 %v305
    %v781 = vunpack.c.l.b16 %v306
    %v782 = vunpack.c.h.b16 %v306
    %v783 = vunpack.c.l.b16 %v307
    %v784 = vunpack.c.h.b16 %v307
    %v785 = vunpack.c.l.b16 %v308
    %v786 = vunpack.c.h.b16 %v308
    %v787 = vunpack.c.l.b16 %v309
    %v788 = vunpack.c.h.b16 %v309
    %v789 = vunpack.c.l.b16 %v310
    %v790 = vunpack.c.h.b16 %v310
    %v791 = vunpack.c.l.b16 %v311
    %v792 = vunpack.c.h.b16 %v311
    %v793 = vunpack.c.l.b16 %v312
    %v794 = vunpack.c.h.b16 %v312
    %v795 = vunpack.c.l.b16 %v313
    %v796 = vunpack.c.h.b16 %v313
    %v797 = vunpack.c.l.b16 %v314
    %v798 = vunpack.c.h.b16 %v314
    %v799 = vunpack.c.l.b16 %v315
    %v800 = vunpack.c.h.b16 %v315
    %v801 = vunpack.c.l.b16 %v316
    %v802 = vunpack.c.h.b16 %v316
    %v803 = vunpack.c.l.b16 %v317
    %v804 = vunpack.c.h.b16 %v317
    %v805 = vunpack.c.l.b16 %v318
    %v806 = vunpack.c.h.b16 %v318
    %v807 = vunpack.c.l.b16 %v319
    %v808 = vunpack.c.h.b16 %v319
    %v809 = vunpack.c.l.b16 %v320
    %v810 = vunpack.c.h.b16 %v320
    %v811 = vunpack.c.l.b16 %v321
    %v812 = vunpack.c.h.b16 %v321
    %v813 = vunpack.c.l.b16 %v322
    %v814 = vunpack.c.h.b16 %v322
    %v815 = vunpack.c.l.b16 %v323
    %v816 = vunpack.c.h.b16 %v323
    %v817 = vunpack.c.l.b16 %v324
    %v818 = vunpack.c.h.b16 %v324
    %v819 = vunpack.c.l.b16 %v325
    %v820 = vunpack.c.h.b16 %v325
    %v821 = vunpack.c.l.b16 %v326
    %v822 = vunpack.c.h.b16 %v326
    %v823 = vunpack.c.l.b16 %v327
    %v824 = vunpack.c.h.b16 %v327
    %v825 = vunpack.c.l.b16 %v328
    %v826 = vunpack.c.h.b16 %v328
    %v827 = vunpack.c.l.b16 %v329
    %v828 = vunpack.c.h.b16 %v329
    %v829 = vunpack.c.l.b16 %v330
    %v830 = vunpack.c.h.b16 %v330
    %v831 = vunpack.c.l.b16 %v331
    %v832 = vunpack.c.h.b16 %v331
    %v833 = vunpack.c.l.b16 %v332
    %v834 = vunpack.c.h.b16 %v332
    %v835 = vunpack.c.l.b16 %v333
    %v836 = vunpack.c.h.b16 %v333
    %v837 = vunpack.c.l.b16 %v334
    %v838 = vunpack.c.h.b16 %v334
    %v839 = vunpack.c.l.b16 %v335
    %v840 = vunpack.c.h.b16 %v335
    %v841 = vunpack.c.l.b16 %v336
    %v842 = vunpack.c.h.b16 %v336
    %v843 = vpack.c.b16 %v595, %v587
    %v844 = vpack.c.b16 %v596, %v588
    %v845 = vpack.c.b16 %v597, %v589
    %v846 = vpack.c.b16 %v598, %v590
    %v847 = vpack.c.b16 %v599, %v591
    %v848 = vpack.c.b16 %v600, %v592
    %v849 = vpack.c.b16 %v601, %v593
    %v850 = vpack.c.b16 %v602, %v594
    %v851 = vpack.c.b16 %v611, %v603
    %v852 = vpack.c.b16 %v612, %v604
    %v853 = vpack.c.b16 %v613, %v605
    %v854 = vpack.c.b16 %v614, %v606
    %v855 = vpack.c.b16 %v615, %v607
    %v856 = vpack.c.b16 %v616, %v608
    %v857 = vpack.c.b16 %v617, %v609
    %v858 = vpack.c.b16 %v618, %v610
    %v859 = vpack.c.b16 %v627, %v619
    %v860 = vpack.c.b16 %v628, %v620
    %v861 = vpack.c.b16 %v629, %v621
    %v862 = vpack.c.b16 %v630, %v622
    %v863 = vpack.c.b16 %v631, %v623
    %v864 = vpack.c.b16 %v632, %v624
    %v865 = vpack.c.b16 %v633, %v625
    %v866 = vpack.c.b16 %v634, %v626
    %v867 = vpack.c.b16 %v643, %v635
    %v868 = vpack.c.b16 %v644, %v636
    %v869 = vpack.c.b16 %v645, %v637
    %v870 = vpack.c.b16 %v646, %v638
    %v871 = vpack.c.b16 %v647, %v639
    %v872 = vpack.c.b16 %v648, %v640
    %v873 = vpack.c.b16 %v649, %v641
    %v874 = vpack.c.b16 %v650, %v642
    %v875 = vpack.c.b16 %v659, %v651
    %v876 = vpack.c.b16 %v660, %v652
    %v877 = vpack.c.b16 %v661, %v653
    %v878 = vpack.c.b16 %v662, %v654
    %v879 = vpack.c.b16 %v663, %v655
    %v880 = vpack.c.b16 %v664, %v656
    %v881 = vpack.c.b16 %v665, %v657
    %v882 = vpack.c.b16 %v666, %v658
    %v883 = vpack.c.b16 %v675, %v667
    %v884 = vpack.c.b16 %v676, %v668
    %v885 = vpack.c.b16 %v677, %v669
    %v886 = vpack.c.b16 %v678, %v670
    %v887 = vpack.c.b16 %v679, %v671
    %v888 = vpack.c.b16 %v680, %v672
    %v889 = vpack.c.b16 %v681, %v673
    %v890 = vpack.c.b16 %v682, %v674
    %v891 = vpack.c.b16 %v691, %v683
    %v892 = vpack.c.b16 %v692, %v684
    %v893 = vpack.c.b16 %v693, %v685
    %v894 = vpack.c.b16 %v694, %v686
    %v895 = vpack.c.b16 %v695, %v687
    %v896 = vpack.c.b16 %v696, %v688
    %v897 = vpack.c.b16 %v697, %v689
    %v898 = vpack.c.b16 %v698, %v690
    %v899 = vpack.c.b16 %v707, %v699
    %v900 = vpack.c.b16 %v708, %v700
    %v901 = vpack.c.b16 %v709, %v701
    %v902 = vpack.c.b16 %v710, %v702
    %v903 = vpack.c.b16 %v711, %v703
    %v904 = vpack.c.b16 %v712, %v704
    %v905 = vpack.c.b16 %v713, %v705
    %v906 = vpack.c.b16 %v714, %v706
    %v907 = vpack.c.b16 %v723, %v715
    %v908 = vpack.c.b16 %v724, %v716
    %v909 = vpack.c.b16 %v725, %v717
    %v910 = vpack.c.b16 %v726, %v718
    %v911 = vpack.c.b16 %v727, %v719
    %v912 = vpack.c.b16 %v728, %v720
    %v913 = vpack.c.b16 %v729, %v721
    %v914 = vpack.c.b16 %v730, %v722
    %v915 = vpack.c.b16 %v739, %v731
    %v916 = vpack.c.b16 %v740, %v732
    %v917 = vpack.c.b16 %v741, %v733
    %v918 = vpack.c.b16 %v742, %v734
    %v919 = vpack.c.b16 %v743, %v735
    %v920 = vpack.c.b16 %v744, %v736
    %v921 = vpack.c.b16 %v745, %v737
    %v922 = vpack.c.b16 %v746, %v738
    %v923 = vpack.c.b16 %v755, %v747
    %v924 = vpack.c.b16 %v756, %v748
    %v925 = vpack.c.b16 %v757, %v749
    %v926 = vpack.c.b16 %v758, %v750
    %v927 = vpack.c.b16 %v759, %v751
    %v928 = vpack.c.b16 %v760, %v752
    %v929 = vpack.c.b16 %v761, %v753
    %v930 = vpack.c.b16 %v762, %v754
    %v931 = vpack.c.b16 %v771, %v763
    %v932 = vpack.c.b16 %v772, %v764
    %v933 = vpack.c.b16 %v773, %v765
    %v934 = vpack.c.b16 %v774, %v766
    %v935 = vpack.c.b16 %v775, %v767
    %v936 = vpack.c.b16 %v776, %v768
    %v937 = vpack.c.b16 %v777, %v769
    %v938 = vpack.c.b16 %v778, %v770
    %v939 = vpack.c.b16 %v787, %v779
    %v940 = vpack.c.b16 %v788, %v780
    %v941 = vpack.c.b16 %v789, %v781
    %v942 = vpack.c.b16 %v790, %v782
    %v943 = vpack.c.b16 %v791, %v783
    %v944 = vpack.c.b16 %v792, %v784
    %v945 = vpack.c.b16 %v793, %v785
    %v946 = vpack.c.b16 %v794, %v786
    %v947 = vpack.c.b16 %v803, %v795
    %v948 = vpack.c.b16 %v804, %v796
    %v949 = vpack.c.b16 %v805, %v797
    %v950 = vpack.c.b16 %v806, %v798
    %v951 = vpack.c.b16 %v807, %v799
    %v952 = vpack.c.b16 %v808, %v800
    %v953 = vpack.c.b16 %v809, %v801
    %v954 = vpack.c.b16 %v810, %v802
    %v955 = vpack.c.b16 %v819, %v811
    %v956 = vpack.c.b16 %v820, %v812
    %v957 = vpack.c.b16 %v821, %v813
    %v958 = vpack.c.b16 %v822, %v814
    %v959 = vpack.c.b16 %v823, %v815
    %v960 = vpack.c.b16 %v824, %v816
    %v961 = vpack.c.b16 %v825, %v817
    %v962 = vpack.c.b16 %v826, %v818
    %v963 = vpack.c.b16 %v835, %v827
    %v964 = vpack.c.b16 %v836, %v828
    %v965 = vpack.c.b16 %v837, %v829
    %v966 = vpack.c.b16 %v838, %v830
    %v967 = vpack.c.b16 %v839, %v831
    %v968 = vpack.c.b16 %v840, %v832
    %v969 = vpack.c.b16 %v841, %v833
    %v970 = vpack.c.b16 %v842, %v834
    %1099 = vmatprep.subr.bf16.mxu0 %v844
    %1100 = vmatpush1.bf16.msra.mxu0 %v843
    %1101 = vmatprep.subr.bf16.mxu0 %v852
    %1102 = vmatpush1.bf16.msra.mxu0 %v851
    %1103 = vmatprep.subr.bf16.mxu0 %v860
    %1104 = vmatpush1.bf16.msra.mxu0 %v859
    %1105 = vmatprep.subr.bf16.mxu0 %v868
    %1106 = vmatpush1.bf16.msra.mxu0 %v867
    %1107 = vmatprep.subr.bf16.mxu0 %v876
    %1108 = vmatpush1.bf16.msra.mxu0 %v875
    %1109 = vmatprep.subr.bf16.mxu0 %v884
    %1110 = vmatpush1.bf16.msra.mxu0 %v883
    %1111 = vmatprep.subr.bf16.mxu0 %v892
    %1112 = vmatpush1.bf16.msra.mxu0 %v891
    %1113 = vmatprep.subr.bf16.mxu0 %v900
    %1114 = vmatpush1.bf16.msra.mxu0 %v899
    %1115 = vmatprep.subr.bf16.mxu0 %v908
    %1116 = vmatpush1.bf16.msra.mxu0 %v907
    %1117 = vmatprep.subr.bf16.mxu0 %v916
    %1118 = vmatpush1.bf16.msra.mxu0 %v915
    %1119 = vmatprep.subr.bf16.mxu0 %v924
    %1120 = vmatpush1.bf16.msra.mxu0 %v923
    %1121 = vmatprep.subr.bf16.mxu0 %v932
    %1122 = vmatpush1.bf16.msra.mxu0 %v931
    %1123 = vmatprep.subr.bf16.mxu0 %v940
    %1124 = vmatpush1.bf16.msra.mxu0 %v939
    %1125 = vmatprep.subr.bf16.mxu0 %v948
    %1126 = vmatpush1.bf16.msra.mxu0 %v947
    %1127 = vmatprep.subr.bf16.mxu0 %v956
    %1128 = vmatpush1.bf16.msra.mxu0 %v955
    %1129 = vmatprep.subr.bf16.mxu0 %v964
    %1130 = vmatpush1.bf16.msra.mxu0 %v963
    %1131 = vmatprep.mubr.bf16.mxu0 %v428
    %1132 = vmatmul.mubr.bf16.gmra.mrb[0].mxu0 %v427
    %v1133 = vpop.f32.mrb[0].mxu0
    %v1134 = vadd.f32 %v342, %v1133
    %v1135 = vpop.f32.mrb[0].mxu0
    %v1136 = vadd.f32 %v346, %v1135
    %v1137 = vpop.f32.mrb[0].mxu0
    %v1138 = vadd.f32 %v342, %v1137
    %v1139 = vpop.f32.mrb[0].mxu0
    %v1140 = vadd.f32 %v346, %v1139
    %1141 = vmatprep.mubr.bf16.mxu0 %v430
    %1142 = vmatmul.mubr.bf16.gmra.mrb[0].mxu0 %v429
    %v1143 = vpop.f32.mrb[0].mxu0
    %v1144 = vadd.f32 %v342, %v1143
    %v1145 = vpop.f32.mrb[0].mxu0
    %v1146 = vadd.f32 %v346, %v1145
    %v1147 = vpop.f32.mrb[0].mxu0
    %v1148 = vadd.f32 %v342, %v1147
    %v1149 = vpop.f32.mrb[0].mxu0
    %v1150 = vadd.f32 %v346, %v1149
    %1151 = vmatprep.mubr.bf16.mxu0 %v432
    %1152 = vmatmul.mubr.bf16.gmra.mrb[0].mxu0 %v431
    %v1153 = vpop.f32.mrb[0].mxu0
    %v1154 = vadd.f32 %v342, %v1153
    %v1155 = vpop.f32.mrb[0].mxu0
    %v1156 = vadd.f32 %v346, %v1155
    %v1157 = vpop.f32.mrb[0].mxu0
    %v1158 = vadd.f32 %v342, %v1157
    %v1159 = vpop.f32.mrb[0].mxu0
    %v1160 = vadd.f32 %v346, %v1159
    %1161 = vmatprep.mubr.bf16.mxu0 %v434
    %1162 = vmatmul.mubr.bf16.gmra.mrb[0].mxu0 %v433
    %v1163 = vpop.f32.mrb[0].mxu0
    %v1164 = vadd.f32 %v342, %v1163
    %v1165 = vpop.f32.mrb[0].mxu0
    %v1166 = vadd.f32 %v346, %v1165
    %v1167 = vpop.f32.mrb[0].mxu0
    %v1168 = vadd.f32 %v342, %v1167
    %v1169 = vpop.f32.mrb[0].mxu0
    %v1170 = vadd.f32 %v346, %v1169
    %1171 = vmatprep.mubr.bf16.mxu0 %v436
    %1172 = vmatmul.mubr.bf16.gmra.mrb[0].mxu0 %v435
    %v1173 = vpop.f32.mrb[0].mxu0
    %v1174 = vadd.f32 %v342, %v1173
    %v1175 = vpop.f32.mrb[0].mxu0
    %v1176 = vadd.f32 %v346, %v1175
    %v1177 = vpop.f32.mrb[0].mxu0
    %v1178 = vadd.f32 %v342, %v1177
    %v1179 = vpop.f32.mrb[0].mxu0
    %v1180 = vadd.f32 %v346, %v1179
    %1181 = vmatprep.mubr.bf16.mxu0 %v438
    %1182 = vmatmul.mubr.bf16.gmra.mrb[0].mxu0 %v437
    %v1183 = vpop.f32.mrb[0].mxu0
    %v1184 = vadd.f32 %v342, %v1183
    %v1185 = vpop.f32.mrb[0].mxu0
    %v1186 = vadd.f32 %v346, %v1185
    %v1187 = vpop.f32.mrb[0].mxu0
    %v1188 = vadd.f32 %v342, %v1187
    %v1189 = vpop.f32.mrb[0].mxu0
    %v1190 = vadd.f32 %v346, %v1189
    %1191 = vmatprep.mubr.bf16.mxu0 %v440
    %1192 = vmatmul.mubr.bf16.gmra.mrb[0].mxu0 %v439
    %v1193 = vpop.f32.mrb[0].mxu0
    %v1194 = vadd.f32 %v342, %v1193
    %v1195 = vpop.f32.mrb[0].mxu0
    %v1196 = vadd.f32 %v346, %v1195
    %v1197 = vpop.f32.mrb[0].mxu0
    %v1198 = vadd.f32 %v342, %v1197
    %v1199 = vpop.f32.mrb[0].mxu0
    %v1200 = vadd.f32 %v346, %v1199
    %1201 = vmatprep.mubr.bf16.mxu0 %v442
    %1202 = vmatmul.mubr.bf16.gmra.mrb[0].mxu0 %v441
    %v1203 = vpop.f32.mrb[0].mxu0
    %v1204 = vadd.f32 %v342, %v1203
    %v1205 = vpop.f32.mrb[0].mxu0
    %v1206 = vadd.f32 %v346, %v1205
    %v1207 = vpop.f32.mrb[0].mxu0
    %v1208 = vadd.f32 %v342, %v1207
    %v1209 = vpop.f32.mrb[0].mxu0
    %v1210 = vadd.f32 %v346, %v1209
    %1211 = vdwg.mxu0
    %1212 = vmatprep.subr.bf16.mxu0 %v846
    %1213 = vmatpush1.bf16.msra.mxu0 %v845
    %1214 = vmatprep.subr.bf16.mxu0 %v854
    %1215 = vmatpush1.bf16.msra.mxu0 %v853
    %1216 = vmatprep.subr.bf16.mxu0 %v862
    %1217 = vmatpush1.bf16.msra.mxu0 %v861
    %1218 = vmatprep.subr.bf16.mxu0 %v870
    %1219 = vmatpush1.bf16.msra.mxu0 %v869
    %1220 = vmatprep.subr.bf16.mxu0 %v878
    %1221 = vmatpush1.bf16.msra.mxu0 %v877
    %1222 = vmatprep.subr.bf16.mxu0 %v886
    %1223 = vmatpush1.bf16.msra.mxu0 %v885
    %1224 = vmatprep.subr.bf16.mxu0 %v894
    %1225 = vmatpush1.bf16.msra.mxu0 %v893
    %1226 = vmatprep.subr.bf16.mxu0 %v902
    %1227 = vmatpush1.bf16.msra.mxu0 %v901
    %1228 = vmatprep.subr.bf16.mxu0 %v910
    %1229 = vmatpush1.bf16.msra.mxu0 %v909
    %1230 = vmatprep.subr.bf16.mxu0 %v918
    %1231 = vmatpush1.bf16.msra.mxu0 %v917
    %1232 = vmatprep.subr.bf16.mxu0 %v926
    %1233 = vmatpush1.bf16.msra.mxu0 %v925
    %1234 = vmatprep.subr.bf16.mxu0 %v934
    %1235 = vmatpush1.bf16.msra.mxu0 %v933
    %1236 = vmatprep.subr.bf16.mxu0 %v942
    %1237 = vmatpush1.bf16.msra.mxu0 %v941
    %1238 = vmatprep.subr.bf16.mxu0 %v950
    %1239 = vmatpush1.bf16.msra.mxu0 %v949
    %1240 = vmatprep.subr.bf16.mxu0 %v958
    %1241 = vmatpush1.bf16.msra.mxu0 %v957
    %1242 = vmatprep.subr.bf16.mxu0 %v966
    %1243 = vmatpush1.bf16.msra.mxu0 %v965
    %1244 = vmatprep.mubr.bf16.mxu0 %v428
    %1245 = vmatmul.mubr.bf16.gmra.mrb[0].mxu0 %v427
    %v1246 = vpop.f32.mrb[0].mxu0
    %v1247 = vadd.f32 %v350, %v1246
    %v1248 = vpop.f32.mrb[0].mxu0
    %v1249 = vadd.f32 %v354, %v1248
    %v1250 = vpop.f32.mrb[0].mxu0
    %v1251 = vadd.f32 %v350, %v1250
    %v1252 = vpop.f32.mrb[0].mxu0
    %v1253 = vadd.f32 %v354, %v1252
    %1254 = vmatprep.mubr.bf16.mxu0 %v430
    %1255 = vmatmul.mubr.bf16.gmra.mrb[0].mxu0 %v429
    %v1256 = vpop.f32.mrb[0].mxu0
    %v1257 = vadd.f32 %v350, %v1256
    %v1258 = vpop.f32.mrb[0].mxu0
    %v1259 = vadd.f32 %v354, %v1258
    %v1260 = vpop.f32.mrb[0].mxu0
    %v1261 = vadd.f32 %v350, %v1260
    %v1262 = vpop.f32.mrb[0].mxu0
    %v1263 = vadd.f32 %v354, %v1262
    %1264 = vmatprep.mubr.bf16.mxu0 %v432
    %1265 = vmatmul.mubr.bf16.gmra.mrb[0].mxu0 %v431
    %v1266 = vpop.f32.mrb[0].mxu0
    %v1267 = vadd.f32 %v350, %v1266
    %v1268 = vpop.f32.mrb[0].mxu0
    %v1269 = vadd.f32 %v354, %v1268
    %v1270 = vpop.f32.mrb[0].mxu0
    %v1271 = vadd.f32 %v350, %v1270
    %v1272 = vpop.f32.mrb[0].mxu0
    %v1273 = vadd.f32 %v354, %v1272
    %1274 = vmatprep.mubr.bf16.mxu0 %v434
    %1275 = vmatmul.mubr.bf16.gmra.mrb[0].mxu0 %v433
    %v1276 = vpop.f32.mrb[0].mxu0
    %v1277 = vadd.f32 %v350, %v1276
    %v1278 = vpop.f32.mrb[0].mxu0
    %v1279 = vadd.f32 %v354, %v1278
    %v1280 = vpop.f32.mrb[0].mxu0
    %v1281 = vadd.f32 %v350, %v1280
    %v1282 = vpop.f32.mrb[0].mxu0
    %v1283 = vadd.f32 %v354, %v1282
    %1284 = vmatprep.mubr.bf16.mxu0 %v436
    %1285 = vmatmul.mubr.bf16.gmra.mrb[0].mxu0 %v435
    %v1286 = vpop.f32.mrb[0].mxu0
    %v1287 = vadd.f32 %v350, %v1286
    %v1288 = vpop.f32.mrb[0].mxu0
    %v1289 = vadd.f32 %v354, %v1288
    %v1290 = vpop.f32.mrb[0].mxu0
    %v1291 = vadd.f32 %v350, %v1290
    %v1292 = vpop.f32.mrb[0].mxu0
    %v1293 = vadd.f32 %v354, %v1292
    %1294 = vmatprep.mubr.bf16.mxu0 %v438
    %1295 = vmatmul.mubr.bf16.gmra.mrb[0].mxu0 %v437
    %v1296 = vpop.f32.mrb[0].mxu0
    %v1297 = vadd.f32 %v350, %v1296
    %v1298 = vpop.f32.mrb[0].mxu0
    %v1299 = vadd.f32 %v354, %v1298
    %v1300 = vpop.f32.mrb[0].mxu0
    %v1301 = vadd.f32 %v350, %v1300
    %v1302 = vpop.f32.mrb[0].mxu0
    %v1303 = vadd.f32 %v354, %v1302
    %1304 = vmatprep.mubr.bf16.mxu0 %v440
    %1305 = vmatmul.mubr.bf16.gmra.mrb[0].mxu0 %v439
    %v1306 = vpop.f32.mrb[0].mxu0
    %v1307 = vadd.f32 %v350, %v1306
    %v1308 = vpop.f32.mrb[0].mxu0
    %v1309 = vadd.f32 %v354, %v1308
    %v1310 = vpop.f32.mrb[0].mxu0
    %v1311 = vadd.f32 %v350, %v1310
    %v1312 = vpop.f32.mrb[0].mxu0
    %v1313 = vadd.f32 %v354, %v1312
    %1314 = vmatprep.mubr.bf16.mxu0 %v442
    %1315 = vmatmul.mubr.bf16.gmra.mrb[0].mxu0 %v441
    %v1316 = vpop.f32.mrb[0].mxu0
    %v1317 = vadd.f32 %v350, %v1316
    %v1318 = vpop.f32.mrb[0].mxu0
    %v1319 = vadd.f32 %v354, %v1318
    %v1320 = vpop.f32.mrb[0].mxu0
    %v1321 = vadd.f32 %v350, %v1320
    %v1322 = vpop.f32.mrb[0].mxu0
    %v1323 = vadd.f32 %v354, %v1322
    %1324 = vdwg.mxu0
    %1325 = vmatprep.subr.bf16.mxu0 %v848
    %1326 = vmatpush1.bf16.msra.mxu0 %v847
    %1327 = vmatprep.subr.bf16.mxu0 %v856
    %1328 = vmatpush1.bf16.msra.mxu0 %v855
    %1329 = vmatprep.subr.bf16.mxu0 %v864
    %1330 = vmatpush1.bf16.msra.mxu0 %v863
    %1331 = vmatprep.subr.bf16.mxu0 %v872
    %1332 = vmatpush1.bf16.msra.mxu0 %v871
    %1333 = vmatprep.subr.bf16.mxu0 %v880
    %1334 = vmatpush1.bf16.msra.mxu0 %v879
    %1335 = vmatprep.subr.bf16.mxu0 %v888
    %1336 = vmatpush1.bf16.msra.mxu0 %v887
    %1337 = vmatprep.subr.bf16.mxu0 %v896
    %1338 = vmatpush1.bf16.msra.mxu0 %v895
    %1339 = vmatprep.subr.bf16.mxu0 %v904
    %1340 = vmatpush1.bf16.msra.mxu0 %v903
    %1341 = vmatprep.subr.bf16.mxu0 %v912
    %1342 = vmatpush1.bf16.msra.mxu0 %v911
    %1343 = vmatprep.subr.bf16.mxu0 %v920
    %1344 = vmatpush1.bf16.msra.mxu0 %v919
    %1345 = vmatprep.subr.bf16.mxu0 %v928
    %1346 = vmatpush1.bf16.msra.mxu0 %v927
    %1347 = vmatprep.subr.bf16.mxu0 %v936
    %1348 = vmatpush1.bf16.msra.mxu0 %v935
    %1349 = vmatprep.subr.bf16.mxu0 %v944
    %1350 = vmatpush1.bf16.msra.mxu0 %v943
    %1351 = vmatprep.subr.bf16.mxu0 %v952
    %1352 = vmatpush1.bf16.msra.mxu0 %v951
    %1353 = vmatprep.subr.bf16.mxu0 %v960
    %1354 = vmatpush1.bf16.msra.mxu0 %v959
    %1355 = vmatprep.subr.bf16.mxu0 %v968
    %1356 = vmatpush1.bf16.msra.mxu0 %v967
    %1357 = vmatprep.mubr.bf16.mxu0 %v428
    %1358 = vmatmul.mubr.bf16.gmra.mrb[0].mxu0 %v427
    %v1359 = vpop.f32.mrb[0].mxu0
    %v1360 = vadd.f32 %v358, %v1359
    %v1361 = vpop.f32.mrb[0].mxu0
    %v1362 = vadd.f32 %v362, %v1361
    %v1363 = vpop.f32.mrb[0].mxu0
    %v1364 = vadd.f32 %v358, %v1363
    %v1365 = vpop.f32.mrb[0].mxu0
    %v1366 = vadd.f32 %v362, %v1365
    %1367 = vmatprep.mubr.bf16.mxu0 %v430
    %1368 = vmatmul.mubr.bf16.gmra.mrb[0].mxu0 %v429
    %v1369 = vpop.f32.mrb[0].mxu0
    %v1370 = vadd.f32 %v358, %v1369
    %v1371 = vpop.f32.mrb[0].mxu0
    %v1372 = vadd.f32 %v362, %v1371
    %v1373 = vpop.f32.mrb[0].mxu0
    %v1374 = vadd.f32 %v358, %v1373
    %v1375 = vpop.f32.mrb[0].mxu0
    %v1376 = vadd.f32 %v362, %v1375
    %1377 = vmatprep.mubr.bf16.mxu0 %v432
    %1378 = vmatmul.mubr.bf16.gmra.mrb[0].mxu0 %v431
    %v1379 = vpop.f32.mrb[0].mxu0
    %v1380 = vadd.f32 %v358, %v1379
    %v1381 = vpop.f32.mrb[0].mxu0
    %v1382 = vadd.f32 %v362, %v1381
    %v1383 = vpop.f32.mrb[0].mxu0
    %v1384 = vadd.f32 %v358, %v1383
    %v1385 = vpop.f32.mrb[0].mxu0
    %v1386 = vadd.f32 %v362, %v1385
    %1387 = vmatprep.mubr.bf16.mxu0 %v434
    %1388 = vmatmul.mubr.bf16.gmra.mrb[0].mxu0 %v433
    %v1389 = vpop.f32.mrb[0].mxu0
    %v1390 = vadd.f32 %v358, %v1389
    %v1391 = vpop.f32.mrb[0].mxu0
    %v1392 = vadd.f32 %v362, %v1391
    %v1393 = vpop.f32.mrb[0].mxu0
    %v1394 = vadd.f32 %v358, %v1393
    %v1395 = vpop.f32.mrb[0].mxu0
    %v1396 = vadd.f32 %v362, %v1395
    %1397 = vmatprep.mubr.bf16.mxu0 %v436
    %1398 = vmatmul.mubr.bf16.gmra.mrb[0].mxu0 %v435
    %v1399 = vpop.f32.mrb[0].mxu0
    %v1400 = vadd.f32 %v358, %v1399
    %v1401 = vpop.f32.mrb[0].mxu0
    %v1402 = vadd.f32 %v362, %v1401
    %v1403 = vpop.f32.mrb[0].mxu0
    %v1404 = vadd.f32 %v358, %v1403
    %v1405 = vpop.f32.mrb[0].mxu0
    %v1406 = vadd.f32 %v362, %v1405
    %1407 = vmatprep.mubr.bf16.mxu0 %v438
    %1408 = vmatmul.mubr.bf16.gmra.mrb[0].mxu0 %v437
    %v1409 = vpop.f32.mrb[0].mxu0
    %v1410 = vadd.f32 %v358, %v1409
    %v1411 = vpop.f32.mrb[0].mxu0
    %v1412 = vadd.f32 %v362, %v1411
    %v1413 = vpop.f32.mrb[0].mxu0
    %v1414 = vadd.f32 %v358, %v1413
    %v1415 = vpop.f32.mrb[0].mxu0
    %v1416 = vadd.f32 %v362, %v1415
    %1417 = vmatprep.mubr.bf16.mxu0 %v440
    %1418 = vmatmul.mubr.bf16.gmra.mrb[0].mxu0 %v439
    %v1419 = vpop.f32.mrb[0].mxu0
    %v1420 = vadd.f32 %v358, %v1419
    %v1421 = vpop.f32.mrb[0].mxu0
    %v1422 = vadd.f32 %v362, %v1421
    %v1423 = vpop.f32.mrb[0].mxu0
    %v1424 = vadd.f32 %v358, %v1423
    %v1425 = vpop.f32.mrb[0].mxu0
    %v1426 = vadd.f32 %v362, %v1425
    %1427 = vmatprep.mubr.bf16.mxu0 %v442
    %1428 = vmatmul.mubr.bf16.gmra.mrb[0].mxu0 %v441
    %v1429 = vpop.f32.mrb[0].mxu0
    %v1430 = vadd.f32 %v358, %v1429
    %v1431 = vpop.f32.mrb[0].mxu0
    %v1432 = vadd.f32 %v362, %v1431
    %v1433 = vpop.f32.mrb[0].mxu0
    %v1434 = vadd.f32 %v358, %v1433
    %v1435 = vpop.f32.mrb[0].mxu0
    %v1436 = vadd.f32 %v362, %v1435
    %1437 = vdwg.mxu0
    %1438 = vmatprep.subr.bf16.mxu0 %v850
    %1439 = vmatpush1.bf16.msra.mxu0 %v849
    %1440 = vmatprep.subr.bf16.mxu0 %v858
    %1441 = vmatpush1.bf16.msra.mxu0 %v857
    %1442 = vmatprep.subr.bf16.mxu0 %v866
    %1443 = vmatpush1.bf16.msra.mxu0 %v865
    %1444 = vmatprep.subr.bf16.mxu0 %v874
    %1445 = vmatpush1.bf16.msra.mxu0 %v873
    %1446 = vmatprep.subr.bf16.mxu0 %v882
    %1447 = vmatpush1.bf16.msra.mxu0 %v881
    %1448 = vmatprep.subr.bf16.mxu0 %v890
    %1449 = vmatpush1.bf16.msra.mxu0 %v889
    %1450 = vmatprep.subr.bf16.mxu0 %v898
    %1451 = vmatpush1.bf16.msra.mxu0 %v897
    %1452 = vmatprep.subr.bf16.mxu0 %v906
    %1453 = vmatpush1.bf16.msra.mxu0 %v905
    %1454 = vmatprep.subr.bf16.mxu0 %v914
    %1455 = vmatpush1.bf16.msra.mxu0 %v913
    %1456 = vmatprep.subr.bf16.mxu0 %v922
    %1457 = vmatpush1.bf16.msra.mxu0 %v921
    %1458 = vmatprep.subr.bf16.mxu0 %v930
    %1459 = vmatpush1.bf16.msra.mxu0 %v929
    %1460 = vmatprep.subr.bf16.mxu0 %v938
    %1461 = vmatpush1.bf16.msra.mxu0 %v937
    %1462 = vmatprep.subr.bf16.mxu0 %v946
    %1463 = vmatpush1.bf16.msra.mxu0 %v945
    %1464 = vmatprep.subr.bf16.mxu0 %v954
    %1465 = vmatpush1.bf16.msra.mxu0 %v953
    %1466 = vmatprep.subr.bf16.mxu0 %v962
    %1467 = vmatpush1.bf16.msra.mxu0 %v961
    %1468 = vmatprep.subr.bf16.mxu0 %v970
    %1469 = vmatpush1.bf16.msra.mxu0 %v969
    %1470 = vmatprep.mubr.bf16.mxu0 %v428
    %1471 = vmatmul.mubr.bf16.gmra.mrb[0].mxu0 %v427
    %v1472 = vpop.f32.mrb[0].mxu0
    %v1473 = vadd.f32 %v366, %v1472
    %v1474 = vpop.f32.mrb[0].mxu0
    %v1475 = vadd.f32 %v370, %v1474
    %v1476 = vpop.f32.mrb[0].mxu0
    %v1477 = vadd.f32 %v366, %v1476
    %v1478 = vpop.f32.mrb[0].mxu0
    %v1479 = vadd.f32 %v370, %v1478
    %1480 = vmatprep.mubr.bf16.mxu0 %v430
    %1481 = vmatmul.mubr.bf16.gmra.mrb[0].mxu0 %v429
    %v1482 = vpop.f32.mrb[0].mxu0
    %v1483 = vadd.f32 %v366, %v1482
    %v1484 = vpop.f32.mrb[0].mxu0
    %v1485 = vadd.f32 %v370, %v1484
    %v1486 = vpop.f32.mrb[0].mxu0
    %v1487 = vadd.f32 %v366, %v1486
    %v1488 = vpop.f32.mrb[0].mxu0
    %v1489 = vadd.f32 %v370, %v1488
    %1490 = vmatprep.mubr.bf16.mxu0 %v432
    %1491 = vmatmul.mubr.bf16.gmra.mrb[0].mxu0 %v431
    %v1492 = vpop.f32.mrb[0].mxu0
    %v1493 = vadd.f32 %v366, %v1492
    %v1494 = vpop.f32.mrb[0].mxu0
    %v1495 = vadd.f32 %v370, %v1494
    %v1496 = vpop.f32.mrb[0].mxu0
    %v1497 = vadd.f32 %v366, %v1496
    %v1498 = vpop.f32.mrb[0].mxu0
    %v1499 = vadd.f32 %v370, %v1498
    %1500 = vmatprep.mubr.bf16.mxu0 %v434
    %1501 = vmatmul.mubr.bf16.gmra.mrb[0].mxu0 %v433
    %v1502 = vpop.f32.mrb[0].mxu0
    %v1503 = vadd.f32 %v366, %v1502
    %v1504 = vpop.f32.mrb[0].mxu0
    %v1505 = vadd.f32 %v370, %v1504
    %v1506 = vpop.f32.mrb[0].mxu0
    %v1507 = vadd.f32 %v366, %v1506
    %v1508 = vpop.f32.mrb[0].mxu0
    %v1509 = vadd.f32 %v370, %v1508
    %1510 = vmatprep.mubr.bf16.mxu0 %v436
    %1511 = vmatmul.mubr.bf16.gmra.mrb[0].mxu0 %v435
    %v1512 = vpop.f32.mrb[0].mxu0
    %v1513 = vadd.f32 %v366, %v1512
    %v1514 = vpop.f32.mrb[0].mxu0
    %v1515 = vadd.f32 %v370, %v1514
    %v1516 = vpop.f32.mrb[0].mxu0
    %v1517 = vadd.f32 %v366, %v1516
    %v1518 = vpop.f32.mrb[0].mxu0
    %v1519 = vadd.f32 %v370, %v1518
    %1520 = vmatprep.mubr.bf16.mxu0 %v438
    %1521 = vmatmul.mubr.bf16.gmra.mrb[0].mxu0 %v437
    %v1522 = vpop.f32.mrb[0].mxu0
    %v1523 = vadd.f32 %v366, %v1522
    %v1524 = vpop.f32.mrb[0].mxu0
    %v1525 = vadd.f32 %v370, %v1524
    %v1526 = vpop.f32.mrb[0].mxu0
    %v1527 = vadd.f32 %v366, %v1526
    %v1528 = vpop.f32.mrb[0].mxu0
    %v1529 = vadd.f32 %v370, %v1528
    %1530 = vmatprep.mubr.bf16.mxu0 %v440
    %1531 = vmatmul.mubr.bf16.gmra.mrb[0].mxu0 %v439
    %v1532 = vpop.f32.mrb[0].mxu0
    %v1533 = vadd.f32 %v366, %v1532
    %v1534 = vpop.f32.mrb[0].mxu0
    %v1535 = vadd.f32 %v370, %v1534
    %v1536 = vpop.f32.mrb[0].mxu0
    %v1537 = vadd.f32 %v366, %v1536
    %v1538 = vpop.f32.mrb[0].mxu0
    %v1539 = vadd.f32 %v370, %v1538
    %1540 = vmatprep.mubr.bf16.mxu0 %v442
    %1541 = vmatmul.mubr.bf16.gmra.mrb[0].mxu0 %v441
    %v1542 = vpop.f32.mrb[0].mxu0
    %v1543 = vadd.f32 %v366, %v1542
    %v1544 = vpop.f32.mrb[0].mxu0
    %v1545 = vadd.f32 %v370, %v1544
    %v1546 = vpop.f32.mrb[0].mxu0
    %v1547 = vadd.f32 %v366, %v1546
    %v1548 = vpop.f32.mrb[0].mxu0
    %v1549 = vadd.f32 %v370, %v1548
    %1550 = vdwg.mxu0
    %vm1551 = vcmp.ge.f32.partialorder %v1134, 0.0
    %vm1552 = vcmp.ge.f32.partialorder %v1136, 0.0
    %vm1553 = vcmp.ge.f32.partialorder %v1247, 0.0
    %vm1554 = vcmp.ge.f32.partialorder %v1249, 0.0
    %vm1555 = vcmp.ge.f32.partialorder %v1360, 0.0
    %vm1556 = vcmp.ge.f32.partialorder %v1362, 0.0
    %vm1557 = vcmp.ge.f32.partialorder %v1473, 0.0
    %vm1558 = vcmp.ge.f32.partialorder %v1475, 0.0
    %vm1559 = vcmp.ge.f32.partialorder %v1138, 0.0
    %vm1560 = vcmp.ge.f32.partialorder %v1140, 0.0
    %vm1561 = vcmp.ge.f32.partialorder %v1251, 0.0
    %vm1562 = vcmp.ge.f32.partialorder %v1253, 0.0
    %vm1563 = vcmp.ge.f32.partialorder %v1364, 0.0
    %vm1564 = vcmp.ge.f32.partialorder %v1366, 0.0
    %vm1565 = vcmp.ge.f32.partialorder %v1477, 0.0
    %vm1566 = vcmp.ge.f32.partialorder %v1479, 0.0
    %vm1567 = vcmp.ge.f32.partialorder %v1144, 0.0
    %vm1568 = vcmp.ge.f32.partialorder %v1146, 0.0
    %vm1569 = vcmp.ge.f32.partialorder %v1257, 0.0
    %vm1570 = vcmp.ge.f32.partialorder %v1259, 0.0
    %vm1571 = vcmp.ge.f32.partialorder %v1370, 0.0
    %vm1572 = vcmp.ge.f32.partialorder %v1372, 0.0
    %vm1573 = vcmp.ge.f32.partialorder %v1483, 0.0
    %vm1574 = vcmp.ge.f32.partialorder %v1485, 0.0
    %vm1575 = vcmp.ge.f32.partialorder %v1148, 0.0
    %vm1576 = vcmp.ge.f32.partialorder %v1150, 0.0
    %vm1577 = vcmp.ge.f32.partialorder %v1261, 0.0
    %vm1578 = vcmp.ge.f32.partialorder %v1263, 0.0
    %vm1579 = vcmp.ge.f32.partialorder %v1374, 0.0
    %vm1580 = vcmp.ge.f32.partialorder %v1376, 0.0
    %vm1581 = vcmp.ge.f32.partialorder %v1487, 0.0
    %vm1582 = vcmp.ge.f32.partialorder %v1489, 0.0
    %vm1583 = vcmp.ge.f32.partialorder %v1154, 0.0
    %vm1584 = vcmp.ge.f32.partialorder %v1156, 0.0
    %vm1585 = vcmp.ge.f32.partialorder %v1267, 0.0
    %vm1586 = vcmp.ge.f32.partialorder %v1269, 0.0
    %vm1587 = vcmp.ge.f32.partialorder %v1380, 0.0
    %vm1588 = vcmp.ge.f32.partialorder %v1382, 0.0
    %vm1589 = vcmp.ge.f32.partialorder %v1493, 0.0
    %vm1590 = vcmp.ge.f32.partialorder %v1495, 0.0
    %vm1591 = vcmp.ge.f32.partialorder %v1158, 0.0
    %vm1592 = vcmp.ge.f32.partialorder %v1160, 0.0
    %vm1593 = vcmp.ge.f32.partialorder %v1271, 0.0
    %vm1594 = vcmp.ge.f32.partialorder %v1273, 0.0
    %vm1595 = vcmp.ge.f32.partialorder %v1384, 0.0
    %vm1596 = vcmp.ge.f32.partialorder %v1386, 0.0
    %vm1597 = vcmp.ge.f32.partialorder %v1497, 0.0
    %vm1598 = vcmp.ge.f32.partialorder %v1499, 0.0
    %vm1599 = vcmp.ge.f32.partialorder %v1164, 0.0
    %vm1600 = vcmp.ge.f32.partialorder %v1166, 0.0
    %vm1601 = vcmp.ge.f32.partialorder %v1277, 0.0
    %vm1602 = vcmp.ge.f32.partialorder %v1279, 0.0
    %vm1603 = vcmp.ge.f32.partialorder %v1390, 0.0
    %vm1604 = vcmp.ge.f32.partialorder %v1392, 0.0
    %vm1605 = vcmp.ge.f32.partialorder %v1503, 0.0
    %vm1606 = vcmp.ge.f32.partialorder %v1505, 0.0
    %vm1607 = vcmp.ge.f32.partialorder %v1168, 0.0
    %vm1608 = vcmp.ge.f32.partialorder %v1170, 0.0
    %vm1609 = vcmp.ge.f32.partialorder %v1281, 0.0
    %vm1610 = vcmp.ge.f32.partialorder %v1283, 0.0
    %vm1611 = vcmp.ge.f32.partialorder %v1394, 0.0
    %vm1612 = vcmp.ge.f32.partialorder %v1396, 0.0
    %vm1613 = vcmp.ge.f32.partialorder %v1507, 0.0
    %vm1614 = vcmp.ge.f32.partialorder %v1509, 0.0
    %vm1615 = vcmp.ge.f32.partialorder %v1174, 0.0
    %vm1616 = vcmp.ge.f32.partialorder %v1176, 0.0
    %vm1617 = vcmp.ge.f32.partialorder %v1287, 0.0
    %vm1618 = vcmp.ge.f32.partialorder %v1289, 0.0
    %vm1619 = vcmp.ge.f32.partialorder %v1400, 0.0
    %vm1620 = vcmp.ge.f32.partialorder %v1402, 0.0
    %vm1621 = vcmp.ge.f32.partialorder %v1513, 0.0
    %vm1622 = vcmp.ge.f32.partialorder %v1515, 0.0
    %vm1623 = vcmp.ge.f32.partialorder %v1178, 0.0
    %vm1624 = vcmp.ge.f32.partialorder %v1180, 0.0
    %vm1625 = vcmp.ge.f32.partialorder %v1291, 0.0
    %vm1626 = vcmp.ge.f32.partialorder %v1293, 0.0
    %vm1627 = vcmp.ge.f32.partialorder %v1404, 0.0
    %vm1628 = vcmp.ge.f32.partialorder %v1406, 0.0
    %vm1629 = vcmp.ge.f32.partialorder %v1517, 0.0
    %vm1630 = vcmp.ge.f32.partialorder %v1519, 0.0
    %vm1631 = vcmp.ge.f32.partialorder %v1184, 0.0
    %vm1632 = vcmp.ge.f32.partialorder %v1186, 0.0
    %vm1633 = vcmp.ge.f32.partialorder %v1297, 0.0
    %vm1634 = vcmp.ge.f32.partialorder %v1299, 0.0
    %vm1635 = vcmp.ge.f32.partialorder %v1410, 0.0
    %vm1636 = vcmp.ge.f32.partialorder %v1412, 0.0
    %vm1637 = vcmp.ge.f32.partialorder %v1523, 0.0
    %vm1638 = vcmp.ge.f32.partialorder %v1525, 0.0
    %vm1639 = vcmp.ge.f32.partialorder %v1188, 0.0
    %vm1640 = vcmp.ge.f32.partialorder %v1190, 0.0
    %vm1641 = vcmp.ge.f32.partialorder %v1301, 0.0
    %vm1642 = vcmp.ge.f32.partialorder %v1303, 0.0
    %vm1643 = vcmp.ge.f32.partialorder %v1414, 0.0
    %vm1644 = vcmp.ge.f32.partialorder %v1416, 0.0
    %vm1645 = vcmp.ge.f32.partialorder %v1527, 0.0
    %vm1646 = vcmp.ge.f32.partialorder %v1529, 0.0
    %vm1647 = vcmp.ge.f32.partialorder %v1194, 0.0
    %vm1648 = vcmp.ge.f32.partialorder %v1196, 0.0
    %vm1649 = vcmp.ge.f32.partialorder %v1307, 0.0
    %vm1650 = vcmp.ge.f32.partialorder %v1309, 0.0
    %vm1651 = vcmp.ge.f32.partialorder %v1420, 0.0
    %vm1652 = vcmp.ge.f32.partialorder %v1422, 0.0
    %vm1653 = vcmp.ge.f32.partialorder %v1533, 0.0
    %vm1654 = vcmp.ge.f32.partialorder %v1535, 0.0
    %vm1655 = vcmp.ge.f32.partialorder %v1198, 0.0
    %vm1656 = vcmp.ge.f32.partialorder %v1200, 0.0
    %vm1657 = vcmp.ge.f32.partialorder %v1311, 0.0
    %vm1658 = vcmp.ge.f32.partialorder %v1313, 0.0
    %vm1659 = vcmp.ge.f32.partialorder %v1424, 0.0
    %vm1660 = vcmp.ge.f32.partialorder %v1426, 0.0
    %vm1661 = vcmp.ge.f32.partialorder %v1537, 0.0
    %vm1662 = vcmp.ge.f32.partialorder %v1539, 0.0
    %vm1663 = vcmp.ge.f32.partialorder %v1204, 0.0
    %vm1664 = vcmp.ge.f32.partialorder %v1206, 0.0
    %vm1665 = vcmp.ge.f32.partialorder %v1317, 0.0
    %vm1666 = vcmp.ge.f32.partialorder %v1319, 0.0
    %vm1667 = vcmp.ge.f32.partialorder %v1430, 0.0
    %vm1668 = vcmp.ge.f32.partialorder %v1432, 0.0
    %vm1669 = vcmp.ge.f32.partialorder %v1543, 0.0
    %vm1670 = vcmp.ge.f32.partialorder %v1545, 0.0
    %vm1671 = vcmp.ge.f32.partialorder %v1208, 0.0
    %vm1672 = vcmp.ge.f32.partialorder %v1210, 0.0
    %vm1673 = vcmp.ge.f32.partialorder %v1321, 0.0
    %vm1674 = vcmp.ge.f32.partialorder %v1323, 0.0
    %vm1675 = vcmp.ge.f32.partialorder %v1434, 0.0
    %vm1676 = vcmp.ge.f32.partialorder %v1436, 0.0
    %vm1677 = vcmp.ge.f32.partialorder %v1547, 0.0
    %vm1678 = vcmp.ge.f32.partialorder %v1549, 0.0
    %v1679 = vstv %s176
    %v1680 = vmul.f32 %v1679, %v1134
    %v1681 = vmul.f32 %v1679, %v1136
    %v1682 = vmul.f32 %v1679, %v1247
    %v1683 = vmul.f32 %v1679, %v1249
    %v1684 = vmul.f32 %v1679, %v1360
    %v1685 = vmul.f32 %v1679, %v1362
    %v1686 = vmul.f32 %v1679, %v1473
    %v1687 = vmul.f32 %v1679, %v1475
    %v1688 = vmul.f32 %v1679, %v1138
    %v1689 = vmul.f32 %v1679, %v1140
    %v1690 = vmul.f32 %v1679, %v1251
    %v1691 = vmul.f32 %v1679, %v1253
    %v1692 = vmul.f32 %v1679, %v1364
    %v1693 = vmul.f32 %v1679, %v1366
    %v1694 = vmul.f32 %v1679, %v1477
    %v1695 = vmul.f32 %v1679, %v1479
    %v1696 = vmul.f32 %v1679, %v1144
    %v1697 = vmul.f32 %v1679, %v1146
    %v1698 = vmul.f32 %v1679, %v1257
    %v1699 = vmul.f32 %v1679, %v1259
    %v1700 = vmul.f32 %v1679, %v1370
    %v1701 = vmul.f32 %v1679, %v1372
    %v1702 = vmul.f32 %v1679, %v1483
    %v1703 = vmul.f32 %v1679, %v1485
    %v1704 = vmul.f32 %v1679, %v1148
    %v1705 = vmul.f32 %v1679, %v1150
    %v1706 = vmul.f32 %v1679, %v1261
    %v1707 = vmul.f32 %v1679, %v1263
    %v1708 = vmul.f32 %v1679, %v1374
    %v1709 = vmul.f32 %v1679, %v1376
    %v1710 = vmul.f32 %v1679, %v1487
    %v1711 = vmul.f32 %v1679, %v1489
    %v1712 = vmul.f32 %v1679, %v1154
    %v1713 = vmul.f32 %v1679, %v1156
    %v1714 = vmul.f32 %v1679, %v1267
    %v1715 = vmul.f32 %v1679, %v1269
    %v1716 = vmul.f32 %v1679, %v1380
    %v1717 = vmul.f32 %v1679, %v1382
    %v1718 = vmul.f32 %v1679, %v1493
    %v1719 = vmul.f32 %v1679, %v1495
    %v1720 = vmul.f32 %v1679, %v1158
    %v1721 = vmul.f32 %v1679, %v1160
    %v1722 = vmul.f32 %v1679, %v1271
    %v1723 = vmul.f32 %v1679, %v1273
    %v1724 = vmul.f32 %v1679, %v1384
    %v1725 = vmul.f32 %v1679, %v1386
    %v1726 = vmul.f32 %v1679, %v1497
    %v1727 = vmul.f32 %v1679, %v1499
    %v1728 = vmul.f32 %v1679, %v1164
    %v1729 = vmul.f32 %v1679, %v1166
    %v1730 = vmul.f32 %v1679, %v1277
    %v1731 = vmul.f32 %v1679, %v1279
    %v1732 = vmul.f32 %v1679, %v1390
    %v1733 = vmul.f32 %v1679, %v1392
    %v1734 = vmul.f32 %v1679, %v1503
    %v1735 = vmul.f32 %v1679, %v1505
    %v1736 = vmul.f32 %v1679, %v1168
    %v1737 = vmul.f32 %v1679, %v1170
    %v1738 = vmul.f32 %v1679, %v1281
    %v1739 = vmul.f32 %v1679, %v1283
    %v1740 = vmul.f32 %v1679, %v1394
    %v1741 = vmul.f32 %v1679, %v1396
    %v1742 = vmul.f32 %v1679, %v1507
    %v1743 = vmul.f32 %v1679, %v1509
    %v1744 = vmul.f32 %v1679, %v1174
    %v1745 = vmul.f32 %v1679, %v1176
    %v1746 = vmul.f32 %v1679, %v1287
    %v1747 = vmul.f32 %v1679, %v1289
    %v1748 = vmul.f32 %v1679, %v1400
    %v1749 = vmul.f32 %v1679, %v1402
    %v1750 = vmul.f32 %v1679, %v1513
    %v1751 = vmul.f32 %v1679, %v1515
    %v1752 = vmul.f32 %v1679, %v1178
    %v1753 = vmul.f32 %v1679, %v1180
    %v1754 = vmul.f32 %v1679, %v1291
    %v1755 = vmul.f32 %v1679, %v1293
    %v1756 = vmul.f32 %v1679, %v1404
    %v1757 = vmul.f32 %v1679, %v1406
    %v1758 = vmul.f32 %v1679, %v1517
    %v1759 = vmul.f32 %v1679, %v1519
    %v1760 = vmul.f32 %v1679, %v1184
    %v1761 = vmul.f32 %v1679, %v1186
    %v1762 = vmul.f32 %v1679, %v1297
    %v1763 = vmul.f32 %v1679, %v1299
    %v1764 = vmul.f32 %v1679, %v1410
    %v1765 = vmul.f32 %v1679, %v1412
    %v1766 = vmul.f32 %v1679, %v1523
    %v1767 = vmul.f32 %v1679, %v1525
    %v1768 = vmul.f32 %v1679, %v1188
    %v1769 = vmul.f32 %v1679, %v1190
    %v1770 = vmul.f32 %v1679, %v1301
    %v1771 = vmul.f32 %v1679, %v1303
    %v1772 = vmul.f32 %v1679, %v1414
    %v1773 = vmul.f32 %v1679, %v1416
    %v1774 = vmul.f32 %v1679, %v1527
    %v1775 = vmul.f32 %v1679, %v1529
    %v1776 = vmul.f32 %v1679, %v1194
    %v1777 = vmul.f32 %v1679, %v1196
    %v1778 = vmul.f32 %v1679, %v1307
    %v1779 = vmul.f32 %v1679, %v1309
    %v1780 = vmul.f32 %v1679, %v1420
    %v1781 = vmul.f32 %v1679, %v1422
    %v1782 = vmul.f32 %v1679, %v1533
    %v1783 = vmul.f32 %v1679, %v1535
    %v1784 = vmul.f32 %v1679, %v1198
    %v1785 = vmul.f32 %v1679, %v1200
    %v1786 = vmul.f32 %v1679, %v1311
    %v1787 = vmul.f32 %v1679, %v1313
    %v1788 = vmul.f32 %v1679, %v1424
    %v1789 = vmul.f32 %v1679, %v1426
    %v1790 = vmul.f32 %v1679, %v1537
    %v1791 = vmul.f32 %v1679, %v1539
    %v1792 = vmul.f32 %v1679, %v1204
    %v1793 = vmul.f32 %v1679, %v1206
    %v1794 = vmul.f32 %v1679, %v1317
    %v1795 = vmul.f32 %v1679, %v1319
    %v1796 = vmul.f32 %v1679, %v1430
    %v1797 = vmul.f32 %v1679, %v1432
    %v1798 = vmul.f32 %v1679, %v1543
    %v1799 = vmul.f32 %v1679, %v1545
    %v1800 = vmul.f32 %v1679, %v1208
    %v1801 = vmul.f32 %v1679, %v1210
    %v1802 = vmul.f32 %v1679, %v1321
    %v1803 = vmul.f32 %v1679, %v1323
    %v1804 = vmul.f32 %v1679, %v1434
    %v1805 = vmul.f32 %v1679, %v1436
    %v1806 = vmul.f32 %v1679, %v1547
    %v1807 = vmul.f32 %v1679, %v1549
    %v1808 = vsel %vm1551, %v1134, %v1680
    %v1809 = vsel %vm1552, %v1136, %v1681
    %v1810 = vsel %vm1553, %v1247, %v1682
    %v1811 = vsel %vm1554, %v1249, %v1683
    %v1812 = vsel %vm1555, %v1360, %v1684
    %v1813 = vsel %vm1556, %v1362, %v1685
    %v1814 = vsel %vm1557, %v1473, %v1686
    %v1815 = vsel %vm1558, %v1475, %v1687
    %v1816 = vsel %vm1559, %v1138, %v1688
    %v1817 = vsel %vm1560, %v1140, %v1689
    %v1818 = vsel %vm1561, %v1251, %v1690
    %v1819 = vsel %vm1562, %v1253, %v1691
    %v1820 = vsel %vm1563, %v1364, %v1692
    %v1821 = vsel %vm1564, %v1366, %v1693
    %v1822 = vsel %vm1565, %v1477, %v1694
    %v1823 = vsel %vm1566, %v1479, %v1695
    %v1824 = vsel %vm1567, %v1144, %v1696
    %v1825 = vsel %vm1568, %v1146, %v1697
    %v1826 = vsel %vm1569, %v1257, %v1698
    %v1827 = vsel %vm1570, %v1259, %v1699
    %v1828 = vsel %vm1571, %v1370, %v1700
    %v1829 = vsel %vm1572, %v1372, %v1701
    %v1830 = vsel %vm1573, %v1483, %v1702
    %v1831 = vsel %vm1574, %v1485, %v1703
    %v1832 = vsel %vm1575, %v1148, %v1704
    %v1833 = vsel %vm1576, %v1150, %v1705
    %v1834 = vsel %vm1577, %v1261, %v1706
    %v1835 = vsel %vm1578, %v1263, %v1707
    %v1836 = vsel %vm1579, %v1374, %v1708
    %v1837 = vsel %vm1580, %v1376, %v1709
    %v1838 = vsel %vm1581, %v1487, %v1710
    %v1839 = vsel %vm1582, %v1489, %v1711
    %v1840 = vsel %vm1583, %v1154, %v1712
    %v1841 = vsel %vm1584, %v1156, %v1713
    %v1842 = vsel %vm1585, %v1267, %v1714
    %v1843 = vsel %vm1586, %v1269, %v1715
    %v1844 = vsel %vm1587, %v1380, %v1716
    %v1845 = vsel %vm1588, %v1382, %v1717
    %v1846 = vsel %vm1589, %v1493, %v1718
    %v1847 = vsel %vm1590, %v1495, %v1719
    %v1848 = vsel %vm1591, %v1158, %v1720
    %v1849 = vsel %vm1592, %v1160, %v1721
    %v1850 = vsel %vm1593, %v1271, %v1722
    %v1851 = vsel %vm1594, %v1273, %v1723
    %v1852 = vsel %vm1595, %v1384, %v1724
    %v1853 = vsel %vm1596, %v1386, %v1725
    %v1854 = vsel %vm1597, %v1497, %v1726
    %v1855 = vsel %vm1598, %v1499, %v1727
    %v1856 = vsel %vm1599, %v1164, %v1728
    %v1857 = vsel %vm1600, %v1166, %v1729
    %v1858 = vsel %vm1601, %v1277, %v1730
    %v1859 = vsel %vm1602, %v1279, %v1731
    %v1860 = vsel %vm1603, %v1390, %v1732
    %v1861 = vsel %vm1604, %v1392, %v1733
    %v1862 = vsel %vm1605, %v1503, %v1734
    %v1863 = vsel %vm1606, %v1505, %v1735
    %v1864 = vsel %vm1607, %v1168, %v1736
    %v1865 = vsel %vm1608, %v1170, %v1737
    %v1866 = vsel %vm1609, %v1281, %v1738
    %v1867 = vsel %vm1610, %v1283, %v1739
    %v1868 = vsel %vm1611, %v1394, %v1740
    %v1869 = vsel %vm1612, %v1396, %v1741
    %v1870 = vsel %vm1613, %v1507, %v1742
    %v1871 = vsel %vm1614, %v1509, %v1743
    %v1872 = vsel %vm1615, %v1174, %v1744
    %v1873 = vsel %vm1616, %v1176, %v1745
    %v1874 = vsel %vm1617, %v1287, %v1746
    %v1875 = vsel %vm1618, %v1289, %v1747
    %v1876 = vsel %vm1619, %v1400, %v1748
    %v1877 = vsel %vm1620, %v1402, %v1749
    %v1878 = vsel %vm1621, %v1513, %v1750
    %v1879 = vsel %vm1622, %v1515, %v1751
    %v1880 = vsel %vm1623, %v1178, %v1752
    %v1881 = vsel %vm1624, %v1180, %v1753
    %v1882 = vsel %vm1625, %v1291, %v1754
    %v1883 = vsel %vm1626, %v1293, %v1755
    %v1884 = vsel %vm1627, %v1404, %v1756
    %v1885 = vsel %vm1628, %v1406, %v1757
    %v1886 = vsel %vm1629, %v1517, %v1758
    %v1887 = vsel %vm1630, %v1519, %v1759
    %v1888 = vsel %vm1631, %v1184, %v1760
    %v1889 = vsel %vm1632, %v1186, %v1761
    %v1890 = vsel %vm1633, %v1297, %v1762
    %v1891 = vsel %vm1634, %v1299, %v1763
    %v1892 = vsel %vm1635, %v1410, %v1764
    %v1893 = vsel %vm1636, %v1412, %v1765
    %v1894 = vsel %vm1637, %v1523, %v1766
    %v1895 = vsel %vm1638, %v1525, %v1767
    %v1896 = vsel %vm1639, %v1188, %v1768
    %v1897 = vsel %vm1640, %v1190, %v1769
    %v1898 = vsel %vm1641, %v1301, %v1770
    %v1899 = vsel %vm1642, %v1303, %v1771
    %v1900 = vsel %vm1643, %v1414, %v1772
    %v1901 = vsel %vm1644, %v1416, %v1773
    %v1902 = vsel %vm1645, %v1527, %v1774
    %v1903 = vsel %vm1646, %v1529, %v1775
    %v1904 = vsel %vm1647, %v1194, %v1776
    %v1905 = vsel %vm1648, %v1196, %v1777
    %v1906 = vsel %vm1649, %v1307, %v1778
    %v1907 = vsel %vm1650, %v1309, %v1779
    %v1908 = vsel %vm1651, %v1420, %v1780
    %v1909 = vsel %vm1652, %v1422, %v1781
    %v1910 = vsel %vm1653, %v1533, %v1782
    %v1911 = vsel %vm1654, %v1535, %v1783
    %v1912 = vsel %vm1655, %v1198, %v1784
    %v1913 = vsel %vm1656, %v1200, %v1785
    %v1914 = vsel %vm1657, %v1311, %v1786
    %v1915 = vsel %vm1658, %v1313, %v1787
    %v1916 = vsel %vm1659, %v1424, %v1788
    %v1917 = vsel %vm1660, %v1426, %v1789
    %v1918 = vsel %vm1661, %v1537, %v1790
    %v1919 = vsel %vm1662, %v1539, %v1791
    %v1920 = vsel %vm1663, %v1204, %v1792
    %v1921 = vsel %vm1664, %v1206, %v1793
    %v1922 = vsel %vm1665, %v1317, %v1794
    %v1923 = vsel %vm1666, %v1319, %v1795
    %v1924 = vsel %vm1667, %v1430, %v1796
    %v1925 = vsel %vm1668, %v1432, %v1797
    %v1926 = vsel %vm1669, %v1543, %v1798
    %v1927 = vsel %vm1670, %v1545, %v1799
    %v1928 = vsel %vm1671, %v1208, %v1800
    %v1929 = vsel %vm1672, %v1210, %v1801
    %v1930 = vsel %vm1673, %v1321, %v1802
    %v1931 = vsel %vm1674, %v1323, %v1803
    %v1932 = vsel %vm1675, %v1434, %v1804
    %v1933 = vsel %vm1676, %v1436, %v1805
    %v1934 = vsel %vm1677, %v1547, %v1806
    %v1935 = vsel %vm1678, %v1549, %v1807
    %v1936 = vpack.c.bf16 %v1816, %v1808
    %v1937 = vpack.c.bf16 %v1817, %v1809
    %v1938 = vpack.c.bf16 %v1818, %v1810
    %v1939 = vpack.c.bf16 %v1819, %v1811
    %v1940 = vpack.c.bf16 %v1820, %v1812
    %v1941 = vpack.c.bf16 %v1821, %v1813
    %v1942 = vpack.c.bf16 %v1822, %v1814
    %v1943 = vpack.c.bf16 %v1823, %v1815
    %v1944 = vpack.c.bf16 %v1832, %v1824
    %v1945 = vpack.c.bf16 %v1833, %v1825
    %v1946 = vpack.c.bf16 %v1834, %v1826
    %v1947 = vpack.c.bf16 %v1835, %v1827
    %v1948 = vpack.c.bf16 %v1836, %v1828
    %v1949 = vpack.c.bf16 %v1837, %v1829
    %v1950 = vpack.c.bf16 %v1838, %v1830
    %v1951 = vpack.c.bf16 %v1839, %v1831
    %v1952 = vpack.c.bf16 %v1848, %v1840
    %v1953 = vpack.c.bf16 %v1849, %v1841
    %v1954 = vpack.c.bf16 %v1850, %v1842
    %v1955 = vpack.c.bf16 %v1851, %v1843
    %v1956 = vpack.c.bf16 %v1852, %v1844
    %v1957 = vpack.c.bf16 %v1853, %v1845
    %v1958 = vpack.c.bf16 %v1854, %v1846
    %v1959 = vpack.c.bf16 %v1855, %v1847
    %v1960 = vpack.c.bf16 %v1864, %v1856
    %v1961 = vpack.c.bf16 %v1865, %v1857
    %v1962 = vpack.c.bf16 %v1866, %v1858
    %v1963 = vpack.c.bf16 %v1867, %v1859
    %v1964 = vpack.c.bf16 %v1868, %v1860
    %v1965 = vpack.c.bf16 %v1869, %v1861
    %v1966 = vpack.c.bf16 %v1870, %v1862
    %v1967 = vpack.c.bf16 %v1871, %v1863
    %v1968 = vpack.c.bf16 %v1880, %v1872
    %v1969 = vpack.c.bf16 %v1881, %v1873
    %v1970 = vpack.c.bf16 %v1882, %v1874
    %v1971 = vpack.c.bf16 %v1883, %v1875
    %v1972 = vpack.c.bf16 %v1884, %v1876
    %v1973 = vpack.c.bf16 %v1885, %v1877
    %v1974 = vpack.c.bf16 %v1886, %v1878
    %v1975 = vpack.c.bf16 %v1887, %v1879
    %v1976 = vpack.c.bf16 %v1896, %v1888
    %v1977 = vpack.c.bf16 %v1897, %v1889
    %v1978 = vpack.c.bf16 %v1898, %v1890
    %v1979 = vpack.c.bf16 %v1899, %v1891
    %v1980 = vpack.c.bf16 %v1900, %v1892
    %v1981 = vpack.c.bf16 %v1901, %v1893
    %v1982 = vpack.c.bf16 %v1902, %v1894
    %v1983 = vpack.c.bf16 %v1903, %v1895
    %v1984 = vpack.c.bf16 %v1912, %v1904
    %v1985 = vpack.c.bf16 %v1913, %v1905
    %v1986 = vpack.c.bf16 %v1914, %v1906
    %v1987 = vpack.c.bf16 %v1915, %v1907
    %v1988 = vpack.c.bf16 %v1916, %v1908
    %v1989 = vpack.c.bf16 %v1917, %v1909
    %v1990 = vpack.c.bf16 %v1918, %v1910
    %v1991 = vpack.c.bf16 %v1919, %v1911
    %v1992 = vpack.c.bf16 %v1928, %v1920
    %v1993 = vpack.c.bf16 %v1929, %v1921
    %v1994 = vpack.c.bf16 %v1930, %v1922
    %v1995 = vpack.c.bf16 %v1931, %v1923
    %v1996 = vpack.c.bf16 %v1932, %v1924
    %v1997 = vpack.c.bf16 %v1933, %v1925
    %v1998 = vpack.c.bf16 %v1934, %v1926
    %v1999 = vpack.c.bf16 %v1935, %v1927
    %v2000 = vld [vmem:[#allocation14] sm:$0xff]
    %v2001 = vld [vmem:[#allocation14 + $0x8] sm:$0xff]
    %v2002 = vld [vmem:[#allocation14 + $0x10] sm:$0xff]
    %v2003 = vld [vmem:[#allocation14 + $0x18] sm:$0xff]
    %v2004 = vld [vmem:[#allocation14 + $0x20] sm:$0xff]
    %v2005 = vld [vmem:[#allocation14 + $0x28] sm:$0xff]
    %v2006 = vld [vmem:[#allocation14 + $0x30] sm:$0xff]
    %v2007 = vld [vmem:[#allocation14 + $0x38] sm:$0xff]
    %v2008 = vld [vmem:[#allocation14 + $0x40] sm:$0xff]
    %v2009 = vld [vmem:[#allocation14 + $0x48] sm:$0xff]
    %v2010 = vld [vmem:[#allocation14 + $0x50] sm:$0xff]
    %v2011 = vld [vmem:[#allocation14 + $0x58] sm:$0xff]
    %v2012 = vld [vmem:[#allocation14 + $0x60] sm:$0xff]
    %v2013 = vld [vmem:[#allocation14 + $0x68] sm:$0xff]
    %v2014 = vld [vmem:[#allocation14 + $0x70] sm:$0xff]
    %v2015 = vld [vmem:[#allocation14 + $0x78] sm:$0xff]
    %v2016 = vld [vmem:[#allocation14 + $0x80] sm:$0xff]
    %v2017 = vld [vmem:[#allocation14 + $0x88] sm:$0xff]
    %v2018 = vld [vmem:[#allocation14 + $0x90] sm:$0xff]
    %v2019 = vld [vmem:[#allocation14 + $0x98] sm:$0xff]
    %v2020 = vld [vmem:[#allocation14 + $0xa0] sm:$0xff]
    %v2021 = vld [vmem:[#allocation14 + $0xa8] sm:$0xff]
    %v2022 = vld [vmem:[#allocation14 + $0xb0] sm:$0xff]
    %v2023 = vld [vmem:[#allocation14 + $0xb8] sm:$0xff]
    %v2024 = vld [vmem:[#allocation14 + $0xc0] sm:$0xff]
    %v2025 = vld [vmem:[#allocation14 + $0xc8] sm:$0xff]
    %v2026 = vld [vmem:[#allocation14 + $0xd0] sm:$0xff]
    %v2027 = vld [vmem:[#allocation14 + $0xd8] sm:$0xff]
    %v2028 = vld [vmem:[#allocation14 + $0xe0] sm:$0xff]
    %v2029 = vld [vmem:[#allocation14 + $0xe8] sm:$0xff]
    %v2030 = vld [vmem:[#allocation14 + $0xf0] sm:$0xff]
    %v2031 = vld [vmem:[#allocation14 + $0xf8] sm:$0xff]
    %v2032 = vld [vmem:[#allocation14 + $0x100] sm:$0xff]
    %v2033 = vld [vmem:[#allocation14 + $0x108] sm:$0xff]
    %v2034 = vld [vmem:[#allocation14 + $0x110] sm:$0xff]
    %v2035 = vld [vmem:[#allocation14 + $0x118] sm:$0xff]
    %v2036 = vld [vmem:[#allocation14 + $0x120] sm:$0xff]
    %v2037 = vld [vmem:[#allocation14 + $0x128] sm:$0xff]
    %v2038 = vld [vmem:[#allocation14 + $0x130] sm:$0xff]
    %v2039 = vld [vmem:[#allocation14 + $0x138] sm:$0xff]
    %v2040 = vld [vmem:[#allocation14 + $0x140] sm:$0xff]
    %v2041 = vld [vmem:[#allocation14 + $0x148] sm:$0xff]
    %v2042 = vld [vmem:[#allocation14 + $0x150] sm:$0xff]
    %v2043 = vld [vmem:[#allocation14 + $0x158] sm:$0xff]
    %v2044 = vld [vmem:[#allocation14 + $0x160] sm:$0xff]
    %v2045 = vld [vmem:[#allocation14 + $0x168] sm:$0xff]
    %v2046 = vld [vmem:[#allocation14 + $0x170] sm:$0xff]
    %v2047 = vld [vmem:[#allocation14 + $0x178] sm:$0xff]
    %v2048 = vld [vmem:[#allocation14 + $0x180] sm:$0xff]
    %v2049 = vld [vmem:[#allocation14 + $0x188] sm:$0xff]
    %v2050 = vld [vmem:[#allocation14 + $0x190] sm:$0xff]
    %v2051 = vld [vmem:[#allocation14 + $0x198] sm:$0xff]
    %v2052 = vld [vmem:[#allocation14 + $0x1a0] sm:$0xff]
    %v2053 = vld [vmem:[#allocation14 + $0x1a8] sm:$0xff]
    %v2054 = vld [vmem:[#allocation14 + $0x1b0] sm:$0xff]
    %v2055 = vld [vmem:[#allocation14 + $0x1b8] sm:$0xff]
    %v2056 = vld [vmem:[#allocation14 + $0x1c0] sm:$0xff]
    %v2057 = vld [vmem:[#allocation14 + $0x1c8] sm:$0xff]
    %v2058 = vld [vmem:[#allocation14 + $0x1d0] sm:$0xff]
    %v2059 = vld [vmem:[#allocation14 + $0x1d8] sm:$0xff]
    %v2060 = vld [vmem:[#allocation14 + $0x1e0] sm:$0xff]
    %v2061 = vld [vmem:[#allocation14 + $0x1e8] sm:$0xff]
    %v2062 = vld [vmem:[#allocation14 + $0x1f0] sm:$0xff]
    %v2063 = vld [vmem:[#allocation14 + $0x1f8] sm:$0xff]
    %v2064 = vld [vmem:[#allocation14 + $0x200] sm:$0xff]
    %v2065 = vld [vmem:[#allocation14 + $0x208] sm:$0xff]
    %v2066 = vld [vmem:[#allocation14 + $0x210] sm:$0xff]
    %v2067 = vld [vmem:[#allocation14 + $0x218] sm:$0xff]
    %v2068 = vld [vmem:[#allocation14 + $0x220] sm:$0xff]
    %v2069 = vld [vmem:[#allocation14 + $0x228] sm:$0xff]
    %v2070 = vld [vmem:[#allocation14 + $0x230] sm:$0xff]
    %v2071 = vld [vmem:[#allocation14 + $0x238] sm:$0xff]
    %v2072 = vld [vmem:[#allocation14 + $0x240] sm:$0xff]
    %v2073 = vld [vmem:[#allocation14 + $0x248] sm:$0xff]
    %v2074 = vld [vmem:[#allocation14 + $0x250] sm:$0xff]
    %v2075 = vld [vmem:[#allocation14 + $0x258] sm:$0xff]
    %v2076 = vld [vmem:[#allocation14 + $0x260] sm:$0xff]
    %v2077 = vld [vmem:[#allocation14 + $0x268] sm:$0xff]
    %v2078 = vld [vmem:[#allocation14 + $0x270] sm:$0xff]
    %v2079 = vld [vmem:[#allocation14 + $0x278] sm:$0xff]
    %v2080 = vld [vmem:[#allocation14 + $0x280] sm:$0xff]
    %v2081 = vld [vmem:[#allocation14 + $0x288] sm:$0xff]
    %v2082 = vld [vmem:[#allocation14 + $0x290] sm:$0xff]
    %v2083 = vld [vmem:[#allocation14 + $0x298] sm:$0xff]
    %v2084 = vld [vmem:[#allocation14 + $0x2a0] sm:$0xff]
    %v2085 = vld [vmem:[#allocation14 + $0x2a8] sm:$0xff]
    %v2086 = vld [vmem:[#allocation14 + $0x2b0] sm:$0xff]
    %v2087 = vld [vmem:[#allocation14 + $0x2b8] sm:$0xff]
    %v2088 = vld [vmem:[#allocation14 + $0x2c0] sm:$0xff]
    %v2089 = vld [vmem:[#allocation14 + $0x2c8] sm:$0xff]
    %v2090 = vld [vmem:[#allocation14 + $0x2d0] sm:$0xff]
    %v2091 = vld [vmem:[#allocation14 + $0x2d8] sm:$0xff]
    %v2092 = vld [vmem:[#allocation14 + $0x2e0] sm:$0xff]
    %v2093 = vld [vmem:[#allocation14 + $0x2e8] sm:$0xff]
    %v2094 = vld [vmem:[#allocation14 + $0x2f0] sm:$0xff]
    %v2095 = vld [vmem:[#allocation14 + $0x2f8] sm:$0xff]
    %v2096 = vld [vmem:[#allocation14 + $0x300] sm:$0xff]
    %v2097 = vld [vmem:[#allocation14 + $0x308] sm:$0xff]
    %v2098 = vld [vmem:[#allocation14 + $0x310] sm:$0xff]
    %v2099 = vld [vmem:[#allocation14 + $0x318] sm:$0xff]
    %v2100 = vld [vmem:[#allocation14 + $0x320] sm:$0xff]
    %v2101 = vld [vmem:[#allocation14 + $0x328] sm:$0xff]
    %v2102 = vld [vmem:[#allocation14 + $0x330] sm:$0xff]
    %v2103 = vld [vmem:[#allocation14 + $0x338] sm:$0xff]
    %v2104 = vld [vmem:[#allocation14 + $0x340] sm:$0xff]
    %v2105 = vld [vmem:[#allocation14 + $0x348] sm:$0xff]
    %v2106 = vld [vmem:[#allocation14 + $0x350] sm:$0xff]
    %v2107 = vld [vmem:[#allocation14 + $0x358] sm:$0xff]
    %v2108 = vld [vmem:[#allocation14 + $0x360] sm:$0xff]
    %v2109 = vld [vmem:[#allocation14 + $0x368] sm:$0xff]
    %v2110 = vld [vmem:[#allocation14 + $0x370] sm:$0xff]
    %v2111 = vld [vmem:[#allocation14 + $0x378] sm:$0xff]
    %v2112 = vld [vmem:[#allocation14 + $0x380] sm:$0xff]
    %v2113 = vld [vmem:[#allocation14 + $0x388] sm:$0xff]
    %v2114 = vld [vmem:[#allocation14 + $0x390] sm:$0xff]
    %v2115 = vld [vmem:[#allocation14 + $0x398] sm:$0xff]
    %v2116 = vld [vmem:[#allocation14 + $0x3a0] sm:$0xff]
    %v2117 = vld [vmem:[#allocation14 + $0x3a8] sm:$0xff]
    %v2118 = vld [vmem:[#allocation14 + $0x3b0] sm:$0xff]
    %v2119 = vld [vmem:[#allocation14 + $0x3b8] sm:$0xff]
    %v2120 = vld [vmem:[#allocation14 + $0x3c0] sm:$0xff]
    %v2121 = vld [vmem:[#allocation14 + $0x3c8] sm:$0xff]
    %v2122 = vld [vmem:[#allocation14 + $0x3d0] sm:$0xff]
    %v2123 = vld [vmem:[#allocation14 + $0x3d8] sm:$0xff]
    %v2124 = vld [vmem:[#allocation14 + $0x3e0] sm:$0xff]
    %v2125 = vld [vmem:[#allocation14 + $0x3e8] sm:$0xff]
    %v2126 = vld [vmem:[#allocation14 + $0x3f0] sm:$0xff]
    %v2127 = vld [vmem:[#allocation14 + $0x3f8] sm:$0xff]
    %v2128 = vld [vmem:[#allocation14 + $0x400] sm:$0xff]
    %v2129 = vld [vmem:[#allocation14 + $0x408] sm:$0xff]
    %v2130 = vld [vmem:[#allocation14 + $0x410] sm:$0xff]
    %v2131 = vld [vmem:[#allocation14 + $0x418] sm:$0xff]
    %v2132 = vld [vmem:[#allocation14 + $0x420] sm:$0xff]
    %v2133 = vld [vmem:[#allocation14 + $0x428] sm:$0xff]
    %v2134 = vld [vmem:[#allocation14 + $0x430] sm:$0xff]
    %v2135 = vld [vmem:[#allocation14 + $0x438] sm:$0xff]
    %v2136 = vld [vmem:[#allocation14 + $0x440] sm:$0xff]
    %v2137 = vld [vmem:[#allocation14 + $0x448] sm:$0xff]
    %v2138 = vld [vmem:[#allocation14 + $0x450] sm:$0xff]
    %v2139 = vld [vmem:[#allocation14 + $0x458] sm:$0xff]
    %v2140 = vld [vmem:[#allocation14 + $0x460] sm:$0xff]
    %v2141 = vld [vmem:[#allocation14 + $0x468] sm:$0xff]
    %v2142 = vld [vmem:[#allocation14 + $0x470] sm:$0xff]
    %v2143 = vld [vmem:[#allocation14 + $0x478] sm:$0xff]
    %v2144 = vld [vmem:[#allocation14 + $0x480] sm:$0xff]
    %v2145 = vld [vmem:[#allocation14 + $0x488] sm:$0xff]
    %v2146 = vld [vmem:[#allocation14 + $0x490] sm:$0xff]
    %v2147 = vld [vmem:[#allocation14 + $0x498] sm:$0xff]
    %v2148 = vld [vmem:[#allocation14 + $0x4a0] sm:$0xff]
    %v2149 = vld [vmem:[#allocation14 + $0x4a8] sm:$0xff]
    %v2150 = vld [vmem:[#allocation14 + $0x4b0] sm:$0xff]
    %v2151 = vld [vmem:[#allocation14 + $0x4b8] sm:$0xff]
    %v2152 = vld [vmem:[#allocation14 + $0x4c0] sm:$0xff]
    %v2153 = vld [vmem:[#allocation14 + $0x4c8] sm:$0xff]
    %v2154 = vld [vmem:[#allocation14 + $0x4d0] sm:$0xff]
    %v2155 = vld [vmem:[#allocation14 + $0x4d8] sm:$0xff]
    %v2156 = vld [vmem:[#allocation14 + $0x4e0] sm:$0xff]
    %v2157 = vld [vmem:[#allocation14 + $0x4e8] sm:$0xff]
    %v2158 = vld [vmem:[#allocation14 + $0x4f0] sm:$0xff]
    %v2159 = vld [vmem:[#allocation14 + $0x4f8] sm:$0xff]
    %v2160 = vld [vmem:[#allocation14 + $0x500] sm:$0xff]
    %v2161 = vld [vmem:[#allocation14 + $0x508] sm:$0xff]
    %v2162 = vld [vmem:[#allocation14 + $0x510] sm:$0xff]
    %v2163 = vld [vmem:[#allocation14 + $0x518] sm:$0xff]
    %v2164 = vld [vmem:[#allocation14 + $0x520] sm:$0xff]
    %v2165 = vld [vmem:[#allocation14 + $0x528] sm:$0xff]
    %v2166 = vld [vmem:[#allocation14 + $0x530] sm:$0xff]
    %v2167 = vld [vmem:[#allocation14 + $0x538] sm:$0xff]
    %v2168 = vld [vmem:[#allocation14 + $0x540] sm:$0xff]
    %v2169 = vld [vmem:[#allocation14 + $0x548] sm:$0xff]
    %v2170 = vld [vmem:[#allocation14 + $0x550] sm:$0xff]
    %v2171 = vld [vmem:[#allocation14 + $0x558] sm:$0xff]
    %v2172 = vld [vmem:[#allocation14 + $0x560] sm:$0xff]
    %v2173 = vld [vmem:[#allocation14 + $0x568] sm:$0xff]
    %v2174 = vld [vmem:[#allocation14 + $0x570] sm:$0xff]
    %v2175 = vld [vmem:[#allocation14 + $0x578] sm:$0xff]
    %v2176 = vld [vmem:[#allocation14 + $0x580] sm:$0xff]
    %v2177 = vld [vmem:[#allocation14 + $0x588] sm:$0xff]
    %v2178 = vld [vmem:[#allocation14 + $0x590] sm:$0xff]
    %v2179 = vld [vmem:[#allocation14 + $0x598] sm:$0xff]
    %v2180 = vld [vmem:[#allocation14 + $0x5a0] sm:$0xff]
    %v2181 = vld [vmem:[#allocation14 + $0x5a8] sm:$0xff]
    %v2182 = vld [vmem:[#allocation14 + $0x5b0] sm:$0xff]
    %v2183 = vld [vmem:[#allocation14 + $0x5b8] sm:$0xff]
    %v2184 = vld [vmem:[#allocation14 + $0x5c0] sm:$0xff]
    %v2185 = vld [vmem:[#allocation14 + $0x5c8] sm:$0xff]
    %v2186 = vld [vmem:[#allocation14 + $0x5d0] sm:$0xff]
    %v2187 = vld [vmem:[#allocation14 + $0x5d8] sm:$0xff]
    %v2188 = vld [vmem:[#allocation14 + $0x5e0] sm:$0xff]
    %v2189 = vld [vmem:[#allocation14 + $0x5e8] sm:$0xff]
    %v2190 = vld [vmem:[#allocation14 + $0x5f0] sm:$0xff]
    %v2191 = vld [vmem:[#allocation14 + $0x5f8] sm:$0xff]
    %v2192 = vld [vmem:[#allocation14 + $0x600] sm:$0xff]
    %v2193 = vld [vmem:[#allocation14 + $0x608] sm:$0xff]
    %v2194 = vld [vmem:[#allocation14 + $0x610] sm:$0xff]
    %v2195 = vld [vmem:[#allocation14 + $0x618] sm:$0xff]
    %v2196 = vld [vmem:[#allocation14 + $0x620] sm:$0xff]
    %v2197 = vld [vmem:[#allocation14 + $0x628] sm:$0xff]
    %v2198 = vld [vmem:[#allocation14 + $0x630] sm:$0xff]
    %v2199 = vld [vmem:[#allocation14 + $0x638] sm:$0xff]
    %v2200 = vld [vmem:[#allocation14 + $0x640] sm:$0xff]
    %v2201 = vld [vmem:[#allocation14 + $0x648] sm:$0xff]
    %v2202 = vld [vmem:[#allocation14 + $0x650] sm:$0xff]
    %v2203 = vld [vmem:[#allocation14 + $0x658] sm:$0xff]
    %v2204 = vld [vmem:[#allocation14 + $0x660] sm:$0xff]
    %v2205 = vld [vmem:[#allocation14 + $0x668] sm:$0xff]
    %v2206 = vld [vmem:[#allocation14 + $0x670] sm:$0xff]
    %v2207 = vld [vmem:[#allocation14 + $0x678] sm:$0xff]
    %v2208 = vld [vmem:[#allocation14 + $0x680] sm:$0xff]
    %v2209 = vld [vmem:[#allocation14 + $0x688] sm:$0xff]
    %v2210 = vld [vmem:[#allocation14 + $0x690] sm:$0xff]
    %v2211 = vld [vmem:[#allocation14 + $0x698] sm:$0xff]
    %v2212 = vld [vmem:[#allocation14 + $0x6a0] sm:$0xff]
    %v2213 = vld [vmem:[#allocation14 + $0x6a8] sm:$0xff]
    %v2214 = vld [vmem:[#allocation14 + $0x6b0] sm:$0xff]
    %v2215 = vld [vmem:[#allocation14 + $0x6b8] sm:$0xff]
    %v2216 = vld [vmem:[#allocation14 + $0x6c0] sm:$0xff]
    %v2217 = vld [vmem:[#allocation14 + $0x6c8] sm:$0xff]
    %v2218 = vld [vmem:[#allocation14 + $0x6d0] sm:$0xff]
    %v2219 = vld [vmem:[#allocation14 + $0x6d8] sm:$0xff]
    %v2220 = vld [vmem:[#allocation14 + $0x6e0] sm:$0xff]
    %v2221 = vld [vmem:[#allocation14 + $0x6e8] sm:$0xff]
    %v2222 = vld [vmem:[#allocation14 + $0x6f0] sm:$0xff]
    %v2223 = vld [vmem:[#allocation14 + $0x6f8] sm:$0xff]
    %v2224 = vld [vmem:[#allocation14 + $0x700] sm:$0xff]
    %v2225 = vld [vmem:[#allocation14 + $0x708] sm:$0xff]
    %v2226 = vld [vmem:[#allocation14 + $0x710] sm:$0xff]
    %v2227 = vld [vmem:[#allocation14 + $0x718] sm:$0xff]
    %v2228 = vld [vmem:[#allocation14 + $0x720] sm:$0xff]
    %v2229 = vld [vmem:[#allocation14 + $0x728] sm:$0xff]
    %v2230 = vld [vmem:[#allocation14 + $0x730] sm:$0xff]
    %v2231 = vld [vmem:[#allocation14 + $0x738] sm:$0xff]
    %v2232 = vld [vmem:[#allocation14 + $0x740] sm:$0xff]
    %v2233 = vld [vmem:[#allocation14 + $0x748] sm:$0xff]
    %v2234 = vld [vmem:[#allocation14 + $0x750] sm:$0xff]
    %v2235 = vld [vmem:[#allocation14 + $0x758] sm:$0xff]
    %v2236 = vld [vmem:[#allocation14 + $0x760] sm:$0xff]
    %v2237 = vld [vmem:[#allocation14 + $0x768] sm:$0xff]
    %v2238 = vld [vmem:[#allocation14 + $0x770] sm:$0xff]
    %v2239 = vld [vmem:[#allocation14 + $0x778] sm:$0xff]
    %v2240 = vld [vmem:[#allocation14 + $0x780] sm:$0xff]
    %v2241 = vld [vmem:[#allocation14 + $0x788] sm:$0xff]
    %v2242 = vld [vmem:[#allocation14 + $0x790] sm:$0xff]
    %v2243 = vld [vmem:[#allocation14 + $0x798] sm:$0xff]
    %v2244 = vld [vmem:[#allocation14 + $0x7a0] sm:$0xff]
    %v2245 = vld [vmem:[#allocation14 + $0x7a8] sm:$0xff]
    %v2246 = vld [vmem:[#allocation14 + $0x7b0] sm:$0xff]
    %v2247 = vld [vmem:[#allocation14 + $0x7b8] sm:$0xff]
    %v2248 = vld [vmem:[#allocation14 + $0x7c0] sm:$0xff]
    %v2249 = vld [vmem:[#allocation14 + $0x7c8] sm:$0xff]
    %v2250 = vld [vmem:[#allocation14 + $0x7d0] sm:$0xff]
    %v2251 = vld [vmem:[#allocation14 + $0x7d8] sm:$0xff]
    %v2252 = vld [vmem:[#allocation14 + $0x7e0] sm:$0xff]
    %v2253 = vld [vmem:[#allocation14 + $0x7e8] sm:$0xff]
    %v2254 = vld [vmem:[#allocation14 + $0x7f0] sm:$0xff]
    %v2255 = vld [vmem:[#allocation14 + $0x7f8] sm:$0xff]
    %v2256 = vld [vmem:[%s5] sm:$0xf]
    %v2258 = vlaneseq
    %v2259 = vshrl.u32 %v2258, 7
    %v2260 = vsub.s32 0, %v2259
    %v2261 = vrot.slane %v2256, %v2260
    %v2262 = vlaneseq
    %v2263 = vshrl.u32 %v2262, 7
    %v2264 = vsub.s32 1, %v2263
    %v2265 = vrot.slane %v2256, %v2264
    %v2266 = vlaneseq
    %v2267 = vshrl.u32 %v2266, 7
    %v2268 = vsub.s32 2, %v2267
    %v2269 = vrot.slane %v2256, %v2268
    %v2270 = vlaneseq
    %v2271 = vshrl.u32 %v2270, 7
    %v2272 = vsub.s32 3, %v2271
    %v2273 = vrot.slane %v2256, %v2272
    %v2534 = vunpack.c.l.b16 %v2000
    %v2535 = vunpack.c.h.b16 %v2000
    %v2536 = vunpack.c.l.b16 %v2001
    %v2537 = vunpack.c.h.b16 %v2001
    %v2538 = vunpack.c.l.b16 %v2002
    %v2539 = vunpack.c.h.b16 %v2002
    %v2540 = vunpack.c.l.b16 %v2003
    %v2541 = vunpack.c.h.b16 %v2003
    %v2542 = vunpack.c.l.b16 %v2004
    %v2543 = vunpack.c.h.b16 %v2004
    %v2544 = vunpack.c.l.b16 %v2005
    %v2545 = vunpack.c.h.b16 %v2005
    %v2546 = vunpack.c.l.b16 %v2006
    %v2547 = vunpack.c.h.b16 %v2006
    %v2548 = vunpack.c.l.b16 %v2007
    %v2549 = vunpack.c.h.b16 %v2007
    %v2550 = vunpack.c.l.b16 %v2008
    %v2551 = vunpack.c.h.b16 %v2008
    %v2552 = vunpack.c.l.b16 %v2009
    %v2553 = vunpack.c.h.b16 %v2009
    %v2554 = vunpack.c.l.b16 %v2010
    %v2555 = vunpack.c.h.b16 %v2010
    %v2556 = vunpack.c.l.b16 %v2011
    %v2557 = vunpack.c.h.b16 %v2011
    %v2558 = vunpack.c.l.b16 %v2012
    %v2559 = vunpack.c.h.b16 %v2012
    %v2560 = vunpack.c.l.b16 %v2013
    %v2561 = vunpack.c.h.b16 %v2013
    %v2562 = vunpack.c.l.b16 %v2014
    %v2563 = vunpack.c.h.b16 %v2014
    %v2564 = vunpack.c.l.b16 %v2015
    %v2565 = vunpack.c.h.b16 %v2015
    %v2566 = vunpack.c.l.b16 %v2016
    %v2567 = vunpack.c.h.b16 %v2016
    %v2568 = vunpack.c.l.b16 %v2017
    %v2569 = vunpack.c.h.b16 %v2017
    %v2570 = vunpack.c.l.b16 %v2018
    %v2571 = vunpack.c.h.b16 %v2018
    %v2572 = vunpack.c.l.b16 %v2019
    %v2573 = vunpack.c.h.b16 %v2019
    %v2574 = vunpack.c.l.b16 %v2020
    %v2575 = vunpack.c.h.b16 %v2020
    %v2576 = vunpack.c.l.b16 %v2021
    %v2577 = vunpack.c.h.b16 %v2021
    %v2578 = vunpack.c.l.b16 %v2022
    %v2579 = vunpack.c.h.b16 %v2022
    %v2580 = vunpack.c.l.b16 %v2023
    %v2581 = vunpack.c.h.b16 %v2023
    %v2582 = vunpack.c.l.b16 %v2024
    %v2583 = vunpack.c.h.b16 %v2024
    %v2584 = vunpack.c.l.b16 %v2025
    %v2585 = vunpack.c.h.b16 %v2025
    %v2586 = vunpack.c.l.b16 %v2026
    %v2587 = vunpack.c.h.b16 %v2026
    %v2588 = vunpack.c.l.b16 %v2027
    %v2589 = vunpack.c.h.b16 %v2027
    %v2590 = vunpack.c.l.b16 %v2028
    %v2591 = vunpack.c.h.b16 %v2028
    %v2592 = vunpack.c.l.b16 %v2029
    %v2593 = vunpack.c.h.b16 %v2029
    %v2594 = vunpack.c.l.b16 %v2030
    %v2595 = vunpack.c.h.b16 %v2030
    %v2596 = vunpack.c.l.b16 %v2031
    %v2597 = vunpack.c.h.b16 %v2031
    %v2598 = vunpack.c.l.b16 %v2032
    %v2599 = vunpack.c.h.b16 %v2032
    %v2600 = vunpack.c.l.b16 %v2033
    %v2601 = vunpack.c.h.b16 %v2033
    %v2602 = vunpack.c.l.b16 %v2034
    %v2603 = vunpack.c.h.b16 %v2034
    %v2604 = vunpack.c.l.b16 %v2035
    %v2605 = vunpack.c.h.b16 %v2035
    %v2606 = vunpack.c.l.b16 %v2036
    %v2607 = vunpack.c.h.b16 %v2036
    %v2608 = vunpack.c.l.b16 %v2037
    %v2609 = vunpack.c.h.b16 %v2037
    %v2610 = vunpack.c.l.b16 %v2038
    %v2611 = vunpack.c.h.b16 %v2038
    %v2612 = vunpack.c.l.b16 %v2039
    %v2613 = vunpack.c.h.b16 %v2039
    %v2614 = vunpack.c.l.b16 %v2040
    %v2615 = vunpack.c.h.b16 %v2040
    %v2616 = vunpack.c.l.b16 %v2041
    %v2617 = vunpack.c.h.b16 %v2041
    %v2618 = vunpack.c.l.b16 %v2042
    %v2619 = vunpack.c.h.b16 %v2042
    %v2620 = vunpack.c.l.b16 %v2043
    %v2621 = vunpack.c.h.b16 %v2043
    %v2622 = vunpack.c.l.b16 %v2044
    %v2623 = vunpack.c.h.b16 %v2044
    %v2624 = vunpack.c.l.b16 %v2045
    %v2625 = vunpack.c.h.b16 %v2045
    %v2626 = vunpack.c.l.b16 %v2046
    %v2627 = vunpack.c.h.b16 %v2046
    %v2628 = vunpack.c.l.b16 %v2047
    %v2629 = vunpack.c.h.b16 %v2047
    %v2630 = vunpack.c.l.b16 %v2048
    %v2631 = vunpack.c.h.b16 %v2048
    %v2632 = vunpack.c.l.b16 %v2049
    %v2633 = vunpack.c.h.b16 %v2049
    %v2634 = vunpack.c.l.b16 %v2050
    %v2635 = vunpack.c.h.b16 %v2050
    %v2636 = vunpack.c.l.b16 %v2051
    %v2637 = vunpack.c.h.b16 %v2051
    %v2638 = vunpack.c.l.b16 %v2052
    %v2639 = vunpack.c.h.b16 %v2052
    %v2640 = vunpack.c.l.b16 %v2053
    %v2641 = vunpack.c.h.b16 %v2053
    %v2642 = vunpack.c.l.b16 %v2054
    %v2643 = vunpack.c.h.b16 %v2054
    %v2644 = vunpack.c.l.b16 %v2055
    %v2645 = vunpack.c.h.b16 %v2055
    %v2646 = vunpack.c.l.b16 %v2056
    %v2647 = vunpack.c.h.b16 %v2056
    %v2648 = vunpack.c.l.b16 %v2057
    %v2649 = vunpack.c.h.b16 %v2057
    %v2650 = vunpack.c.l.b16 %v2058
    %v2651 = vunpack.c.h.b16 %v2058
    %v2652 = vunpack.c.l.b16 %v2059
    %v2653 = vunpack.c.h.b16 %v2059
    %v2654 = vunpack.c.l.b16 %v2060
    %v2655 = vunpack.c.h.b16 %v2060
    %v2656 = vunpack.c.l.b16 %v2061
    %v2657 = vunpack.c.h.b16 %v2061
    %v2658 = vunpack.c.l.b16 %v2062
    %v2659 = vunpack.c.h.b16 %v2062
    %v2660 = vunpack.c.l.b16 %v2063
    %v2661 = vunpack.c.h.b16 %v2063
    %v2662 = vunpack.c.l.b16 %v2064
    %v2663 = vunpack.c.h.b16 %v2064
    %v2664 = vunpack.c.l.b16 %v2065
    %v2665 = vunpack.c.h.b16 %v2065
    %v2666 = vunpack.c.l.b16 %v2066
    %v2667 = vunpack.c.h.b16 %v2066
    %v2668 = vunpack.c.l.b16 %v2067
    %v2669 = vunpack.c.h.b16 %v2067
    %v2670 = vunpack.c.l.b16 %v2068
    %v2671 = vunpack.c.h.b16 %v2068
    %v2672 = vunpack.c.l.b16 %v2069
    %v2673 = vunpack.c.h.b16 %v2069
    %v2674 = vunpack.c.l.b16 %v2070
    %v2675 = vunpack.c.h.b16 %v2070
    %v2676 = vunpack.c.l.b16 %v2071
    %v2677 = vunpack.c.h.b16 %v2071
    %v2678 = vunpack.c.l.b16 %v2072
    %v2679 = vunpack.c.h.b16 %v2072
    %v2680 = vunpack.c.l.b16 %v2073
    %v2681 = vunpack.c.h.b16 %v2073
    %v2682 = vunpack.c.l.b16 %v2074
    %v2683 = vunpack.c.h.b16 %v2074
    %v2684 = vunpack.c.l.b16 %v2075
    %v2685 = vunpack.c.h.b16 %v2075
    %v2686 = vunpack.c.l.b16 %v2076
    %v2687 = vunpack.c.h.b16 %v2076
    %v2688 = vunpack.c.l.b16 %v2077
    %v2689 = vunpack.c.h.b16 %v2077
    %v2690 = vunpack.c.l.b16 %v2078
    %v2691 = vunpack.c.h.b16 %v2078
    %v2692 = vunpack.c.l.b16 %v2079
    %v2693 = vunpack.c.h.b16 %v2079
    %v2694 = vunpack.c.l.b16 %v2080
    %v2695 = vunpack.c.h.b16 %v2080
    %v2696 = vunpack.c.l.b16 %v2081
    %v2697 = vunpack.c.h.b16 %v2081
    %v2698 = vunpack.c.l.b16 %v2082
    %v2699 = vunpack.c.h.b16 %v2082
    %v2700 = vunpack.c.l.b16 %v2083
    %v2701 = vunpack.c.h.b16 %v2083
    %v2702 = vunpack.c.l.b16 %v2084
    %v2703 = vunpack.c.h.b16 %v2084
    %v2704 = vunpack.c.l.b16 %v2085
    %v2705 = vunpack.c.h.b16 %v2085
    %v2706 = vunpack.c.l.b16 %v2086
    %v2707 = vunpack.c.h.b16 %v2086
    %v2708 = vunpack.c.l.b16 %v2087
    %v2709 = vunpack.c.h.b16 %v2087
    %v2710 = vunpack.c.l.b16 %v2088
    %v2711 = vunpack.c.h.b16 %v2088
    %v2712 = vunpack.c.l.b16 %v2089
    %v2713 = vunpack.c.h.b16 %v2089
    %v2714 = vunpack.c.l.b16 %v2090
    %v2715 = vunpack.c.h.b16 %v2090
    %v2716 = vunpack.c.l.b16 %v2091
    %v2717 = vunpack.c.h.b16 %v2091
    %v2718 = vunpack.c.l.b16 %v2092
    %v2719 = vunpack.c.h.b16 %v2092
    %v2720 = vunpack.c.l.b16 %v2093
    %v2721 = vunpack.c.h.b16 %v2093
    %v2722 = vunpack.c.l.b16 %v2094
    %v2723 = vunpack.c.h.b16 %v2094
    %v2724 = vunpack.c.l.b16 %v2095
    %v2725 = vunpack.c.h.b16 %v2095
    %v2726 = vunpack.c.l.b16 %v2096
    %v2727 = vunpack.c.h.b16 %v2096
    %v2728 = vunpack.c.l.b16 %v2097
    %v2729 = vunpack.c.h.b16 %v2097
    %v2730 = vunpack.c.l.b16 %v2098
    %v2731 = vunpack.c.h.b16 %v2098
    %v2732 = vunpack.c.l.b16 %v2099
    %v2733 = vunpack.c.h.b16 %v2099
    %v2734 = vunpack.c.l.b16 %v2100
    %v2735 = vunpack.c.h.b16 %v2100
    %v2736 = vunpack.c.l.b16 %v2101
    %v2737 = vunpack.c.h.b16 %v2101
    %v2738 = vunpack.c.l.b16 %v2102
    %v2739 = vunpack.c.h.b16 %v2102
    %v2740 = vunpack.c.l.b16 %v2103
    %v2741 = vunpack.c.h.b16 %v2103
    %v2742 = vunpack.c.l.b16 %v2104
    %v2743 = vunpack.c.h.b16 %v2104
    %v2744 = vunpack.c.l.b16 %v2105
    %v2745 = vunpack.c.h.b16 %v2105
    %v2746 = vunpack.c.l.b16 %v2106
    %v2747 = vunpack.c.h.b16 %v2106
    %v2748 = vunpack.c.l.b16 %v2107
    %v2749 = vunpack.c.h.b16 %v2107
    %v2750 = vunpack.c.l.b16 %v2108
    %v2751 = vunpack.c.h.b16 %v2108
    %v2752 = vunpack.c.l.b16 %v2109
    %v2753 = vunpack.c.h.b16 %v2109
    %v2754 = vunpack.c.l.b16 %v2110
    %v2755 = vunpack.c.h.b16 %v2110
    %v2756 = vunpack.c.l.b16 %v2111
    %v2757 = vunpack.c.h.b16 %v2111
    %v2758 = vunpack.c.l.b16 %v2112
    %v2759 = vunpack.c.h.b16 %v2112
    %v2760 = vunpack.c.l.b16 %v2113
    %v2761 = vunpack.c.h.b16 %v2113
    %v2762 = vunpack.c.l.b16 %v2114
    %v2763 = vunpack.c.h.b16 %v2114
    %v2764 = vunpack.c.l.b16 %v2115
    %v2765 = vunpack.c.h.b16 %v2115
    %v2766 = vunpack.c.l.b16 %v2116
    %v2767 = vunpack.c.h.b16 %v2116
    %v2768 = vunpack.c.l.b16 %v2117
    %v2769 = vunpack.c.h.b16 %v2117
    %v2770 = vunpack.c.l.b16 %v2118
    %v2771 = vunpack.c.h.b16 %v2118
    %v2772 = vunpack.c.l.b16 %v2119
    %v2773 = vunpack.c.h.b16 %v2119
    %v2774 = vunpack.c.l.b16 %v2120
    %v2775 = vunpack.c.h.b16 %v2120
    %v2776 = vunpack.c.l.b16 %v2121
    %v2777 = vunpack.c.h.b16 %v2121
    %v2778 = vunpack.c.l.b16 %v2122
    %v2779 = vunpack.c.h.b16 %v2122
    %v2780 = vunpack.c.l.b16 %v2123
    %v2781 = vunpack.c.h.b16 %v2123
    %v2782 = vunpack.c.l.b16 %v2124
    %v2783 = vunpack.c.h.b16 %v2124
    %v2784 = vunpack.c.l.b16 %v2125
    %v2785 = vunpack.c.h.b16 %v2125
    %v2786 = vunpack.c.l.b16 %v2126
    %v2787 = vunpack.c.h.b16 %v2126
    %v2788 = vunpack.c.l.b16 %v2127
    %v2789 = vunpack.c.h.b16 %v2127
    %v2790 = vunpack.c.l.b16 %v2128
    %v2791 = vunpack.c.h.b16 %v2128
    %v2792 = vunpack.c.l.b16 %v2129
    %v2793 = vunpack.c.h.b16 %v2129
    %v2794 = vunpack.c.l.b16 %v2130
    %v2795 = vunpack.c.h.b16 %v2130
    %v2796 = vunpack.c.l.b16 %v2131
    %v2797 = vunpack.c.h.b16 %v2131
    %v2798 = vunpack.c.l.b16 %v2132
    %v2799 = vunpack.c.h.b16 %v2132
    %v2800 = vunpack.c.l.b16 %v2133
    %v2801 = vunpack.c.h.b16 %v2133
    %v2802 = vunpack.c.l.b16 %v2134
    %v2803 = vunpack.c.h.b16 %v2134
    %v2804 = vunpack.c.l.b16 %v2135
    %v2805 = vunpack.c.h.b16 %v2135
    %v2806 = vunpack.c.l.b16 %v2136
    %v2807 = vunpack.c.h.b16 %v2136
    %v2808 = vunpack.c.l.b16 %v2137
    %v2809 = vunpack.c.h.b16 %v2137
    %v2810 = vunpack.c.l.b16 %v2138
    %v2811 = vunpack.c.h.b16 %v2138
    %v2812 = vunpack.c.l.b16 %v2139
    %v2813 = vunpack.c.h.b16 %v2139
    %v2814 = vunpack.c.l.b16 %v2140
    %v2815 = vunpack.c.h.b16 %v2140
    %v2816 = vunpack.c.l.b16 %v2141
    %v2817 = vunpack.c.h.b16 %v2141
    %v2818 = vunpack.c.l.b16 %v2142
    %v2819 = vunpack.c.h.b16 %v2142
    %v2820 = vunpack.c.l.b16 %v2143
    %v2821 = vunpack.c.h.b16 %v2143
    %v2822 = vunpack.c.l.b16 %v2144
    %v2823 = vunpack.c.h.b16 %v2144
    %v2824 = vunpack.c.l.b16 %v2145
    %v2825 = vunpack.c.h.b16 %v2145
    %v2826 = vunpack.c.l.b16 %v2146
    %v2827 = vunpack.c.h.b16 %v2146
    %v2828 = vunpack.c.l.b16 %v2147
    %v2829 = vunpack.c.h.b16 %v2147
    %v2830 = vunpack.c.l.b16 %v2148
    %v2831 = vunpack.c.h.b16 %v2148
    %v2832 = vunpack.c.l.b16 %v2149
    %v2833 = vunpack.c.h.b16 %v2149
    %v2834 = vunpack.c.l.b16 %v2150
    %v2835 = vunpack.c.h.b16 %v2150
    %v2836 = vunpack.c.l.b16 %v2151
    %v2837 = vunpack.c.h.b16 %v2151
    %v2838 = vunpack.c.l.b16 %v2152
    %v2839 = vunpack.c.h.b16 %v2152
    %v2840 = vunpack.c.l.b16 %v2153
    %v2841 = vunpack.c.h.b16 %v2153
    %v2842 = vunpack.c.l.b16 %v2154
    %v2843 = vunpack.c.h.b16 %v2154
    %v2844 = vunpack.c.l.b16 %v2155
    %v2845 = vunpack.c.h.b16 %v2155
    %v2846 = vunpack.c.l.b16 %v2156
    %v2847 = vunpack.c.h.b16 %v2156
    %v2848 = vunpack.c.l.b16 %v2157
    %v2849 = vunpack.c.h.b16 %v2157
    %v2850 = vunpack.c.l.b16 %v2158
    %v2851 = vunpack.c.h.b16 %v2158
    %v2852 = vunpack.c.l.b16 %v2159
    %v2853 = vunpack.c.h.b16 %v2159
    %v2854 = vunpack.c.l.b16 %v2160
    %v2855 = vunpack.c.h.b16 %v2160
    %v2856 = vunpack.c.l.b16 %v2161
    %v2857 = vunpack.c.h.b16 %v2161
    %v2858 = vunpack.c.l.b16 %v2162
    %v2859 = vunpack.c.h.b16 %v2162
    %v2860 = vunpack.c.l.b16 %v2163
    %v2861 = vunpack.c.h.b16 %v2163
    %v2862 = vunpack.c.l.b16 %v2164
    %v2863 = vunpack.c.h.b16 %v2164
    %v2864 = vunpack.c.l.b16 %v2165
    %v2865 = vunpack.c.h.b16 %v2165
    %v2866 = vunpack.c.l.b16 %v2166
    %v2867 = vunpack.c.h.b16 %v2166
    %v2868 = vunpack.c.l.b16 %v2167
    %v2869 = vunpack.c.h.b16 %v2167
    %v2870 = vunpack.c.l.b16 %v2168
    %v2871 = vunpack.c.h.b16 %v2168
    %v2872 = vunpack.c.l.b16 %v2169
    %v2873 = vunpack.c.h.b16 %v2169
    %v2874 = vunpack.c.l.b16 %v2170
    %v2875 = vunpack.c.h.b16 %v2170
    %v2876 = vunpack.c.l.b16 %v2171
    %v2877 = vunpack.c.h.b16 %v2171
    %v2878 = vunpack.c.l.b16 %v2172
    %v2879 = vunpack.c.h.b16 %v2172
    %v2880 = vunpack.c.l.b16 %v2173
    %v2881 = vunpack.c.h.b16 %v2173
    %v2882 = vunpack.c.l.b16 %v2174
    %v2883 = vunpack.c.h.b16 %v2174
    %v2884 = vunpack.c.l.b16 %v2175
    %v2885 = vunpack.c.h.b16 %v2175
    %v2886 = vunpack.c.l.b16 %v2176
    %v2887 = vunpack.c.h.b16 %v2176
    %v2888 = vunpack.c.l.b16 %v2177
    %v2889 = vunpack.c.h.b16 %v2177
    %v2890 = vunpack.c.l.b16 %v2178
    %v2891 = vunpack.c.h.b16 %v2178
    %v2892 = vunpack.c.l.b16 %v2179
    %v2893 = vunpack.c.h.b16 %v2179
    %v2894 = vunpack.c.l.b16 %v2180
    %v2895 = vunpack.c.h.b16 %v2180
    %v2896 = vunpack.c.l.b16 %v2181
    %v2897 = vunpack.c.h.b16 %v2181
    %v2898 = vunpack.c.l.b16 %v2182
    %v2899 = vunpack.c.h.b16 %v2182
    %v2900 = vunpack.c.l.b16 %v2183
    %v2901 = vunpack.c.h.b16 %v2183
    %v2902 = vunpack.c.l.b16 %v2184
    %v2903 = vunpack.c.h.b16 %v2184
    %v2904 = vunpack.c.l.b16 %v2185
    %v2905 = vunpack.c.h.b16 %v2185
    %v2906 = vunpack.c.l.b16 %v2186
    %v2907 = vunpack.c.h.b16 %v2186
    %v2908 = vunpack.c.l.b16 %v2187
    %v2909 = vunpack.c.h.b16 %v2187
    %v2910 = vunpack.c.l.b16 %v2188
    %v2911 = vunpack.c.h.b16 %v2188
    %v2912 = vunpack.c.l.b16 %v2189
    %v2913 = vunpack.c.h.b16 %v2189
    %v2914 = vunpack.c.l.b16 %v2190
    %v2915 = vunpack.c.h.b16 %v2190
    %v2916 = vunpack.c.l.b16 %v2191
    %v2917 = vunpack.c.h.b16 %v2191
    %v2918 = vunpack.c.l.b16 %v2192
    %v2919 = vunpack.c.h.b16 %v2192
    %v2920 = vunpack.c.l.b16 %v2193
    %v2921 = vunpack.c.h.b16 %v2193
    %v2922 = vunpack.c.l.b16 %v2194
    %v2923 = vunpack.c.h.b16 %v2194
    %v2924 = vunpack.c.l.b16 %v2195
    %v2925 = vunpack.c.h.b16 %v2195
    %v2926 = vunpack.c.l.b16 %v2196
    %v2927 = vunpack.c.h.b16 %v2196
    %v2928 = vunpack.c.l.b16 %v2197
    %v2929 = vunpack.c.h.b16 %v2197
    %v2930 = vunpack.c.l.b16 %v2198
    %v2931 = vunpack.c.h.b16 %v2198
    %v2932 = vunpack.c.l.b16 %v2199
    %v2933 = vunpack.c.h.b16 %v2199
    %v2934 = vunpack.c.l.b16 %v2200
    %v2935 = vunpack.c.h.b16 %v2200
    %v2936 = vunpack.c.l.b16 %v2201
    %v2937 = vunpack.c.h.b16 %v2201
    %v2938 = vunpack.c.l.b16 %v2202
    %v2939 = vunpack.c.h.b16 %v2202
    %v2940 = vunpack.c.l.b16 %v2203
    %v2941 = vunpack.c.h.b16 %v2203
    %v2942 = vunpack.c.l.b16 %v2204
    %v2943 = vunpack.c.h.b16 %v2204
    %v2944 = vunpack.c.l.b16 %v2205
    %v2945 = vunpack.c.h.b16 %v2205
    %v2946 = vunpack.c.l.b16 %v2206
    %v2947 = vunpack.c.h.b16 %v2206
    %v2948 = vunpack.c.l.b16 %v2207
    %v2949 = vunpack.c.h.b16 %v2207
    %v2950 = vunpack.c.l.b16 %v2208
    %v2951 = vunpack.c.h.b16 %v2208
    %v2952 = vunpack.c.l.b16 %v2209
    %v2953 = vunpack.c.h.b16 %v2209
    %v2954 = vunpack.c.l.b16 %v2210
    %v2955 = vunpack.c.h.b16 %v2210
    %v2956 = vunpack.c.l.b16 %v2211
    %v2957 = vunpack.c.h.b16 %v2211
    %v2958 = vunpack.c.l.b16 %v2212
    %v2959 = vunpack.c.h.b16 %v2212
    %v2960 = vunpack.c.l.b16 %v2213
    %v2961 = vunpack.c.h.b16 %v2213
    %v2962 = vunpack.c.l.b16 %v2214
    %v2963 = vunpack.c.h.b16 %v2214
    %v2964 = vunpack.c.l.b16 %v2215
    %v2965 = vunpack.c.h.b16 %v2215
    %v2966 = vunpack.c.l.b16 %v2216
    %v2967 = vunpack.c.h.b16 %v2216
    %v2968 = vunpack.c.l.b16 %v2217
    %v2969 = vunpack.c.h.b16 %v2217
    %v2970 = vunpack.c.l.b16 %v2218
    %v2971 = vunpack.c.h.b16 %v2218
    %v2972 = vunpack.c.l.b16 %v2219
    %v2973 = vunpack.c.h.b16 %v2219
    %v2974 = vunpack.c.l.b16 %v2220
    %v2975 = vunpack.c.h.b16 %v2220
    %v2976 = vunpack.c.l.b16 %v2221
    %v2977 = vunpack.c.h.b16 %v2221
    %v2978 = vunpack.c.l.b16 %v2222
    %v2979 = vunpack.c.h.b16 %v2222
    %v2980 = vunpack.c.l.b16 %v2223
    %v2981 = vunpack.c.h.b16 %v2223
    %v2982 = vunpack.c.l.b16 %v2224
    %v2983 = vunpack.c.h.b16 %v2224
    %v2984 = vunpack.c.l.b16 %v2225
    %v2985 = vunpack.c.h.b16 %v2225
    %v2986 = vunpack.c.l.b16 %v2226
    %v2987 = vunpack.c.h.b16 %v2226
    %v2988 = vunpack.c.l.b16 %v2227
    %v2989 = vunpack.c.h.b16 %v2227
    %v2990 = vunpack.c.l.b16 %v2228
    %v2991 = vunpack.c.h.b16 %v2228
    %v2992 = vunpack.c.l.b16 %v2229
    %v2993 = vunpack.c.h.b16 %v2229
    %v2994 = vunpack.c.l.b16 %v2230
    %v2995 = vunpack.c.h.b16 %v2230
    %v2996 = vunpack.c.l.b16 %v2231
    %v2997 = vunpack.c.h.b16 %v2231
    %v2998 = vunpack.c.l.b16 %v2232
    %v2999 = vunpack.c.h.b16 %v2232
    %v3000 = vunpack.c.l.b16 %v2233
    %v3001 = vunpack.c.h.b16 %v2233
    %v3002 = vunpack.c.l.b16 %v2234
    %v3003 = vunpack.c.h.b16 %v2234
    %v3004 = vunpack.c.l.b16 %v2235
    %v3005 = vunpack.c.h.b16 %v2235
    %v3006 = vunpack.c.l.b16 %v2236
    %v3007 = vunpack.c.h.b16 %v2236
    %v3008 = vunpack.c.l.b16 %v2237
    %v3009 = vunpack.c.h.b16 %v2237
    %v3010 = vunpack.c.l.b16 %v2238
    %v3011 = vunpack.c.h.b16 %v2238
    %v3012 = vunpack.c.l.b16 %v2239
    %v3013 = vunpack.c.h.b16 %v2239
    %v3014 = vunpack.c.l.b16 %v2240
    %v3015 = vunpack.c.h.b16 %v2240
    %v3016 = vunpack.c.l.b16 %v2241
    %v3017 = vunpack.c.h.b16 %v2241
    %v3018 = vunpack.c.l.b16 %v2242
    %v3019 = vunpack.c.h.b16 %v2242
    %v3020 = vunpack.c.l.b16 %v2243
    %v3021 = vunpack.c.h.b16 %v2243
    %v3022 = vunpack.c.l.b16 %v2244
    %v3023 = vunpack.c.h.b16 %v2244
    %v3024 = vunpack.c.l.b16 %v2245
    %v3025 = vunpack.c.h.b16 %v2245
    %v3026 = vunpack.c.l.b16 %v2246
    %v3027 = vunpack.c.h.b16 %v2246
    %v3028 = vunpack.c.l.b16 %v2247
    %v3029 = vunpack.c.h.b16 %v2247
    %v3030 = vunpack.c.l.b16 %v2248
    %v3031 = vunpack.c.h.b16 %v2248
    %v3032 = vunpack.c.l.b16 %v2249
    %v3033 = vunpack.c.h.b16 %v2249
    %v3034 = vunpack.c.l.b16 %v2250
    %v3035 = vunpack.c.h.b16 %v2250
    %v3036 = vunpack.c.l.b16 %v2251
    %v3037 = vunpack.c.h.b16 %v2251
    %v3038 = vunpack.c.l.b16 %v2252
    %v3039 = vunpack.c.h.b16 %v2252
    %v3040 = vunpack.c.l.b16 %v2253
    %v3041 = vunpack.c.h.b16 %v2253
    %v3042 = vunpack.c.l.b16 %v2254
    %v3043 = vunpack.c.h.b16 %v2254
    %v3044 = vunpack.c.l.b16 %v2255
    %v3045 = vunpack.c.h.b16 %v2255
    %v3046 = vpack.c.b16 %v2538, %v2534
    %v3047 = vpack.c.b16 %v2539, %v2535
    %v3048 = vpack.c.b16 %v2540, %v2536
    %v3049 = vpack.c.b16 %v2541, %v2537
    %v3050 = vpack.c.b16 %v2546, %v2542
    %v3051 = vpack.c.b16 %v2547, %v2543
    %v3052 = vpack.c.b16 %v2548, %v2544
    %v3053 = vpack.c.b16 %v2549, %v2545
    %v3054 = vpack.c.b16 %v2554, %v2550
    %v3055 = vpack.c.b16 %v2555, %v2551
    %v3056 = vpack.c.b16 %v2556, %v2552
    %v3057 = vpack.c.b16 %v2557, %v2553
    %v3058 = vpack.c.b16 %v2562, %v2558
    %v3059 = vpack.c.b16 %v2563, %v2559
    %v3060 = vpack.c.b16 %v2564, %v2560
    %v3061 = vpack.c.b16 %v2565, %v2561
    %v3062 = vpack.c.b16 %v2570, %v2566
    %v3063 = vpack.c.b16 %v2571, %v2567
    %v3064 = vpack.c.b16 %v2572, %v2568
    %v3065 = vpack.c.b16 %v2573, %v2569
    %v3066 = vpack.c.b16 %v2578, %v2574
    %v3067 = vpack.c.b16 %v2579, %v2575
    %v3068 = vpack.c.b16 %v2580, %v2576
    %v3069 = vpack.c.b16 %v2581, %v2577
    %v3070 = vpack.c.b16 %v2586, %v2582
    %v3071 = vpack.c.b16 %v2587, %v2583
    %v3072 = vpack.c.b16 %v2588, %v2584
    %v3073 = vpack.c.b16 %v2589, %v2585
    %v3074 = vpack.c.b16 %v2594, %v2590
    %v3075 = vpack.c.b16 %v2595, %v2591
    %v3076 = vpack.c.b16 %v2596, %v2592
    %v3077 = vpack.c.b16 %v2597, %v2593
    %v3078 = vpack.c.b16 %v2602, %v2598
    %v3079 = vpack.c.b16 %v2603, %v2599
    %v3080 = vpack.c.b16 %v2604, %v2600
    %v3081 = vpack.c.b16 %v2605, %v2601
    %v3082 = vpack.c.b16 %v2610, %v2606
    %v3083 = vpack.c.b16 %v2611, %v2607
    %v3084 = vpack.c.b16 %v2612, %v2608
    %v3085 = vpack.c.b16 %v2613, %v2609
    %v3086 = vpack.c.b16 %v2618, %v2614
    %v3087 = vpack.c.b16 %v2619, %v2615
    %v3088 = vpack.c.b16 %v2620, %v2616
    %v3089 = vpack.c.b16 %v2621, %v2617
    %v3090 = vpack.c.b16 %v2626, %v2622
    %v3091 = vpack.c.b16 %v2627, %v2623
    %v3092 = vpack.c.b16 %v2628, %v2624
    %v3093 = vpack.c.b16 %v2629, %v2625
    %v3094 = vpack.c.b16 %v2634, %v2630
    %v3095 = vpack.c.b16 %v2635, %v2631
    %v3096 = vpack.c.b16 %v2636, %v2632
    %v3097 = vpack.c.b16 %v2637, %v2633
    %v3098 = vpack.c.b16 %v2642, %v2638
    %v3099 = vpack.c.b16 %v2643, %v2639
    %v3100 = vpack.c.b16 %v2644, %v2640
    %v3101 = vpack.c.b16 %v2645, %v2641
    %v3102 = vpack.c.b16 %v2650, %v2646
    %v3103 = vpack.c.b16 %v2651, %v2647
    %v3104 = vpack.c.b16 %v2652, %v2648
    %v3105 = vpack.c.b16 %v2653, %v2649
    %v3106 = vpack.c.b16 %v2658, %v2654
    %v3107 = vpack.c.b16 %v2659, %v2655
    %v3108 = vpack.c.b16 %v2660, %v2656
    %v3109 = vpack.c.b16 %v2661, %v2657
    %v3110 = vpack.c.b16 %v2666, %v2662
    %v3111 = vpack.c.b16 %v2667, %v2663
    %v3112 = vpack.c.b16 %v2668, %v2664
    %v3113 = vpack.c.b16 %v2669, %v2665
    %v3114 = vpack.c.b16 %v2674, %v2670
    %v3115 = vpack.c.b16 %v2675, %v2671
    %v3116 = vpack.c.b16 %v2676, %v2672
    %v3117 = vpack.c.b16 %v2677, %v2673
    %v3118 = vpack.c.b16 %v2682, %v2678
    %v3119 = vpack.c.b16 %v2683, %v2679
    %v3120 = vpack.c.b16 %v2684, %v2680
    %v3121 = vpack.c.b16 %v2685, %v2681
    %v3122 = vpack.c.b16 %v2690, %v2686
    %v3123 = vpack.c.b16 %v2691, %v2687
    %v3124 = vpack.c.b16 %v2692, %v2688
    %v3125 = vpack.c.b16 %v2693, %v2689
    %v3126 = vpack.c.b16 %v2698, %v2694
    %v3127 = vpack.c.b16 %v2699, %v2695
    %v3128 = vpack.c.b16 %v2700, %v2696
    %v3129 = vpack.c.b16 %v2701, %v2697
    %v3130 = vpack.c.b16 %v2706, %v2702
    %v3131 = vpack.c.b16 %v2707, %v2703
    %v3132 = vpack.c.b16 %v2708, %v2704
    %v3133 = vpack.c.b16 %v2709, %v2705
    %v3134 = vpack.c.b16 %v2714, %v2710
    %v3135 = vpack.c.b16 %v2715, %v2711
    %v3136 = vpack.c.b16 %v2716, %v2712
    %v3137 = vpack.c.b16 %v2717, %v2713
    %v3138 = vpack.c.b16 %v2722, %v2718
    %v3139 = vpack.c.b16 %v2723, %v2719
    %v3140 = vpack.c.b16 %v2724, %v2720
    %v3141 = vpack.c.b16 %v2725, %v2721
    %v3142 = vpack.c.b16 %v2730, %v2726
    %v3143 = vpack.c.b16 %v2731, %v2727
    %v3144 = vpack.c.b16 %v2732, %v2728
    %v3145 = vpack.c.b16 %v2733, %v2729
    %v3146 = vpack.c.b16 %v2738, %v2734
    %v3147 = vpack.c.b16 %v2739, %v2735
    %v3148 = vpack.c.b16 %v2740, %v2736
    %v3149 = vpack.c.b16 %v2741, %v2737
    %v3150 = vpack.c.b16 %v2746, %v2742
    %v3151 = vpack.c.b16 %v2747, %v2743
    %v3152 = vpack.c.b16 %v2748, %v2744
    %v3153 = vpack.c.b16 %v2749, %v2745
    %v3154 = vpack.c.b16 %v2754, %v2750
    %v3155 = vpack.c.b16 %v2755, %v2751
    %v3156 = vpack.c.b16 %v2756, %v2752
    %v3157 = vpack.c.b16 %v2757, %v2753
    %v3158 = vpack.c.b16 %v2762, %v2758
    %v3159 = vpack.c.b16 %v2763, %v2759
    %v3160 = vpack.c.b16 %v2764, %v2760
    %v3161 = vpack.c.b16 %v2765, %v2761
    %v3162 = vpack.c.b16 %v2770, %v2766
    %v3163 = vpack.c.b16 %v2771, %v2767
    %v3164 = vpack.c.b16 %v2772, %v2768
    %v3165 = vpack.c.b16 %v2773, %v2769
    %v3166 = vpack.c.b16 %v2778, %v2774
    %v3167 = vpack.c.b16 %v2779, %v2775
    %v3168 = vpack.c.b16 %v2780, %v2776
    %v3169 = vpack.c.b16 %v2781, %v2777
    %v3170 = vpack.c.b16 %v2786, %v2782
    %v3171 = vpack.c.b16 %v2787, %v2783
    %v3172 = vpack.c.b16 %v2788, %v2784
    %v3173 = vpack.c.b16 %v2789, %v2785
    %v3174 = vpack.c.b16 %v2794, %v2790
    %v3175 = vpack.c.b16 %v2795, %v2791
    %v3176 = vpack.c.b16 %v2796, %v2792
    %v3177 = vpack.c.b16 %v2797, %v2793
    %v3178 = vpack.c.b16 %v2802, %v2798
    %v3179 = vpack.c.b16 %v2803, %v2799
    %v3180 = vpack.c.b16 %v2804, %v2800
    %v3181 = vpack.c.b16 %v2805, %v2801
    %v3182 = vpack.c.b16 %v2810, %v2806
    %v3183 = vpack.c.b16 %v2811, %v2807
    %v3184 = vpack.c.b16 %v2812, %v2808
    %v3185 = vpack.c.b16 %v2813, %v2809
    %v3186 = vpack.c.b16 %v2818, %v2814
    %v3187 = vpack.c.b16 %v2819, %v2815
    %v3188 = vpack.c.b16 %v2820, %v2816
    %v3189 = vpack.c.b16 %v2821, %v2817
    %v3190 = vpack.c.b16 %v2826, %v2822
    %v3191 = vpack.c.b16 %v2827, %v2823
    %v3192 = vpack.c.b16 %v2828, %v2824
    %v3193 = vpack.c.b16 %v2829, %v2825
    %v3194 = vpack.c.b16 %v2834, %v2830
    %v3195 = vpack.c.b16 %v2835, %v2831
    %v3196 = vpack.c.b16 %v2836, %v2832
    %v3197 = vpack.c.b16 %v2837, %v2833
    %v3198 = vpack.c.b16 %v2842, %v2838
    %v3199 = vpack.c.b16 %v2843, %v2839
    %v3200 = vpack.c.b16 %v2844, %v2840
    %v3201 = vpack.c.b16 %v2845, %v2841
    %v3202 = vpack.c.b16 %v2850, %v2846
    %v3203 = vpack.c.b16 %v2851, %v2847
    %v3204 = vpack.c.b16 %v2852, %v2848
    %v3205 = vpack.c.b16 %v2853, %v2849
    %v3206 = vpack.c.b16 %v2858, %v2854
    %v3207 = vpack.c.b16 %v2859, %v2855
    %v3208 = vpack.c.b16 %v2860, %v2856
    %v3209 = vpack.c.b16 %v2861, %v2857
    %v3210 = vpack.c.b16 %v2866, %v2862
    %v3211 = vpack.c.b16 %v2867, %v2863
    %v3212 = vpack.c.b16 %v2868, %v2864
    %v3213 = vpack.c.b16 %v2869, %v2865
    %v3214 = vpack.c.b16 %v2874, %v2870
    %v3215 = vpack.c.b16 %v2875, %v2871
    %v3216 = vpack.c.b16 %v2876, %v2872
    %v3217 = vpack.c.b16 %v2877, %v2873
    %v3218 = vpack.c.b16 %v2882, %v2878
    %v3219 = vpack.c.b16 %v2883, %v2879
    %v3220 = vpack.c.b16 %v2884, %v2880
    %v3221 = vpack.c.b16 %v2885, %v2881
    %v3222 = vpack.c.b16 %v2890, %v2886
    %v3223 = vpack.c.b16 %v2891, %v2887
    %v3224 = vpack.c.b16 %v2892, %v2888
    %v3225 = vpack.c.b16 %v2893, %v2889
    %v3226 = vpack.c.b16 %v2898, %v2894
    %v3227 = vpack.c.b16 %v2899, %v2895
    %v3228 = vpack.c.b16 %v2900, %v2896
    %v3229 = vpack.c.b16 %v2901, %v2897
    %v3230 = vpack.c.b16 %v2906, %v2902
    %v3231 = vpack.c.b16 %v2907, %v2903
    %v3232 = vpack.c.b16 %v2908, %v2904
    %v3233 = vpack.c.b16 %v2909, %v2905
    %v3234 = vpack.c.b16 %v2914, %v2910
    %v3235 = vpack.c.b16 %v2915, %v2911
    %v3236 = vpack.c.b16 %v2916, %v2912
    %v3237 = vpack.c.b16 %v2917, %v2913
    %v3238 = vpack.c.b16 %v2922, %v2918
    %v3239 = vpack.c.b16 %v2923, %v2919
    %v3240 = vpack.c.b16 %v2924, %v2920
    %v3241 = vpack.c.b16 %v2925, %v2921
    %v3242 = vpack.c.b16 %v2930, %v2926
    %v3243 = vpack.c.b16 %v2931, %v2927
    %v3244 = vpack.c.b16 %v2932, %v2928
    %v3245 = vpack.c.b16 %v2933, %v2929
    %v3246 = vpack.c.b16 %v2938, %v2934
    %v3247 = vpack.c.b16 %v2939, %v2935
    %v3248 = vpack.c.b16 %v2940, %v2936
    %v3249 = vpack.c.b16 %v2941, %v2937
    %v3250 = vpack.c.b16 %v2946, %v2942
    %v3251 = vpack.c.b16 %v2947, %v2943
    %v3252 = vpack.c.b16 %v2948, %v2944
    %v3253 = vpack.c.b16 %v2949, %v2945
    %v3254 = vpack.c.b16 %v2954, %v2950
    %v3255 = vpack.c.b16 %v2955, %v2951
    %v3256 = vpack.c.b16 %v2956, %v2952
    %v3257 = vpack.c.b16 %v2957, %v2953
    %v3258 = vpack.c.b16 %v2962, %v2958
    %v3259 = vpack.c.b16 %v2963, %v2959
    %v3260 = vpack.c.b16 %v2964, %v2960
    %v3261 = vpack.c.b16 %v2965, %v2961
    %v3262 = vpack.c.b16 %v2970, %v2966
    %v3263 = vpack.c.b16 %v2971, %v2967
    %v3264 = vpack.c.b16 %v2972, %v2968
    %v3265 = vpack.c.b16 %v2973, %v2969
    %v3266 = vpack.c.b16 %v2978, %v2974
    %v3267 = vpack.c.b16 %v2979, %v2975
    %v3268 = vpack.c.b16 %v2980, %v2976
    %v3269 = vpack.c.b16 %v2981, %v2977
    %v3270 = vpack.c.b16 %v2986, %v2982
    %v3271 = vpack.c.b16 %v2987, %v2983
    %v3272 = vpack.c.b16 %v2988, %v2984
    %v3273 = vpack.c.b16 %v2989, %v2985
    %v3274 = vpack.c.b16 %v2994, %v2990
    %v3275 = vpack.c.b16 %v2995, %v2991
    %v3276 = vpack.c.b16 %v2996, %v2992
    %v3277 = vpack.c.b16 %v2997, %v2993
    %v3278 = vpack.c.b16 %v3002, %v2998
    %v3279 = vpack.c.b16 %v3003, %v2999
    %v3280 = vpack.c.b16 %v3004, %v3000
    %v3281 = vpack.c.b16 %v3005, %v3001
    %v3282 = vpack.c.b16 %v3010, %v3006
    %v3283 = vpack.c.b16 %v3011, %v3007
    %v3284 = vpack.c.b16 %v3012, %v3008
    %v3285 = vpack.c.b16 %v3013, %v3009
    %v3286 = vpack.c.b16 %v3018, %v3014
    %v3287 = vpack.c.b16 %v3019, %v3015
    %v3288 = vpack.c.b16 %v3020, %v3016
    %v3289 = vpack.c.b16 %v3021, %v3017
    %v3290 = vpack.c.b16 %v3026, %v3022
    %v3291 = vpack.c.b16 %v3027, %v3023
    %v3292 = vpack.c.b16 %v3028, %v3024
    %v3293 = vpack.c.b16 %v3029, %v3025
    %v3294 = vpack.c.b16 %v3034, %v3030
    %v3295 = vpack.c.b16 %v3035, %v3031
    %v3296 = vpack.c.b16 %v3036, %v3032
    %v3297 = vpack.c.b16 %v3037, %v3033
    %v3298 = vpack.c.b16 %v3042, %v3038
    %v3299 = vpack.c.b16 %v3043, %v3039
    %v3300 = vpack.c.b16 %v3044, %v3040
    %v3301 = vpack.c.b16 %v3045, %v3041
    %3558 = vmatprep.subr.bf16.mxu0 %v3047
    %3559 = vmatpush1.bf16.msra.mxu0 %v3046
    %3560 = vmatprep.subr.bf16.mxu0 %v3051
    %3561 = vmatpush1.bf16.msra.mxu0 %v3050
    %3562 = vmatprep.subr.bf16.mxu0 %v3055
    %3563 = vmatpush1.bf16.msra.mxu0 %v3054
    %3564 = vmatprep.subr.bf16.mxu0 %v3059
    %3565 = vmatpush1.bf16.msra.mxu0 %v3058
    %3566 = vmatprep.subr.bf16.mxu0 %v3063
    %3567 = vmatpush1.bf16.msra.mxu0 %v3062
    %3568 = vmatprep.subr.bf16.mxu0 %v3067
    %3569 = vmatpush1.bf16.msra.mxu0 %v3066
    %3570 = vmatprep.subr.bf16.mxu0 %v3071
    %3571 = vmatpush1.bf16.msra.mxu0 %v3070
    %3572 = vmatprep.subr.bf16.mxu0 %v3075
    %3573 = vmatpush1.bf16.msra.mxu0 %v3074
    %3574 = vmatprep.subr.bf16.mxu0 %v3079
    %3575 = vmatpush1.bf16.msra.mxu0 %v3078
    %3576 = vmatprep.subr.bf16.mxu0 %v3083
    %3577 = vmatpush1.bf16.msra.mxu0 %v3082
    %3578 = vmatprep.subr.bf16.mxu0 %v3087
    %3579 = vmatpush1.bf16.msra.mxu0 %v3086
    %3580 = vmatprep.subr.bf16.mxu0 %v3091
    %3581 = vmatpush1.bf16.msra.mxu0 %v3090
    %3582 = vmatprep.subr.bf16.mxu0 %v3095
    %3583 = vmatpush1.bf16.msra.mxu0 %v3094
    %3584 = vmatprep.subr.bf16.mxu0 %v3099
    %3585 = vmatpush1.bf16.msra.mxu0 %v3098
    %3586 = vmatprep.subr.bf16.mxu0 %v3103
    %3587 = vmatpush1.bf16.msra.mxu0 %v3102
    %3588 = vmatprep.subr.bf16.mxu0 %v3107
    %3589 = vmatpush1.bf16.msra.mxu0 %v3106
    %3590 = vmatprep.mubr.bf16.mxu0 %v1937
    %3591 = vmatmul.mubr.bf16.gmra.mrb[0].mxu0 %v1936
    %v3592 = vpop.f32.mrb[0].mxu0
    %v3593 = vadd.f32 %v2261, %v3592
    %v3594 = vpop.f32.mrb[0].mxu0
    %v3595 = vadd.f32 %v2265, %v3594
    %v3596 = vpop.f32.mrb[0].mxu0
    %v3597 = vadd.f32 %v2261, %v3596
    %v3598 = vpop.f32.mrb[0].mxu0
    %v3599 = vadd.f32 %v2265, %v3598
    %3600 = vmatprep.mubr.bf16.mxu0 %v1945
    %3601 = vmatmul.mubr.bf16.gmra.mrb[0].mxu0 %v1944
    %v3602 = vpop.f32.mrb[0].mxu0
    %v3603 = vadd.f32 %v2261, %v3602
    %v3604 = vpop.f32.mrb[0].mxu0
    %v3605 = vadd.f32 %v2265, %v3604
    %v3606 = vpop.f32.mrb[0].mxu0
    %v3607 = vadd.f32 %v2261, %v3606
    %v3608 = vpop.f32.mrb[0].mxu0
    %v3609 = vadd.f32 %v2265, %v3608
    %3610 = vmatprep.mubr.bf16.mxu0 %v1953
    %3611 = vmatmul.mubr.bf16.gmra.mrb[0].mxu0 %v1952
    %v3612 = vpop.f32.mrb[0].mxu0
    %v3613 = vadd.f32 %v2261, %v3612
    %v3614 = vpop.f32.mrb[0].mxu0
    %v3615 = vadd.f32 %v2265, %v3614
    %v3616 = vpop.f32.mrb[0].mxu0
    %v3617 = vadd.f32 %v2261, %v3616
    %v3618 = vpop.f32.mrb[0].mxu0
    %v3619 = vadd.f32 %v2265, %v3618
    %3620 = vmatprep.mubr.bf16.mxu0 %v1961
    %3621 = vmatmul.mubr.bf16.gmra.mrb[0].mxu0 %v1960
    %v3622 = vpop.f32.mrb[0].mxu0
    %v3623 = vadd.f32 %v2261, %v3622
    %v3624 = vpop.f32.mrb[0].mxu0
    %v3625 = vadd.f32 %v2265, %v3624
    %v3626 = vpop.f32.mrb[0].mxu0
    %v3627 = vadd.f32 %v2261, %v3626
    %v3628 = vpop.f32.mrb[0].mxu0
    %v3629 = vadd.f32 %v2265, %v3628
    %3630 = vmatprep.mubr.bf16.mxu0 %v1969
    %3631 = vmatmul.mubr.bf16.gmra.mrb[0].mxu0 %v1968
    %v3632 = vpop.f32.mrb[0].mxu0
    %v3633 = vadd.f32 %v2261, %v3632
    %v3634 = vpop.f32.mrb[0].mxu0
    %v3635 = vadd.f32 %v2265, %v3634
    %v3636 = vpop.f32.mrb[0].mxu0
    %v3637 = vadd.f32 %v2261, %v3636
    %v3638 = vpop.f32.mrb[0].mxu0
    %v3639 = vadd.f32 %v2265, %v3638
    %3640 = vmatprep.mubr.bf16.mxu0 %v1977
    %3641 = vmatmul.mubr.bf16.gmra.mrb[0].mxu0 %v1976
    %v3642 = vpop.f32.mrb[0].mxu0
    %v3643 = vadd.f32 %v2261, %v3642
    %v3644 = vpop.f32.mrb[0].mxu0
    %v3645 = vadd.f32 %v2265, %v3644
    %v3646 = vpop.f32.mrb[0].mxu0
    %v3647 = vadd.f32 %v2261, %v3646
    %v3648 = vpop.f32.mrb[0].mxu0
    %v3649 = vadd.f32 %v2265, %v3648
    %3650 = vmatprep.mubr.bf16.mxu0 %v1985
    %3651 = vmatmul.mubr.bf16.gmra.mrb[0].mxu0 %v1984
    %v3652 = vpop.f32.mrb[0].mxu0
    %v3653 = vadd.f32 %v2261, %v3652
    %v3654 = vpop.f32.mrb[0].mxu0
    %v3655 = vadd.f32 %v2265, %v3654
    %v3656 = vpop.f32.mrb[0].mxu0
    %v3657 = vadd.f32 %v2261, %v3656
    %v3658 = vpop.f32.mrb[0].mxu0
    %v3659 = vadd.f32 %v2265, %v3658
    %3660 = vmatprep.mubr.bf16.mxu0 %v1993
    %3661 = vmatmul.mubr.bf16.gmra.mrb[0].mxu0 %v1992
    %v3662 = vpop.f32.mrb[0].mxu0
    %v3663 = vadd.f32 %v2261, %v3662
    %v3664 = vpop.f32.mrb[0].mxu0
    %v3665 = vadd.f32 %v2265, %v3664
    %v3666 = vpop.f32.mrb[0].mxu0
    %v3667 = vadd.f32 %v2261, %v3666
    %v3668 = vpop.f32.mrb[0].mxu0
    %v3669 = vadd.f32 %v2265, %v3668
    %3670 = vdwg.mxu0
    %3671 = vmatprep.subr.bf16.mxu0 %v3111
    %3672 = vmatpush1.bf16.msra.mxu0 %v3110
    %3673 = vmatprep.subr.bf16.mxu0 %v3115
    %3674 = vmatpush1.bf16.msra.mxu0 %v3114
    %3675 = vmatprep.subr.bf16.mxu0 %v3119
    %3676 = vmatpush1.bf16.msra.mxu0 %v3118
    %3677 = vmatprep.subr.bf16.mxu0 %v3123
    %3678 = vmatpush1.bf16.msra.mxu0 %v3122
    %3679 = vmatprep.subr.bf16.mxu0 %v3127
    %3680 = vmatpush1.bf16.msra.mxu0 %v3126
    %3681 = vmatprep.subr.bf16.mxu0 %v3131
    %3682 = vmatpush1.bf16.msra.mxu0 %v3130
    %3683 = vmatprep.subr.bf16.mxu0 %v3135
    %3684 = vmatpush1.bf16.msra.mxu0 %v3134
    %3685 = vmatprep.subr.bf16.mxu0 %v3139
    %3686 = vmatpush1.bf16.msra.mxu0 %v3138
    %3687 = vmatprep.subr.bf16.mxu0 %v3143
    %3688 = vmatpush1.bf16.msra.mxu0 %v3142
    %3689 = vmatprep.subr.bf16.mxu0 %v3147
    %3690 = vmatpush1.bf16.msra.mxu0 %v3146
    %3691 = vmatprep.subr.bf16.mxu0 %v3151
    %3692 = vmatpush1.bf16.msra.mxu0 %v3150
    %3693 = vmatprep.subr.bf16.mxu0 %v3155
    %3694 = vmatpush1.bf16.msra.mxu0 %v3154
    %3695 = vmatprep.subr.bf16.mxu0 %v3159
    %3696 = vmatpush1.bf16.msra.mxu0 %v3158
    %3697 = vmatprep.subr.bf16.mxu0 %v3163
    %3698 = vmatpush1.bf16.msra.mxu0 %v3162
    %3699 = vmatprep.subr.bf16.mxu0 %v3167
    %3700 = vmatpush1.bf16.msra.mxu0 %v3166
    %3701 = vmatprep.subr.bf16.mxu0 %v3171
    %3702 = vmatpush1.bf16.msra.mxu0 %v3170
    %3703 = vmatprep.mubr.bf16.mxu0 %v1939
    %3704 = vmatmul.mubr.bf16.gmra.mrb[0].mxu0 %v1938
    %v3705 = vpop.f32.mrb[0].mxu0
    %v3706 = vadd.f32 %v3593, %v3705
    %v3707 = vpop.f32.mrb[0].mxu0
    %v3708 = vadd.f32 %v3595, %v3707
    %v3709 = vpop.f32.mrb[0].mxu0
    %v3710 = vadd.f32 %v3597, %v3709
    %v3711 = vpop.f32.mrb[0].mxu0
    %v3712 = vadd.f32 %v3599, %v3711
    %3713 = vmatprep.mubr.bf16.mxu0 %v1947
    %3714 = vmatmul.mubr.bf16.gmra.mrb[0].mxu0 %v1946
    %v3715 = vpop.f32.mrb[0].mxu0
    %v3716 = vadd.f32 %v3603, %v3715
    %v3717 = vpop.f32.mrb[0].mxu0
    %v3718 = vadd.f32 %v3605, %v3717
    %v3719 = vpop.f32.mrb[0].mxu0
    %v3720 = vadd.f32 %v3607, %v3719
    %v3721 = vpop.f32.mrb[0].mxu0
    %v3722 = vadd.f32 %v3609, %v3721
    %3723 = vmatprep.mubr.bf16.mxu0 %v1955
    %3724 = vmatmul.mubr.bf16.gmra.mrb[0].mxu0 %v1954
    %v3725 = vpop.f32.mrb[0].mxu0
    %v3726 = vadd.f32 %v3613, %v3725
    %v3727 = vpop.f32.mrb[0].mxu0
    %v3728 = vadd.f32 %v3615, %v3727
    %v3729 = vpop.f32.mrb[0].mxu0
    %v3730 = vadd.f32 %v3617, %v3729
    %v3731 = vpop.f32.mrb[0].mxu0
    %v3732 = vadd.f32 %v3619, %v3731
    %3733 = vmatprep.mubr.bf16.mxu0 %v1963
    %3734 = vmatmul.mubr.bf16.gmra.mrb[0].mxu0 %v1962
    %v3735 = vpop.f32.mrb[0].mxu0
    %v3736 = vadd.f32 %v3623, %v3735
    %v3737 = vpop.f32.mrb[0].mxu0
    %v3738 = vadd.f32 %v3625, %v3737
    %v3739 = vpop.f32.mrb[0].mxu0
    %v3740 = vadd.f32 %v3627, %v3739
    %v3741 = vpop.f32.mrb[0].mxu0
    %v3742 = vadd.f32 %v3629, %v3741
    %3743 = vmatprep.mubr.bf16.mxu0 %v1971
    %3744 = vmatmul.mubr.bf16.gmra.mrb[0].mxu0 %v1970
    %v3745 = vpop.f32.mrb[0].mxu0
    %v3746 = vadd.f32 %v3633, %v3745
    %v3747 = vpop.f32.mrb[0].mxu0
    %v3748 = vadd.f32 %v3635, %v3747
    %v3749 = vpop.f32.mrb[0].mxu0
    %v3750 = vadd.f32 %v3637, %v3749
    %v3751 = vpop.f32.mrb[0].mxu0
    %v3752 = vadd.f32 %v3639, %v3751
    %3753 = vmatprep.mubr.bf16.mxu0 %v1979
    %3754 = vmatmul.mubr.bf16.gmra.mrb[0].mxu0 %v1978
    %v3755 = vpop.f32.mrb[0].mxu0
    %v3756 = vadd.f32 %v3643, %v3755
    %v3757 = vpop.f32.mrb[0].mxu0
    %v3758 = vadd.f32 %v3645, %v3757
    %v3759 = vpop.f32.mrb[0].mxu0
    %v3760 = vadd.f32 %v3647, %v3759
    %v3761 = vpop.f32.mrb[0].mxu0
    %v3762 = vadd.f32 %v3649, %v3761
    %3763 = vmatprep.mubr.bf16.mxu0 %v1987
    %3764 = vmatmul.mubr.bf16.gmra.mrb[0].mxu0 %v1986
    %v3765 = vpop.f32.mrb[0].mxu0
    %v3766 = vadd.f32 %v3653, %v3765
    %v3767 = vpop.f32.mrb[0].mxu0
    %v3768 = vadd.f32 %v3655, %v3767
    %v3769 = vpop.f32.mrb[0].mxu0
    %v3770 = vadd.f32 %v3657, %v3769
    %v3771 = vpop.f32.mrb[0].mxu0
    %v3772 = vadd.f32 %v3659, %v3771
    %3773 = vmatprep.mubr.bf16.mxu0 %v1995
    %3774 = vmatmul.mubr.bf16.gmra.mrb[0].mxu0 %v1994
    %v3775 = vpop.f32.mrb[0].mxu0
    %v3776 = vadd.f32 %v3663, %v3775
    %v3777 = vpop.f32.mrb[0].mxu0
    %v3778 = vadd.f32 %v3665, %v3777
    %v3779 = vpop.f32.mrb[0].mxu0
    %v3780 = vadd.f32 %v3667, %v3779
    %v3781 = vpop.f32.mrb[0].mxu0
    %v3782 = vadd.f32 %v3669, %v3781
    %3783 = vdwg.mxu0
    %3784 = vmatprep.subr.bf16.mxu0 %v3175
    %3785 = vmatpush1.bf16.msra.mxu0 %v3174
    %3786 = vmatprep.subr.bf16.mxu0 %v3179
    %3787 = vmatpush1.bf16.msra.mxu0 %v3178
    %3788 = vmatprep.subr.bf16.mxu0 %v3183
    %3789 = vmatpush1.bf16.msra.mxu0 %v3182
    %3790 = vmatprep.subr.bf16.mxu0 %v3187
    %3791 = vmatpush1.bf16.msra.mxu0 %v3186
    %3792 = vmatprep.subr.bf16.mxu0 %v3191
    %3793 = vmatpush1.bf16.msra.mxu0 %v3190
    %3794 = vmatprep.subr.bf16.mxu0 %v3195
    %3795 = vmatpush1.bf16.msra.mxu0 %v3194
    %3796 = vmatprep.subr.bf16.mxu0 %v3199
    %3797 = vmatpush1.bf16.msra.mxu0 %v3198
    %3798 = vmatprep.subr.bf16.mxu0 %v3203
    %3799 = vmatpush1.bf16.msra.mxu0 %v3202
    %3800 = vmatprep.subr.bf16.mxu0 %v3207
    %3801 = vmatpush1.bf16.msra.mxu0 %v3206
    %3802 = vmatprep.subr.bf16.mxu0 %v3211
    %3803 = vmatpush1.bf16.msra.mxu0 %v3210
    %3804 = vmatprep.subr.bf16.mxu0 %v3215
    %3805 = vmatpush1.bf16.msra.mxu0 %v3214
    %3806 = vmatprep.subr.bf16.mxu0 %v3219
    %3807 = vmatpush1.bf16.msra.mxu0 %v3218
    %3808 = vmatprep.subr.bf16.mxu0 %v3223
    %3809 = vmatpush1.bf16.msra.mxu0 %v3222
    %3810 = vmatprep.subr.bf16.mxu0 %v3227
    %3811 = vmatpush1.bf16.msra.mxu0 %v3226
    %3812 = vmatprep.subr.bf16.mxu0 %v3231
    %3813 = vmatpush1.bf16.msra.mxu0 %v3230
    %3814 = vmatprep.subr.bf16.mxu0 %v3235
    %3815 = vmatpush1.bf16.msra.mxu0 %v3234
    %3816 = vmatprep.mubr.bf16.mxu0 %v1941
    %3817 = vmatmul.mubr.bf16.gmra.mrb[0].mxu0 %v1940
    %v3818 = vpop.f32.mrb[0].mxu0
    %v3819 = vadd.f32 %v3706, %v3818
    %v3820 = vpop.f32.mrb[0].mxu0
    %v3821 = vadd.f32 %v3708, %v3820
    %v3822 = vpop.f32.mrb[0].mxu0
    %v3823 = vadd.f32 %v3710, %v3822
    %v3824 = vpop.f32.mrb[0].mxu0
    %v3825 = vadd.f32 %v3712, %v3824
    %3826 = vmatprep.mubr.bf16.mxu0 %v1949
    %3827 = vmatmul.mubr.bf16.gmra.mrb[0].mxu0 %v1948
    %v3828 = vpop.f32.mrb[0].mxu0
    %v3829 = vadd.f32 %v3716, %v3828
    %v3830 = vpop.f32.mrb[0].mxu0
    %v3831 = vadd.f32 %v3718, %v3830
    %v3832 = vpop.f32.mrb[0].mxu0
    %v3833 = vadd.f32 %v3720, %v3832
    %v3834 = vpop.f32.mrb[0].mxu0
    %v3835 = vadd.f32 %v3722, %v3834
    %3836 = vmatprep.mubr.bf16.mxu0 %v1957
    %3837 = vmatmul.mubr.bf16.gmra.mrb[0].mxu0 %v1956
    %v3838 = vpop.f32.mrb[0].mxu0
    %v3839 = vadd.f32 %v3726, %v3838
    %v3840 = vpop.f32.mrb[0].mxu0
    %v3841 = vadd.f32 %v3728, %v3840
    %v3842 = vpop.f32.mrb[0].mxu0
    %v3843 = vadd.f32 %v3730, %v3842
    %v3844 = vpop.f32.mrb[0].mxu0
    %v3845 = vadd.f32 %v3732, %v3844
    %3846 = vmatprep.mubr.bf16.mxu0 %v1965
    %3847 = vmatmul.mubr.bf16.gmra.mrb[0].mxu0 %v1964
    %v3848 = vpop.f32.mrb[0].mxu0
    %v3849 = vadd.f32 %v3736, %v3848
    %v3850 = vpop.f32.mrb[0].mxu0
    %v3851 = vadd.f32 %v3738, %v3850
    %v3852 = vpop.f32.mrb[0].mxu0
    %v3853 = vadd.f32 %v3740, %v3852
    %v3854 = vpop.f32.mrb[0].mxu0
    %v3855 = vadd.f32 %v3742, %v3854
    %3856 = vmatprep.mubr.bf16.mxu0 %v1973
    %3857 = vmatmul.mubr.bf16.gmra.mrb[0].mxu0 %v1972
    %v3858 = vpop.f32.mrb[0].mxu0
    %v3859 = vadd.f32 %v3746, %v3858
    %v3860 = vpop.f32.mrb[0].mxu0
    %v3861 = vadd.f32 %v3748, %v3860
    %v3862 = vpop.f32.mrb[0].mxu0
    %v3863 = vadd.f32 %v3750, %v3862
    %v3864 = vpop.f32.mrb[0].mxu0
    %v3865 = vadd.f32 %v3752, %v3864
    %3866 = vmatprep.mubr.bf16.mxu0 %v1981
    %3867 = vmatmul.mubr.bf16.gmra.mrb[0].mxu0 %v1980
    %v3868 = vpop.f32.mrb[0].mxu0
    %v3869 = vadd.f32 %v3756, %v3868
    %v3870 = vpop.f32.mrb[0].mxu0
    %v3871 = vadd.f32 %v3758, %v3870
    %v3872 = vpop.f32.mrb[0].mxu0
    %v3873 = vadd.f32 %v3760, %v3872
    %v3874 = vpop.f32.mrb[0].mxu0
    %v3875 = vadd.f32 %v3762, %v3874
    %3876 = vmatprep.mubr.bf16.mxu0 %v1989
    %3877 = vmatmul.mubr.bf16.gmra.mrb[0].mxu0 %v1988
    %v3878 = vpop.f32.mrb[0].mxu0
    %v3879 = vadd.f32 %v3766, %v3878
    %v3880 = vpop.f32.mrb[0].mxu0
    %v3881 = vadd.f32 %v3768, %v3880
    %v3882 = vpop.f32.mrb[0].mxu0
    %v3883 = vadd.f32 %v3770, %v3882
    %v3884 = vpop.f32.mrb[0].mxu0
    %v3885 = vadd.f32 %v3772, %v3884
    %3886 = vmatprep.mubr.bf16.mxu0 %v1997
    %3887 = vmatmul.mubr.bf16.gmra.mrb[0].mxu0 %v1996
    %v3888 = vpop.f32.mrb[0].mxu0
    %v3889 = vadd.f32 %v3776, %v3888
    %v3890 = vpop.f32.mrb[0].mxu0
    %v3891 = vadd.f32 %v3778, %v3890
    %v3892 = vpop.f32.mrb[0].mxu0
    %v3893 = vadd.f32 %v3780, %v3892
    %v3894 = vpop.f32.mrb[0].mxu0
    %v3895 = vadd.f32 %v3782, %v3894
    %3896 = vdwg.mxu0
    %3897 = vmatprep.subr.bf16.mxu0 %v3239
    %3898 = vmatpush1.bf16.msra.mxu0 %v3238
    %3899 = vmatprep.subr.bf16.mxu0 %v3243
    %3900 = vmatpush1.bf16.msra.mxu0 %v3242
    %3901 = vmatprep.subr.bf16.mxu0 %v3247
    %3902 = vmatpush1.bf16.msra.mxu0 %v3246
    %3903 = vmatprep.subr.bf16.mxu0 %v3251
    %3904 = vmatpush1.bf16.msra.mxu0 %v3250
    %3905 = vmatprep.subr.bf16.mxu0 %v3255
    %3906 = vmatpush1.bf16.msra.mxu0 %v3254
    %3907 = vmatprep.subr.bf16.mxu0 %v3259
    %3908 = vmatpush1.bf16.msra.mxu0 %v3258
    %3909 = vmatprep.subr.bf16.mxu0 %v3263
    %3910 = vmatpush1.bf16.msra.mxu0 %v3262
    %3911 = vmatprep.subr.bf16.mxu0 %v3267
    %3912 = vmatpush1.bf16.msra.mxu0 %v3266
    %3913 = vmatprep.subr.bf16.mxu0 %v3271
    %3914 = vmatpush1.bf16.msra.mxu0 %v3270
    %3915 = vmatprep.subr.bf16.mxu0 %v3275
    %3916 = vmatpush1.bf16.msra.mxu0 %v3274
    %3917 = vmatprep.subr.bf16.mxu0 %v3279
    %3918 = vmatpush1.bf16.msra.mxu0 %v3278
    %3919 = vmatprep.subr.bf16.mxu0 %v3283
    %3920 = vmatpush1.bf16.msra.mxu0 %v3282
    %3921 = vmatprep.subr.bf16.mxu0 %v3287
    %3922 = vmatpush1.bf16.msra.mxu0 %v3286
    %3923 = vmatprep.subr.bf16.mxu0 %v3291
    %3924 = vmatpush1.bf16.msra.mxu0 %v3290
    %3925 = vmatprep.subr.bf16.mxu0 %v3295
    %3926 = vmatpush1.bf16.msra.mxu0 %v3294
    %3927 = vmatprep.subr.bf16.mxu0 %v3299
    %3928 = vmatpush1.bf16.msra.mxu0 %v3298
    %3929 = vmatprep.mubr.bf16.mxu0 %v1943
    %3930 = vmatmul.mubr.bf16.gmra.mrb[0].mxu0 %v1942
    %v3931 = vpop.f32.mrb[0].mxu0
    %v3932 = vadd.f32 %v3819, %v3931
    %v3933 = vpop.f32.mrb[0].mxu0
    %v3934 = vadd.f32 %v3821, %v3933
    %v3935 = vpop.f32.mrb[0].mxu0
    %v3936 = vadd.f32 %v3823, %v3935
    %v3937 = vpop.f32.mrb[0].mxu0
    %v3938 = vadd.f32 %v3825, %v3937
    %3939 = vmatprep.mubr.bf16.mxu0 %v1951
    %3940 = vmatmul.mubr.bf16.gmra.mrb[0].mxu0 %v1950
    %v3941 = vpop.f32.mrb[0].mxu0
    %v3942 = vadd.f32 %v3829, %v3941
    %v3943 = vpop.f32.mrb[0].mxu0
    %v3944 = vadd.f32 %v3831, %v3943
    %v3945 = vpop.f32.mrb[0].mxu0
    %v3946 = vadd.f32 %v3833, %v3945
    %v3947 = vpop.f32.mrb[0].mxu0
    %v3948 = vadd.f32 %v3835, %v3947
    %3949 = vmatprep.mubr.bf16.mxu0 %v1959
    %3950 = vmatmul.mubr.bf16.gmra.mrb[0].mxu0 %v1958
    %v3951 = vpop.f32.mrb[0].mxu0
    %v3952 = vadd.f32 %v3839, %v3951
    %v3953 = vpop.f32.mrb[0].mxu0
    %v3954 = vadd.f32 %v3841, %v3953
    %v3955 = vpop.f32.mrb[0].mxu0
    %v3956 = vadd.f32 %v3843, %v3955
    %v3957 = vpop.f32.mrb[0].mxu0
    %v3958 = vadd.f32 %v3845, %v3957
    %3959 = vmatprep.mubr.bf16.mxu0 %v1967
    %3960 = vmatmul.mubr.bf16.gmra.mrb[0].mxu0 %v1966
    %v3961 = vpop.f32.mrb[0].mxu0
    %v3962 = vadd.f32 %v3849, %v3961
    %v3963 = vpop.f32.mrb[0].mxu0
    %v3964 = vadd.f32 %v3851, %v3963
    %v3965 = vpop.f32.mrb[0].mxu0
    %v3966 = vadd.f32 %v3853, %v3965
    %v3967 = vpop.f32.mrb[0].mxu0
    %v3968 = vadd.f32 %v3855, %v3967
    %3969 = vmatprep.mubr.bf16.mxu0 %v1975
    %3970 = vmatmul.mubr.bf16.gmra.mrb[0].mxu0 %v1974
    %v3971 = vpop.f32.mrb[0].mxu0
    %v3972 = vadd.f32 %v3859, %v3971
    %v3973 = vpop.f32.mrb[0].mxu0
    %v3974 = vadd.f32 %v3861, %v3973
    %v3975 = vpop.f32.mrb[0].mxu0
    %v3976 = vadd.f32 %v3863, %v3975
    %v3977 = vpop.f32.mrb[0].mxu0
    %v3978 = vadd.f32 %v3865, %v3977
    %3979 = vmatprep.mubr.bf16.mxu0 %v1983
    %3980 = vmatmul.mubr.bf16.gmra.mrb[0].mxu0 %v1982
    %v3981 = vpop.f32.mrb[0].mxu0
    %v3982 = vadd.f32 %v3869, %v3981
    %v3983 = vpop.f32.mrb[0].mxu0
    %v3984 = vadd.f32 %v3871, %v3983
    %v3985 = vpop.f32.mrb[0].mxu0
    %v3986 = vadd.f32 %v3873, %v3985
    %v3987 = vpop.f32.mrb[0].mxu0
    %v3988 = vadd.f32 %v3875, %v3987
    %3989 = vmatprep.mubr.bf16.mxu0 %v1991
    %3990 = vmatmul.mubr.bf16.gmra.mrb[0].mxu0 %v1990
    %v3991 = vpop.f32.mrb[0].mxu0
    %v3992 = vadd.f32 %v3879, %v3991
    %v3993 = vpop.f32.mrb[0].mxu0
    %v3994 = vadd.f32 %v3881, %v3993
    %v3995 = vpop.f32.mrb[0].mxu0
    %v3996 = vadd.f32 %v3883, %v3995
    %v3997 = vpop.f32.mrb[0].mxu0
    %v3998 = vadd.f32 %v3885, %v3997
    %3999 = vmatprep.mubr.bf16.mxu0 %v1999
    %4000 = vmatmul.mubr.bf16.gmra.mrb[0].mxu0 %v1998
    %v4001 = vpop.f32.mrb[0].mxu0
    %v4002 = vadd.f32 %v3889, %v4001
    %v4003 = vpop.f32.mrb[0].mxu0
    %v4004 = vadd.f32 %v3891, %v4003
    %v4005 = vpop.f32.mrb[0].mxu0
    %v4006 = vadd.f32 %v3893, %v4005
    %v4007 = vpop.f32.mrb[0].mxu0
    %v4008 = vadd.f32 %v3895, %v4007
    %4009 = vdwg.mxu0
    %4010 = vmatprep.subr.bf16.mxu0 %v3049
    %4011 = vmatpush1.bf16.msra.mxu0 %v3048
    %4012 = vmatprep.subr.bf16.mxu0 %v3053
    %4013 = vmatpush1.bf16.msra.mxu0 %v3052
    %4014 = vmatprep.subr.bf16.mxu0 %v3057
    %4015 = vmatpush1.bf16.msra.mxu0 %v3056
    %4016 = vmatprep.subr.bf16.mxu0 %v3061
    %4017 = vmatpush1.bf16.msra.mxu0 %v3060
    %4018 = vmatprep.subr.bf16.mxu0 %v3065
    %4019 = vmatpush1.bf16.msra.mxu0 %v3064
    %4020 = vmatprep.subr.bf16.mxu0 %v3069
    %4021 = vmatpush1.bf16.msra.mxu0 %v3068
    %4022 = vmatprep.subr.bf16.mxu0 %v3073
    %4023 = vmatpush1.bf16.msra.mxu0 %v3072
    %4024 = vmatprep.subr.bf16.mxu0 %v3077
    %4025 = vmatpush1.bf16.msra.mxu0 %v3076
    %4026 = vmatprep.subr.bf16.mxu0 %v3081
    %4027 = vmatpush1.bf16.msra.mxu0 %v3080
    %4028 = vmatprep.subr.bf16.mxu0 %v3085
    %4029 = vmatpush1.bf16.msra.mxu0 %v3084
    %4030 = vmatprep.subr.bf16.mxu0 %v3089
    %4031 = vmatpush1.bf16.msra.mxu0 %v3088
    %4032 = vmatprep.subr.bf16.mxu0 %v3093
    %4033 = vmatpush1.bf16.msra.mxu0 %v3092
    %4034 = vmatprep.subr.bf16.mxu0 %v3097
    %4035 = vmatpush1.bf16.msra.mxu0 %v3096
    %4036 = vmatprep.subr.bf16.mxu0 %v3101
    %4037 = vmatpush1.bf16.msra.mxu0 %v3100
    %4038 = vmatprep.subr.bf16.mxu0 %v3105
    %4039 = vmatpush1.bf16.msra.mxu0 %v3104
    %4040 = vmatprep.subr.bf16.mxu0 %v3109
    %4041 = vmatpush1.bf16.msra.mxu0 %v3108
    %4042 = vmatprep.mubr.bf16.mxu0 %v1937
    %4043 = vmatmul.mubr.bf16.gmra.mrb[0].mxu0 %v1936
    %v4044 = vpop.f32.mrb[0].mxu0
    %v4045 = vadd.f32 %v2269, %v4044
    %v4046 = vpop.f32.mrb[0].mxu0
    %v4047 = vadd.f32 %v2273, %v4046
    %v4048 = vpop.f32.mrb[0].mxu0
    %v4049 = vadd.f32 %v2269, %v4048
    %v4050 = vpop.f32.mrb[0].mxu0
    %v4051 = vadd.f32 %v2273, %v4050
    %4052 = vmatprep.mubr.bf16.mxu0 %v1945
    %4053 = vmatmul.mubr.bf16.gmra.mrb[0].mxu0 %v1944
    %v4054 = vpop.f32.mrb[0].mxu0
    %v4055 = vadd.f32 %v2269, %v4054
    %v4056 = vpop.f32.mrb[0].mxu0
    %v4057 = vadd.f32 %v2273, %v4056
    %v4058 = vpop.f32.mrb[0].mxu0
    %v4059 = vadd.f32 %v2269, %v4058
    %v4060 = vpop.f32.mrb[0].mxu0
    %v4061 = vadd.f32 %v2273, %v4060
    %4062 = vmatprep.mubr.bf16.mxu0 %v1953
    %4063 = vmatmul.mubr.bf16.gmra.mrb[0].mxu0 %v1952
    %v4064 = vpop.f32.mrb[0].mxu0
    %v4065 = vadd.f32 %v2269, %v4064
    %v4066 = vpop.f32.mrb[0].mxu0
    %v4067 = vadd.f32 %v2273, %v4066
    %v4068 = vpop.f32.mrb[0].mxu0
    %v4069 = vadd.f32 %v2269, %v4068
    %v4070 = vpop.f32.mrb[0].mxu0
    %v4071 = vadd.f32 %v2273, %v4070
    %4072 = vmatprep.mubr.bf16.mxu0 %v1961
    %4073 = vmatmul.mubr.bf16.gmra.mrb[0].mxu0 %v1960
    %v4074 = vpop.f32.mrb[0].mxu0
    %v4075 = vadd.f32 %v2269, %v4074
    %v4076 = vpop.f32.mrb[0].mxu0
    %v4077 = vadd.f32 %v2273, %v4076
    %v4078 = vpop.f32.mrb[0].mxu0
    %v4079 = vadd.f32 %v2269, %v4078
    %v4080 = vpop.f32.mrb[0].mxu0
    %v4081 = vadd.f32 %v2273, %v4080
    %4082 = vmatprep.mubr.bf16.mxu0 %v1969
    %4083 = vmatmul.mubr.bf16.gmra.mrb[0].mxu0 %v1968
    %v4084 = vpop.f32.mrb[0].mxu0
    %v4085 = vadd.f32 %v2269, %v4084
    %v4086 = vpop.f32.mrb[0].mxu0
    %v4087 = vadd.f32 %v2273, %v4086
    %v4088 = vpop.f32.mrb[0].mxu0
    %v4089 = vadd.f32 %v2269, %v4088
    %v4090 = vpop.f32.mrb[0].mxu0
    %v4091 = vadd.f32 %v2273, %v4090
    %4092 = vmatprep.mubr.bf16.mxu0 %v1977
    %4093 = vmatmul.mubr.bf16.gmra.mrb[0].mxu0 %v1976
    %v4094 = vpop.f32.mrb[0].mxu0
    %v4095 = vadd.f32 %v2269, %v4094
    %v4096 = vpop.f32.mrb[0].mxu0
    %v4097 = vadd.f32 %v2273, %v4096
    %v4098 = vpop.f32.mrb[0].mxu0
    %v4099 = vadd.f32 %v2269, %v4098
    %v4100 = vpop.f32.mrb[0].mxu0
    %v4101 = vadd.f32 %v2273, %v4100
    %4102 = vmatprep.mubr.bf16.mxu0 %v1985
    %4103 = vmatmul.mubr.bf16.gmra.mrb[0].mxu0 %v1984
    %v4104 = vpop.f32.mrb[0].mxu0
    %v4105 = vadd.f32 %v2269, %v4104
    %v4106 = vpop.f32.mrb[0].mxu0
    %v4107 = vadd.f32 %v2273, %v4106
    %v4108 = vpop.f32.mrb[0].mxu0
    %v4109 = vadd.f32 %v2269, %v4108
    %v4110 = vpop.f32.mrb[0].mxu0
    %v4111 = vadd.f32 %v2273, %v4110
    %4112 = vmatprep.mubr.bf16.mxu0 %v1993
    %4113 = vmatmul.mubr.bf16.gmra.mrb[0].mxu0 %v1992
    %v4114 = vpop.f32.mrb[0].mxu0
    %v4115 = vadd.f32 %v2269, %v4114
    %v4116 = vpop.f32.mrb[0].mxu0
    %v4117 = vadd.f32 %v2273, %v4116
    %v4118 = vpop.f32.mrb[0].mxu0
    %v4119 = vadd.f32 %v2269, %v4118
    %v4120 = vpop.f32.mrb[0].mxu0
    %v4121 = vadd.f32 %v2273, %v4120
    %4122 = vdwg.mxu0
    %4123 = vmatprep.subr.bf16.mxu0 %v3113
    %4124 = vmatpush1.bf16.msra.mxu0 %v3112
    %4125 = vmatprep.subr.bf16.mxu0 %v3117
    %4126 = vmatpush1.bf16.msra.mxu0 %v3116
    %4127 = vmatprep.subr.bf16.mxu0 %v3121
    %4128 = vmatpush1.bf16.msra.mxu0 %v3120
    %4129 = vmatprep.subr.bf16.mxu0 %v3125
    %4130 = vmatpush1.bf16.msra.mxu0 %v3124
    %4131 = vmatprep.subr.bf16.mxu0 %v3129
    %4132 = vmatpush1.bf16.msra.mxu0 %v3128
    %4133 = vmatprep.subr.bf16.mxu0 %v3133
    %4134 = vmatpush1.bf16.msra.mxu0 %v3132
    %4135 = vmatprep.subr.bf16.mxu0 %v3137
    %4136 = vmatpush1.bf16.msra.mxu0 %v3136
    %4137 = vmatprep.subr.bf16.mxu0 %v3141
    %4138 = vmatpush1.bf16.msra.mxu0 %v3140
    %4139 = vmatprep.subr.bf16.mxu0 %v3145
    %4140 = vmatpush1.bf16.msra.mxu0 %v3144
    %4141 = vmatprep.subr.bf16.mxu0 %v3149
    %4142 = vmatpush1.bf16.msra.mxu0 %v3148
    %4143 = vmatprep.subr.bf16.mxu0 %v3153
    %4144 = vmatpush1.bf16.msra.mxu0 %v3152
    %4145 = vmatprep.subr.bf16.mxu0 %v3157
    %4146 = vmatpush1.bf16.msra.mxu0 %v3156
    %4147 = vmatprep.subr.bf16.mxu0 %v3161
    %4148 = vmatpush1.bf16.msra.mxu0 %v3160
    %4149 = vmatprep.subr.bf16.mxu0 %v3165
    %4150 = vmatpush1.bf16.msra.mxu0 %v3164
    %4151 = vmatprep.subr.bf16.mxu0 %v3169
    %4152 = vmatpush1.bf16.msra.mxu0 %v3168
    %4153 = vmatprep.subr.bf16.mxu0 %v3173
    %4154 = vmatpush1.bf16.msra.mxu0 %v3172
    %4155 = vmatprep.mubr.bf16.mxu0 %v1939
    %4156 = vmatmul.mubr.bf16.gmra.mrb[0].mxu0 %v1938
    %v4157 = vpop.f32.mrb[0].mxu0
    %v4158 = vadd.f32 %v4045, %v4157
    %v4159 = vpop.f32.mrb[0].mxu0
    %v4160 = vadd.f32 %v4047, %v4159
    %v4161 = vpop.f32.mrb[0].mxu0
    %v4162 = vadd.f32 %v4049, %v4161
    %v4163 = vpop.f32.mrb[0].mxu0
    %v4164 = vadd.f32 %v4051, %v4163
    %4165 = vmatprep.mubr.bf16.mxu0 %v1947
    %4166 = vmatmul.mubr.bf16.gmra.mrb[0].mxu0 %v1946
    %v4167 = vpop.f32.mrb[0].mxu0
    %v4168 = vadd.f32 %v4055, %v4167
    %v4169 = vpop.f32.mrb[0].mxu0
    %v4170 = vadd.f32 %v4057, %v4169
    %v4171 = vpop.f32.mrb[0].mxu0
    %v4172 = vadd.f32 %v4059, %v4171
    %v4173 = vpop.f32.mrb[0].mxu0
    %v4174 = vadd.f32 %v4061, %v4173
    %4175 = vmatprep.mubr.bf16.mxu0 %v1955
    %4176 = vmatmul.mubr.bf16.gmra.mrb[0].mxu0 %v1954
    %v4177 = vpop.f32.mrb[0].mxu0
    %v4178 = vadd.f32 %v4065, %v4177
    %v4179 = vpop.f32.mrb[0].mxu0
    %v4180 = vadd.f32 %v4067, %v4179
    %v4181 = vpop.f32.mrb[0].mxu0
    %v4182 = vadd.f32 %v4069, %v4181
    %v4183 = vpop.f32.mrb[0].mxu0
    %v4184 = vadd.f32 %v4071, %v4183
    %4185 = vmatprep.mubr.bf16.mxu0 %v1963
    %4186 = vmatmul.mubr.bf16.gmra.mrb[0].mxu0 %v1962
    %v4187 = vpop.f32.mrb[0].mxu0
    %v4188 = vadd.f32 %v4075, %v4187
    %v4189 = vpop.f32.mrb[0].mxu0
    %v4190 = vadd.f32 %v4077, %v4189
    %v4191 = vpop.f32.mrb[0].mxu0
    %v4192 = vadd.f32 %v4079, %v4191
    %v4193 = vpop.f32.mrb[0].mxu0
    %v4194 = vadd.f32 %v4081, %v4193
    %4195 = vmatprep.mubr.bf16.mxu0 %v1971
    %4196 = vmatmul.mubr.bf16.gmra.mrb[0].mxu0 %v1970
    %v4197 = vpop.f32.mrb[0].mxu0
    %v4198 = vadd.f32 %v4085, %v4197
    %v4199 = vpop.f32.mrb[0].mxu0
    %v4200 = vadd.f32 %v4087, %v4199
    %v4201 = vpop.f32.mrb[0].mxu0
    %v4202 = vadd.f32 %v4089, %v4201
    %v4203 = vpop.f32.mrb[0].mxu0
    %v4204 = vadd.f32 %v4091, %v4203
    %4205 = vmatprep.mubr.bf16.mxu0 %v1979
    %4206 = vmatmul.mubr.bf16.gmra.mrb[0].mxu0 %v1978
    %v4207 = vpop.f32.mrb[0].mxu0
    %v4208 = vadd.f32 %v4095, %v4207
    %v4209 = vpop.f32.mrb[0].mxu0
    %v4210 = vadd.f32 %v4097, %v4209
    %v4211 = vpop.f32.mrb[0].mxu0
    %v4212 = vadd.f32 %v4099, %v4211
    %v4213 = vpop.f32.mrb[0].mxu0
    %v4214 = vadd.f32 %v4101, %v4213
    %4215 = vmatprep.mubr.bf16.mxu0 %v1987
    %4216 = vmatmul.mubr.bf16.gmra.mrb[0].mxu0 %v1986
    %v4217 = vpop.f32.mrb[0].mxu0
    %v4218 = vadd.f32 %v4105, %v4217
    %v4219 = vpop.f32.mrb[0].mxu0
    %v4220 = vadd.f32 %v4107, %v4219
    %v4221 = vpop.f32.mrb[0].mxu0
    %v4222 = vadd.f32 %v4109, %v4221
    %v4223 = vpop.f32.mrb[0].mxu0
    %v4224 = vadd.f32 %v4111, %v4223
    %4225 = vmatprep.mubr.bf16.mxu0 %v1995
    %4226 = vmatmul.mubr.bf16.gmra.mrb[0].mxu0 %v1994
    %v4227 = vpop.f32.mrb[0].mxu0
    %v4228 = vadd.f32 %v4115, %v4227
    %v4229 = vpop.f32.mrb[0].mxu0
    %v4230 = vadd.f32 %v4117, %v4229
    %v4231 = vpop.f32.mrb[0].mxu0
    %v4232 = vadd.f32 %v4119, %v4231
    %v4233 = vpop.f32.mrb[0].mxu0
    %v4234 = vadd.f32 %v4121, %v4233
    %4235 = vdwg.mxu0
    %4236 = vmatprep.subr.bf16.mxu0 %v3177
    %4237 = vmatpush1.bf16.msra.mxu0 %v3176
    %4238 = vmatprep.subr.bf16.mxu0 %v3181
    %4239 = vmatpush1.bf16.msra.mxu0 %v3180
    %4240 = vmatprep.subr.bf16.mxu0 %v3185
    %4241 = vmatpush1.bf16.msra.mxu0 %v3184
    %4242 = vmatprep.subr.bf16.mxu0 %v3189
    %4243 = vmatpush1.bf16.msra.mxu0 %v3188
    %4244 = vmatprep.subr.bf16.mxu0 %v3193
    %4245 = vmatpush1.bf16.msra.mxu0 %v3192
    %4246 = vmatprep.subr.bf16.mxu0 %v3197
    %4247 = vmatpush1.bf16.msra.mxu0 %v3196
    %4248 = vmatprep.subr.bf16.mxu0 %v3201
    %4249 = vmatpush1.bf16.msra.mxu0 %v3200
    %4250 = vmatprep.subr.bf16.mxu0 %v3205
    %4251 = vmatpush1.bf16.msra.mxu0 %v3204
    %4252 = vmatprep.subr.bf16.mxu0 %v3209
    %4253 = vmatpush1.bf16.msra.mxu0 %v3208
    %4254 = vmatprep.subr.bf16.mxu0 %v3213
    %4255 = vmatpush1.bf16.msra.mxu0 %v3212
    %4256 = vmatprep.subr.bf16.mxu0 %v3217
    %4257 = vmatpush1.bf16.msra.mxu0 %v3216
    %4258 = vmatprep.subr.bf16.mxu0 %v3221
    %4259 = vmatpush1.bf16.msra.mxu0 %v3220
    %4260 = vmatprep.subr.bf16.mxu0 %v3225
    %4261 = vmatpush1.bf16.msra.mxu0 %v3224
    %4262 = vmatprep.subr.bf16.mxu0 %v3229
    %4263 = vmatpush1.bf16.msra.mxu0 %v3228
    %4264 = vmatprep.subr.bf16.mxu0 %v3233
    %4265 = vmatpush1.bf16.msra.mxu0 %v3232
    %4266 = vmatprep.subr.bf16.mxu0 %v3237
    %4267 = vmatpush1.bf16.msra.mxu0 %v3236
    %4268 = vmatprep.mubr.bf16.mxu0 %v1941
    %4269 = vmatmul.mubr.bf16.gmra.mrb[0].mxu0 %v1940
    %v4270 = vpop.f32.mrb[0].mxu0
    %v4271 = vadd.f32 %v4158, %v4270
    %v4272 = vpop.f32.mrb[0].mxu0
    %v4273 = vadd.f32 %v4160, %v4272
    %v4274 = vpop.f32.mrb[0].mxu0
    %v4275 = vadd.f32 %v4162, %v4274
    %v4276 = vpop.f32.mrb[0].mxu0
    %v4277 = vadd.f32 %v4164, %v4276
    %4278 = vmatprep.mubr.bf16.mxu0 %v1949
    %4279 = vmatmul.mubr.bf16.gmra.mrb[0].mxu0 %v1948
    %v4280 = vpop.f32.mrb[0].mxu0
    %v4281 = vadd.f32 %v4168, %v4280
    %v4282 = vpop.f32.mrb[0].mxu0
    %v4283 = vadd.f32 %v4170, %v4282
    %v4284 = vpop.f32.mrb[0].mxu0
    %v4285 = vadd.f32 %v4172, %v4284
    %v4286 = vpop.f32.mrb[0].mxu0
    %v4287 = vadd.f32 %v4174, %v4286
    %4288 = vmatprep.mubr.bf16.mxu0 %v1957
    %4289 = vmatmul.mubr.bf16.gmra.mrb[0].mxu0 %v1956
    %v4290 = vpop.f32.mrb[0].mxu0
    %v4291 = vadd.f32 %v4178, %v4290
    %v4292 = vpop.f32.mrb[0].mxu0
    %v4293 = vadd.f32 %v4180, %v4292
    %v4294 = vpop.f32.mrb[0].mxu0
    %v4295 = vadd.f32 %v4182, %v4294
    %v4296 = vpop.f32.mrb[0].mxu0
    %v4297 = vadd.f32 %v4184, %v4296
    %4298 = vmatprep.mubr.bf16.mxu0 %v1965
    %4299 = vmatmul.mubr.bf16.gmra.mrb[0].mxu0 %v1964
    %v4300 = vpop.f32.mrb[0].mxu0
    %v4301 = vadd.f32 %v4188, %v4300
    %v4302 = vpop.f32.mrb[0].mxu0
    %v4303 = vadd.f32 %v4190, %v4302
    %v4304 = vpop.f32.mrb[0].mxu0
    %v4305 = vadd.f32 %v4192, %v4304
    %v4306 = vpop.f32.mrb[0].mxu0
    %v4307 = vadd.f32 %v4194, %v4306
    %4308 = vmatprep.mubr.bf16.mxu0 %v1973
    %4309 = vmatmul.mubr.bf16.gmra.mrb[0].mxu0 %v1972
    %v4310 = vpop.f32.mrb[0].mxu0
    %v4311 = vadd.f32 %v4198, %v4310
    %v4312 = vpop.f32.mrb[0].mxu0
    %v4313 = vadd.f32 %v4200, %v4312
    %v4314 = vpop.f32.mrb[0].mxu0
    %v4315 = vadd.f32 %v4202, %v4314
    %v4316 = vpop.f32.mrb[0].mxu0
    %v4317 = vadd.f32 %v4204, %v4316
    %4318 = vmatprep.mubr.bf16.mxu0 %v1981
    %4319 = vmatmul.mubr.bf16.gmra.mrb[0].mxu0 %v1980
    %v4320 = vpop.f32.mrb[0].mxu0
    %v4321 = vadd.f32 %v4208, %v4320
    %v4322 = vpop.f32.mrb[0].mxu0
    %v4323 = vadd.f32 %v4210, %v4322
    %v4324 = vpop.f32.mrb[0].mxu0
    %v4325 = vadd.f32 %v4212, %v4324
    %v4326 = vpop.f32.mrb[0].mxu0
    %v4327 = vadd.f32 %v4214, %v4326
    %4328 = vmatprep.mubr.bf16.mxu0 %v1989
    %4329 = vmatmul.mubr.bf16.gmra.mrb[0].mxu0 %v1988
    %v4330 = vpop.f32.mrb[0].mxu0
    %v4331 = vadd.f32 %v4218, %v4330
    %v4332 = vpop.f32.mrb[0].mxu0
    %v4333 = vadd.f32 %v4220, %v4332
    %v4334 = vpop.f32.mrb[0].mxu0
    %v4335 = vadd.f32 %v4222, %v4334
    %v4336 = vpop.f32.mrb[0].mxu0
    %v4337 = vadd.f32 %v4224, %v4336
    %4338 = vmatprep.mubr.bf16.mxu0 %v1997
    %4339 = vmatmul.mubr.bf16.gmra.mrb[0].mxu0 %v1996
    %v4340 = vpop.f32.mrb[0].mxu0
    %v4341 = vadd.f32 %v4228, %v4340
    %v4342 = vpop.f32.mrb[0].mxu0
    %v4343 = vadd.f32 %v4230, %v4342
    %v4344 = vpop.f32.mrb[0].mxu0
    %v4345 = vadd.f32 %v4232, %v4344
    %v4346 = vpop.f32.mrb[0].mxu0
    %v4347 = vadd.f32 %v4234, %v4346
    %4348 = vdwg.mxu0
    %4349 = vmatprep.subr.bf16.mxu0 %v3241
    %4350 = vmatpush1.bf16.msra.mxu0 %v3240
    %4351 = vmatprep.subr.bf16.mxu0 %v3245
    %4352 = vmatpush1.bf16.msra.mxu0 %v3244
    %4353 = vmatprep.subr.bf16.mxu0 %v3249
    %4354 = vmatpush1.bf16.msra.mxu0 %v3248
    %4355 = vmatprep.subr.bf16.mxu0 %v3253
    %4356 = vmatpush1.bf16.msra.mxu0 %v3252
    %4357 = vmatprep.subr.bf16.mxu0 %v3257
    %4358 = vmatpush1.bf16.msra.mxu0 %v3256
    %4359 = vmatprep.subr.bf16.mxu0 %v3261
    %4360 = vmatpush1.bf16.msra.mxu0 %v3260
    %4361 = vmatprep.subr.bf16.mxu0 %v3265
    %4362 = vmatpush1.bf16.msra.mxu0 %v3264
    %4363 = vmatprep.subr.bf16.mxu0 %v3269
    %4364 = vmatpush1.bf16.msra.mxu0 %v3268
    %4365 = vmatprep.subr.bf16.mxu0 %v3273
    %4366 = vmatpush1.bf16.msra.mxu0 %v3272
    %4367 = vmatprep.subr.bf16.mxu0 %v3277
    %4368 = vmatpush1.bf16.msra.mxu0 %v3276
    %4369 = vmatprep.subr.bf16.mxu0 %v3281
    %4370 = vmatpush1.bf16.msra.mxu0 %v3280
    %4371 = vmatprep.subr.bf16.mxu0 %v3285
    %4372 = vmatpush1.bf16.msra.mxu0 %v3284
    %4373 = vmatprep.subr.bf16.mxu0 %v3289
    %4374 = vmatpush1.bf16.msra.mxu0 %v3288
    %4375 = vmatprep.subr.bf16.mxu0 %v3293
    %4376 = vmatpush1.bf16.msra.mxu0 %v3292
    %4377 = vmatprep.subr.bf16.mxu0 %v3297
    %4378 = vmatpush1.bf16.msra.mxu0 %v3296
    %4379 = vmatprep.subr.bf16.mxu0 %v3301
    %4380 = vmatpush1.bf16.msra.mxu0 %v3300
    %4381 = vmatprep.mubr.bf16.mxu0 %v1943
    %4382 = vmatmul.mubr.bf16.gmra.mrb[0].mxu0 %v1942
    %v4383 = vpop.f32.mrb[0].mxu0
    %v4384 = vadd.f32 %v4271, %v4383
    %v4385 = vpop.f32.mrb[0].mxu0
    %v4386 = vadd.f32 %v4273, %v4385
    %v4387 = vpop.f32.mrb[0].mxu0
    %v4388 = vadd.f32 %v4275, %v4387
    %v4389 = vpop.f32.mrb[0].mxu0
    %v4390 = vadd.f32 %v4277, %v4389
    %4391 = vmatprep.mubr.bf16.mxu0 %v1951
    %4392 = vmatmul.mubr.bf16.gmra.mrb[0].mxu0 %v1950
    %v4393 = vpop.f32.mrb[0].mxu0
    %v4394 = vadd.f32 %v4281, %v4393
    %v4395 = vpop.f32.mrb[0].mxu0
    %v4396 = vadd.f32 %v4283, %v4395
    %v4397 = vpop.f32.mrb[0].mxu0
    %v4398 = vadd.f32 %v4285, %v4397
    %v4399 = vpop.f32.mrb[0].mxu0
    %v4400 = vadd.f32 %v4287, %v4399
    %4401 = vmatprep.mubr.bf16.mxu0 %v1959
    %4402 = vmatmul.mubr.bf16.gmra.mrb[0].mxu0 %v1958
    %v4403 = vpop.f32.mrb[0].mxu0
    %v4404 = vadd.f32 %v4291, %v4403
    %v4405 = vpop.f32.mrb[0].mxu0
    %v4406 = vadd.f32 %v4293, %v4405
    %v4407 = vpop.f32.mrb[0].mxu0
    %v4408 = vadd.f32 %v4295, %v4407
    %v4409 = vpop.f32.mrb[0].mxu0
    %v4410 = vadd.f32 %v4297, %v4409
    %4411 = vmatprep.mubr.bf16.mxu0 %v1967
    %4412 = vmatmul.mubr.bf16.gmra.mrb[0].mxu0 %v1966
    %v4413 = vpop.f32.mrb[0].mxu0
    %v4414 = vadd.f32 %v4301, %v4413
    %v4415 = vpop.f32.mrb[0].mxu0
    %v4416 = vadd.f32 %v4303, %v4415
    %v4417 = vpop.f32.mrb[0].mxu0
    %v4418 = vadd.f32 %v4305, %v4417
    %v4419 = vpop.f32.mrb[0].mxu0
    %v4420 = vadd.f32 %v4307, %v4419
    %4421 = vmatprep.mubr.bf16.mxu0 %v1975
    %4422 = vmatmul.mubr.bf16.gmra.mrb[0].mxu0 %v1974
    %v4423 = vpop.f32.mrb[0].mxu0
    %v4424 = vadd.f32 %v4311, %v4423
    %v4425 = vpop.f32.mrb[0].mxu0
    %v4426 = vadd.f32 %v4313, %v4425
    %v4427 = vpop.f32.mrb[0].mxu0
    %v4428 = vadd.f32 %v4315, %v4427
    %v4429 = vpop.f32.mrb[0].mxu0
    %v4430 = vadd.f32 %v4317, %v4429
    %4431 = vmatprep.mubr.bf16.mxu0 %v1983
    %4432 = vmatmul.mubr.bf16.gmra.mrb[0].mxu0 %v1982
    %v4433 = vpop.f32.mrb[0].mxu0
    %v4434 = vadd.f32 %v4321, %v4433
    %v4435 = vpop.f32.mrb[0].mxu0
    %v4436 = vadd.f32 %v4323, %v4435
    %v4437 = vpop.f32.mrb[0].mxu0
    %v4438 = vadd.f32 %v4325, %v4437
    %v4439 = vpop.f32.mrb[0].mxu0
    %v4440 = vadd.f32 %v4327, %v4439
    %4441 = vmatprep.mubr.bf16.mxu0 %v1991
    %4442 = vmatmul.mubr.bf16.gmra.mrb[0].mxu0 %v1990
    %v4443 = vpop.f32.mrb[0].mxu0
    %v4444 = vadd.f32 %v4331, %v4443
    %v4445 = vpop.f32.mrb[0].mxu0
    %v4446 = vadd.f32 %v4333, %v4445
    %v4447 = vpop.f32.mrb[0].mxu0
    %v4448 = vadd.f32 %v4335, %v4447
    %v4449 = vpop.f32.mrb[0].mxu0
    %v4450 = vadd.f32 %v4337, %v4449
    %4451 = vmatprep.mubr.bf16.mxu0 %v1999
    %4452 = vmatmul.mubr.bf16.gmra.mrb[0].mxu0 %v1998
    %v4453 = vpop.f32.mrb[0].mxu0
    %v4454 = vadd.f32 %v4341, %v4453
    %v4455 = vpop.f32.mrb[0].mxu0
    %v4456 = vadd.f32 %v4343, %v4455
    %v4457 = vpop.f32.mrb[0].mxu0
    %v4458 = vadd.f32 %v4345, %v4457
    %v4459 = vpop.f32.mrb[0].mxu0
    %v4460 = vadd.f32 %v4347, %v4459
    %4461 = vdwg.mxu0
    %vm4462 = vcmp.ge.f32.partialorder %v3932, 0.0
    %vm4463 = vcmp.ge.f32.partialorder %v3934, 0.0
    %vm4464 = vcmp.ge.f32.partialorder %v4384, 0.0
    %vm4465 = vcmp.ge.f32.partialorder %v4386, 0.0
    %vm4466 = vcmp.ge.f32.partialorder %v3936, 0.0
    %vm4467 = vcmp.ge.f32.partialorder %v3938, 0.0
    %vm4468 = vcmp.ge.f32.partialorder %v4388, 0.0
    %vm4469 = vcmp.ge.f32.partialorder %v4390, 0.0
    %vm4470 = vcmp.ge.f32.partialorder %v3942, 0.0
    %vm4471 = vcmp.ge.f32.partialorder %v3944, 0.0
    %vm4472 = vcmp.ge.f32.partialorder %v4394, 0.0
    %vm4473 = vcmp.ge.f32.partialorder %v4396, 0.0
    %vm4474 = vcmp.ge.f32.partialorder %v3946, 0.0
    %vm4475 = vcmp.ge.f32.partialorder %v3948, 0.0
    %vm4476 = vcmp.ge.f32.partialorder %v4398, 0.0
    %vm4477 = vcmp.ge.f32.partialorder %v4400, 0.0
    %vm4478 = vcmp.ge.f32.partialorder %v3952, 0.0
    %vm4479 = vcmp.ge.f32.partialorder %v3954, 0.0
    %vm4480 = vcmp.ge.f32.partialorder %v4404, 0.0
    %vm4481 = vcmp.ge.f32.partialorder %v4406, 0.0
    %vm4482 = vcmp.ge.f32.partialorder %v3956, 0.0
    %vm4483 = vcmp.ge.f32.partialorder %v3958, 0.0
    %vm4484 = vcmp.ge.f32.partialorder %v4408, 0.0
    %vm4485 = vcmp.ge.f32.partialorder %v4410, 0.0
    %vm4486 = vcmp.ge.f32.partialorder %v3962, 0.0
    %vm4487 = vcmp.ge.f32.partialorder %v3964, 0.0
    %vm4488 = vcmp.ge.f32.partialorder %v4414, 0.0
    %vm4489 = vcmp.ge.f32.partialorder %v4416, 0.0
    %vm4490 = vcmp.ge.f32.partialorder %v3966, 0.0
    %vm4491 = vcmp.ge.f32.partialorder %v3968, 0.0
    %vm4492 = vcmp.ge.f32.partialorder %v4418, 0.0
    %vm4493 = vcmp.ge.f32.partialorder %v4420, 0.0
    %vm4494 = vcmp.ge.f32.partialorder %v3972, 0.0
    %vm4495 = vcmp.ge.f32.partialorder %v3974, 0.0
    %vm4496 = vcmp.ge.f32.partialorder %v4424, 0.0
    %vm4497 = vcmp.ge.f32.partialorder %v4426, 0.0
    %vm4498 = vcmp.ge.f32.partialorder %v3976, 0.0
    %vm4499 = vcmp.ge.f32.partialorder %v3978, 0.0
    %vm4500 = vcmp.ge.f32.partialorder %v4428, 0.0
    %vm4501 = vcmp.ge.f32.partialorder %v4430, 0.0
    %vm4502 = vcmp.ge.f32.partialorder %v3982, 0.0
    %vm4503 = vcmp.ge.f32.partialorder %v3984, 0.0
    %vm4504 = vcmp.ge.f32.partialorder %v4434, 0.0
    %vm4505 = vcmp.ge.f32.partialorder %v4436, 0.0
    %vm4506 = vcmp.ge.f32.partialorder %v3986, 0.0
    %vm4507 = vcmp.ge.f32.partialorder %v3988, 0.0
    %vm4508 = vcmp.ge.f32.partialorder %v4438, 0.0
    %vm4509 = vcmp.ge.f32.partialorder %v4440, 0.0
    %vm4510 = vcmp.ge.f32.partialorder %v3992, 0.0
    %vm4511 = vcmp.ge.f32.partialorder %v3994, 0.0
    %vm4512 = vcmp.ge.f32.partialorder %v4444, 0.0
    %vm4513 = vcmp.ge.f32.partialorder %v4446, 0.0
    %vm4514 = vcmp.ge.f32.partialorder %v3996, 0.0
    %vm4515 = vcmp.ge.f32.partialorder %v3998, 0.0
    %vm4516 = vcmp.ge.f32.partialorder %v4448, 0.0
    %vm4517 = vcmp.ge.f32.partialorder %v4450, 0.0
    %vm4518 = vcmp.ge.f32.partialorder %v4002, 0.0
    %vm4519 = vcmp.ge.f32.partialorder %v4004, 0.0
    %vm4520 = vcmp.ge.f32.partialorder %v4454, 0.0
    %vm4521 = vcmp.ge.f32.partialorder %v4456, 0.0
    %vm4522 = vcmp.ge.f32.partialorder %v4006, 0.0
    %vm4523 = vcmp.ge.f32.partialorder %v4008, 0.0
    %vm4524 = vcmp.ge.f32.partialorder %v4458, 0.0
    %vm4525 = vcmp.ge.f32.partialorder %v4460, 0.0
    %v4526 = vstv %s177
    %v4527 = vmul.f32 %v4526, %v3932
    %v4528 = vmul.f32 %v4526, %v3934
    %v4529 = vmul.f32 %v4526, %v4384
    %v4530 = vmul.f32 %v4526, %v4386
    %v4531 = vmul.f32 %v4526, %v3936
    %v4532 = vmul.f32 %v4526, %v3938
    %v4533 = vmul.f32 %v4526, %v4388
    %v4534 = vmul.f32 %v4526, %v4390
    %v4535 = vmul.f32 %v4526, %v3942
    %v4536 = vmul.f32 %v4526, %v3944
    %v4537 = vmul.f32 %v4526, %v4394
    %v4538 = vmul.f32 %v4526, %v4396
    %v4539 = vmul.f32 %v4526, %v3946
    %v4540 = vmul.f32 %v4526, %v3948
    %v4541 = vmul.f32 %v4526, %v4398
    %v4542 = vmul.f32 %v4526, %v4400
    %v4543 = vmul.f32 %v4526, %v3952
    %v4544 = vmul.f32 %v4526, %v3954
    %v4545 = vmul.f32 %v4526, %v4404
    %v4546 = vmul.f32 %v4526, %v4406
    %v4547 = vmul.f32 %v4526, %v3956
    %v4548 = vmul.f32 %v4526, %v3958
    %v4549 = vmul.f32 %v4526, %v4408
    %v4550 = vmul.f32 %v4526, %v4410
    %v4551 = vmul.f32 %v4526, %v3962
    %v4552 = vmul.f32 %v4526, %v3964
    %v4553 = vmul.f32 %v4526, %v4414
    %v4554 = vmul.f32 %v4526, %v4416
    %v4555 = vmul.f32 %v4526, %v3966
    %v4556 = vmul.f32 %v4526, %v3968
    %v4557 = vmul.f32 %v4526, %v4418
    %v4558 = vmul.f32 %v4526, %v4420
    %v4559 = vmul.f32 %v4526, %v3972
    %v4560 = vmul.f32 %v4526, %v3974
    %v4561 = vmul.f32 %v4526, %v4424
    %v4562 = vmul.f32 %v4526, %v4426
    %v4563 = vmul.f32 %v4526, %v3976
    %v4564 = vmul.f32 %v4526, %v3978
    %v4565 = vmul.f32 %v4526, %v4428
    %v4566 = vmul.f32 %v4526, %v4430
    %v4567 = vmul.f32 %v4526, %v3982
    %v4568 = vmul.f32 %v4526, %v3984
    %v4569 = vmul.f32 %v4526, %v4434
    %v4570 = vmul.f32 %v4526, %v4436
    %v4571 = vmul.f32 %v4526, %v3986
    %v4572 = vmul.f32 %v4526, %v3988
    %v4573 = vmul.f32 %v4526, %v4438
    %v4574 = vmul.f32 %v4526, %v4440
    %v4575 = vmul.f32 %v4526, %v3992
    %v4576 = vmul.f32 %v4526, %v3994
    %v4577 = vmul.f32 %v4526, %v4444
    %v4578 = vmul.f32 %v4526, %v4446
    %v4579 = vmul.f32 %v4526, %v3996
    %v4580 = vmul.f32 %v4526, %v3998
    %v4581 = vmul.f32 %v4526, %v4448
    %v4582 = vmul.f32 %v4526, %v4450
    %v4583 = vmul.f32 %v4526, %v4002
    %v4584 = vmul.f32 %v4526, %v4004
    %v4585 = vmul.f32 %v4526, %v4454
    %v4586 = vmul.f32 %v4526, %v4456
    %v4587 = vmul.f32 %v4526, %v4006
    %v4588 = vmul.f32 %v4526, %v4008
    %v4589 = vmul.f32 %v4526, %v4458
    %v4590 = vmul.f32 %v4526, %v4460
    %v4591 = vsel %vm4462, %v3932, %v4527
    %v4592 = vsel %vm4463, %v3934, %v4528
    %v4593 = vsel %vm4464, %v4384, %v4529
    %v4594 = vsel %vm4465, %v4386, %v4530
    %v4595 = vsel %vm4466, %v3936, %v4531
    %v4596 = vsel %vm4467, %v3938, %v4532
    %v4597 = vsel %vm4468, %v4388, %v4533
    %v4598 = vsel %vm4469, %v4390, %v4534
    %v4599 = vsel %vm4470, %v3942, %v4535
    %v4600 = vsel %vm4471, %v3944, %v4536
    %v4601 = vsel %vm4472, %v4394, %v4537
    %v4602 = vsel %vm4473, %v4396, %v4538
    %v4603 = vsel %vm4474, %v3946, %v4539
    %v4604 = vsel %vm4475, %v3948, %v4540
    %v4605 = vsel %vm4476, %v4398, %v4541
    %v4606 = vsel %vm4477, %v4400, %v4542
    %v4607 = vsel %vm4478, %v3952, %v4543
    %v4608 = vsel %vm4479, %v3954, %v4544
    %v4609 = vsel %vm4480, %v4404, %v4545
    %v4610 = vsel %vm4481, %v4406, %v4546
    %v4611 = vsel %vm4482, %v3956, %v4547
    %v4612 = vsel %vm4483, %v3958, %v4548
    %v4613 = vsel %vm4484, %v4408, %v4549
    %v4614 = vsel %vm4485, %v4410, %v4550
    %v4615 = vsel %vm4486, %v3962, %v4551
    %v4616 = vsel %vm4487, %v3964, %v4552
    %v4617 = vsel %vm4488, %v4414, %v4553
    %v4618 = vsel %vm4489, %v4416, %v4554
    %v4619 = vsel %vm4490, %v3966, %v4555
    %v4620 = vsel %vm4491, %v3968, %v4556
    %v4621 = vsel %vm4492, %v4418, %v4557
    %v4622 = vsel %vm4493, %v4420, %v4558
    %v4623 = vsel %vm4494, %v3972, %v4559
    %v4624 = vsel %vm4495, %v3974, %v4560
    %v4625 = vsel %vm4496, %v4424, %v4561
    %v4626 = vsel %vm4497, %v4426, %v4562
    %v4627 = vsel %vm4498, %v3976, %v4563
    %v4628 = vsel %vm4499, %v3978, %v4564
    %v4629 = vsel %vm4500, %v4428, %v4565
    %v4630 = vsel %vm4501, %v4430, %v4566
    %v4631 = vsel %vm4502, %v3982, %v4567
    %v4632 = vsel %vm4503, %v3984, %v4568
    %v4633 = vsel %vm4504, %v4434, %v4569
    %v4634 = vsel %vm4505, %v4436, %v4570
    %v4635 = vsel %vm4506, %v3986, %v4571
    %v4636 = vsel %vm4507, %v3988, %v4572
    %v4637 = vsel %vm4508, %v4438, %v4573
    %v4638 = vsel %vm4509, %v4440, %v4574
    %v4639 = vsel %vm4510, %v3992, %v4575
    %v4640 = vsel %vm4511, %v3994, %v4576
    %v4641 = vsel %vm4512, %v4444, %v4577
    %v4642 = vsel %vm4513, %v4446, %v4578
    %v4643 = vsel %vm4514, %v3996, %v4579
    %v4644 = vsel %vm4515, %v3998, %v4580
    %v4645 = vsel %vm4516, %v4448, %v4581
    %v4646 = vsel %vm4517, %v4450, %v4582
    %v4647 = vsel %vm4518, %v4002, %v4583
    %v4648 = vsel %vm4519, %v4004, %v4584
    %v4649 = vsel %vm4520, %v4454, %v4585
    %v4650 = vsel %vm4521, %v4456, %v4586
    %v4651 = vsel %vm4522, %v4006, %v4587
    %v4652 = vsel %vm4523, %v4008, %v4588
    %v4653 = vsel %vm4524, %v4458, %v4589
    %v4654 = vsel %vm4525, %v4460, %v4590
    %v4655 = vpack.c.bf16 %v4595, %v4591
    %v4656 = vpack.c.bf16 %v4596, %v4592
    %v4657 = vpack.c.bf16 %v4597, %v4593
    %v4658 = vpack.c.bf16 %v4598, %v4594
    %v4659 = vpack.c.bf16 %v4603, %v4599
    %v4660 = vpack.c.bf16 %v4604, %v4600
    %v4661 = vpack.c.bf16 %v4605, %v4601
    %v4662 = vpack.c.bf16 %v4606, %v4602
    %v4663 = vpack.c.bf16 %v4611, %v4607
    %v4664 = vpack.c.bf16 %v4612, %v4608
    %v4665 = vpack.c.bf16 %v4613, %v4609
    %v4666 = vpack.c.bf16 %v4614, %v4610
    %v4667 = vpack.c.bf16 %v4619, %v4615
    %v4668 = vpack.c.bf16 %v4620, %v4616
    %v4669 = vpack.c.bf16 %v4621, %v4617
    %v4670 = vpack.c.bf16 %v4622, %v4618
    %v4671 = vpack.c.bf16 %v4627, %v4623
    %v4672 = vpack.c.bf16 %v4628, %v4624
    %v4673 = vpack.c.bf16 %v4629, %v4625
    %v4674 = vpack.c.bf16 %v4630, %v4626
    %v4675 = vpack.c.bf16 %v4635, %v4631
    %v4676 = vpack.c.bf16 %v4636, %v4632
    %v4677 = vpack.c.bf16 %v4637, %v4633
    %v4678 = vpack.c.bf16 %v4638, %v4634
    %v4679 = vpack.c.bf16 %v4643, %v4639
    %v4680 = vpack.c.bf16 %v4644, %v4640
    %v4681 = vpack.c.bf16 %v4645, %v4641
    %v4682 = vpack.c.bf16 %v4646, %v4642
    %v4683 = vpack.c.bf16 %v4651, %v4647
    %v4684 = vpack.c.bf16 %v4652, %v4648
    %v4685 = vpack.c.bf16 %v4653, %v4649
    %v4686 = vpack.c.bf16 %v4654, %v4650
    %v4687 = vld [vmem:[#allocation15] sm:$0xff]
    %v4688 = vld [vmem:[#allocation15 + $0x8] sm:$0xff]
    %v4689 = vld [vmem:[#allocation15 + $0x10] sm:$0xff]
    %v4690 = vld [vmem:[#allocation15 + $0x18] sm:$0xff]
    %v4691 = vld [vmem:[#allocation15 + $0x20] sm:$0xff]
    %v4692 = vld [vmem:[#allocation15 + $0x28] sm:$0xff]
    %v4693 = vld [vmem:[#allocation15 + $0x30] sm:$0xff]
    %v4694 = vld [vmem:[#allocation15 + $0x38] sm:$0xff]
    %v4695 = vld [vmem:[#allocation15 + $0x40] sm:$0xff]
    %v4696 = vld [vmem:[#allocation15 + $0x48] sm:$0xff]
    %v4697 = vld [vmem:[#allocation15 + $0x50] sm:$0xff]
    %v4698 = vld [vmem:[#allocation15 + $0x58] sm:$0xff]
    %v4699 = vld [vmem:[#allocation15 + $0x60] sm:$0xff]
    %v4700 = vld [vmem:[#allocation15 + $0x68] sm:$0xff]
    %v4701 = vld [vmem:[#allocation15 + $0x70] sm:$0xff]
    %v4702 = vld [vmem:[#allocation15 + $0x78] sm:$0xff]
    %v4703 = vld [vmem:[#allocation15 + $0x80] sm:$0xff]
    %v4704 = vld [vmem:[#allocation15 + $0x88] sm:$0xff]
    %v4705 = vld [vmem:[#allocation15 + $0x90] sm:$0xff]
    %v4706 = vld [vmem:[#allocation15 + $0x98] sm:$0xff]
    %v4707 = vld [vmem:[#allocation15 + $0xa0] sm:$0xff]
    %v4708 = vld [vmem:[#allocation15 + $0xa8] sm:$0xff]
    %v4709 = vld [vmem:[#allocation15 + $0xb0] sm:$0xff]
    %v4710 = vld [vmem:[#allocation15 + $0xb8] sm:$0xff]
    %v4711 = vld [vmem:[#allocation15 + $0xc0] sm:$0xff]
    %v4712 = vld [vmem:[#allocation15 + $0xc8] sm:$0xff]
    %v4713 = vld [vmem:[#allocation15 + $0xd0] sm:$0xff]
    %v4714 = vld [vmem:[#allocation15 + $0xd8] sm:$0xff]
    %v4715 = vld [vmem:[#allocation15 + $0xe0] sm:$0xff]
    %v4716 = vld [vmem:[#allocation15 + $0xe8] sm:$0xff]
    %v4717 = vld [vmem:[#allocation15 + $0xf0] sm:$0xff]
    %v4718 = vld [vmem:[#allocation15 + $0xf8] sm:$0xff]
    %v4719 = vld [vmem:[#allocation15 + $0x100] sm:$0xff]
    %v4720 = vld [vmem:[#allocation15 + $0x108] sm:$0xff]
    %v4721 = vld [vmem:[#allocation15 + $0x110] sm:$0xff]
    %v4722 = vld [vmem:[#allocation15 + $0x118] sm:$0xff]
    %v4723 = vld [vmem:[#allocation15 + $0x120] sm:$0xff]
    %v4724 = vld [vmem:[#allocation15 + $0x128] sm:$0xff]
    %v4725 = vld [vmem:[#allocation15 + $0x130] sm:$0xff]
    %v4726 = vld [vmem:[#allocation15 + $0x138] sm:$0xff]
    %v4727 = vld [vmem:[#allocation15 + $0x140] sm:$0xff]
    %v4728 = vld [vmem:[#allocation15 + $0x148] sm:$0xff]
    %v4729 = vld [vmem:[#allocation15 + $0x150] sm:$0xff]
    %v4730 = vld [vmem:[#allocation15 + $0x158] sm:$0xff]
    %v4731 = vld [vmem:[#allocation15 + $0x160] sm:$0xff]
    %v4732 = vld [vmem:[#allocation15 + $0x168] sm:$0xff]
    %v4733 = vld [vmem:[#allocation15 + $0x170] sm:$0xff]
    %v4734 = vld [vmem:[#allocation15 + $0x178] sm:$0xff]
    %v4735 = vld [vmem:[#allocation15 + $0x180] sm:$0xff]
    %v4736 = vld [vmem:[#allocation15 + $0x188] sm:$0xff]
    %v4737 = vld [vmem:[#allocation15 + $0x190] sm:$0xff]
    %v4738 = vld [vmem:[#allocation15 + $0x198] sm:$0xff]
    %v4739 = vld [vmem:[#allocation15 + $0x1a0] sm:$0xff]
    %v4740 = vld [vmem:[#allocation15 + $0x1a8] sm:$0xff]
    %v4741 = vld [vmem:[#allocation15 + $0x1b0] sm:$0xff]
    %v4742 = vld [vmem:[#allocation15 + $0x1b8] sm:$0xff]
    %v4743 = vld [vmem:[#allocation15 + $0x1c0] sm:$0xff]
    %v4744 = vld [vmem:[#allocation15 + $0x1c8] sm:$0xff]
    %v4745 = vld [vmem:[#allocation15 + $0x1d0] sm:$0xff]
    %v4746 = vld [vmem:[#allocation15 + $0x1d8] sm:$0xff]
    %v4747 = vld [vmem:[#allocation15 + $0x1e0] sm:$0xff]
    %v4748 = vld [vmem:[#allocation15 + $0x1e8] sm:$0xff]
    %v4749 = vld [vmem:[#allocation15 + $0x1f0] sm:$0xff]
    %v4750 = vld [vmem:[#allocation15 + $0x1f8] sm:$0xff]
    %v4751 = vld [vmem:[%s7] sm:$0x3]
    %v4753 = vlaneseq
    %v4754 = vshrl.u32 %v4753, 7
    %v4755 = vsub.s32 0, %v4754
    %v4756 = vrot.slane %v4751, %v4755
    %v4757 = vlaneseq
    %v4758 = vshrl.u32 %v4757, 7
    %v4759 = vsub.s32 1, %v4758
    %v4760 = vrot.slane %v4751, %v4759
    %v4827 = vunpack.c.l.b16 %v4687
    %v4828 = vunpack.c.h.b16 %v4687
    %v4829 = vunpack.c.l.b16 %v4688
    %v4830 = vunpack.c.h.b16 %v4688
    %v4831 = vunpack.c.l.b16 %v4689
    %v4832 = vunpack.c.h.b16 %v4689
    %v4833 = vunpack.c.l.b16 %v4690
    %v4834 = vunpack.c.h.b16 %v4690
    %v4835 = vunpack.c.l.b16 %v4691
    %v4836 = vunpack.c.h.b16 %v4691
    %v4837 = vunpack.c.l.b16 %v4692
    %v4838 = vunpack.c.h.b16 %v4692
    %v4839 = vunpack.c.l.b16 %v4693
    %v4840 = vunpack.c.h.b16 %v4693
    %v4841 = vunpack.c.l.b16 %v4694
    %v4842 = vunpack.c.h.b16 %v4694
    %v4843 = vunpack.c.l.b16 %v4695
    %v4844 = vunpack.c.h.b16 %v4695
    %v4845 = vunpack.c.l.b16 %v4696
    %v4846 = vunpack.c.h.b16 %v4696
    %v4847 = vunpack.c.l.b16 %v4697
    %v4848 = vunpack.c.h.b16 %v4697
    %v4849 = vunpack.c.l.b16 %v4698
    %v4850 = vunpack.c.h.b16 %v4698
    %v4851 = vunpack.c.l.b16 %v4699
    %v4852 = vunpack.c.h.b16 %v4699
    %v4853 = vunpack.c.l.b16 %v4700
    %v4854 = vunpack.c.h.b16 %v4700
    %v4855 = vunpack.c.l.b16 %v4701
    %v4856 = vunpack.c.h.b16 %v4701
    %v4857 = vunpack.c.l.b16 %v4702
    %v4858 = vunpack.c.h.b16 %v4702
    %v4859 = vunpack.c.l.b16 %v4703
    %v4860 = vunpack.c.h.b16 %v4703
    %v4861 = vunpack.c.l.b16 %v4704
    %v4862 = vunpack.c.h.b16 %v4704
    %v4863 = vunpack.c.l.b16 %v4705
    %v4864 = vunpack.c.h.b16 %v4705
    %v4865 = vunpack.c.l.b16 %v4706
    %v4866 = vunpack.c.h.b16 %v4706
    %v4867 = vunpack.c.l.b16 %v4707
    %v4868 = vunpack.c.h.b16 %v4707
    %v4869 = vunpack.c.l.b16 %v4708
    %v4870 = vunpack.c.h.b16 %v4708
    %v4871 = vunpack.c.l.b16 %v4709
    %v4872 = vunpack.c.h.b16 %v4709
    %v4873 = vunpack.c.l.b16 %v4710
    %v4874 = vunpack.c.h.b16 %v4710
    %v4875 = vunpack.c.l.b16 %v4711
    %v4876 = vunpack.c.h.b16 %v4711
    %v4877 = vunpack.c.l.b16 %v4712
    %v4878 = vunpack.c.h.b16 %v4712
    %v4879 = vunpack.c.l.b16 %v4713
    %v4880 = vunpack.c.h.b16 %v4713
    %v4881 = vunpack.c.l.b16 %v4714
    %v4882 = vunpack.c.h.b16 %v4714
    %v4883 = vunpack.c.l.b16 %v4715
    %v4884 = vunpack.c.h.b16 %v4715
    %v4885 = vunpack.c.l.b16 %v4716
    %v4886 = vunpack.c.h.b16 %v4716
    %v4887 = vunpack.c.l.b16 %v4717
    %v4888 = vunpack.c.h.b16 %v4717
    %v4889 = vunpack.c.l.b16 %v4718
    %v4890 = vunpack.c.h.b16 %v4718
    %v4891 = vunpack.c.l.b16 %v4719
    %v4892 = vunpack.c.h.b16 %v4719
    %v4893 = vunpack.c.l.b16 %v4720
    %v4894 = vunpack.c.h.b16 %v4720
    %v4895 = vunpack.c.l.b16 %v4721
    %v4896 = vunpack.c.h.b16 %v4721
    %v4897 = vunpack.c.l.b16 %v4722
    %v4898 = vunpack.c.h.b16 %v4722
    %v4899 = vunpack.c.l.b16 %v4723
    %v4900 = vunpack.c.h.b16 %v4723
    %v4901 = vunpack.c.l.b16 %v4724
    %v4902 = vunpack.c.h.b16 %v4724
    %v4903 = vunpack.c.l.b16 %v4725
    %v4904 = vunpack.c.h.b16 %v4725
    %v4905 = vunpack.c.l.b16 %v4726
    %v4906 = vunpack.c.h.b16 %v4726
    %v4907 = vunpack.c.l.b16 %v4727
    %v4908 = vunpack.c.h.b16 %v4727
    %v4909 = vunpack.c.l.b16 %v4728
    %v4910 = vunpack.c.h.b16 %v4728
    %v4911 = vunpack.c.l.b16 %v4729
    %v4912 = vunpack.c.h.b16 %v4729
    %v4913 = vunpack.c.l.b16 %v4730
    %v4914 = vunpack.c.h.b16 %v4730
    %v4915 = vunpack.c.l.b16 %v4731
    %v4916 = vunpack.c.h.b16 %v4731
    %v4917 = vunpack.c.l.b16 %v4732
    %v4918 = vunpack.c.h.b16 %v4732
    %v4919 = vunpack.c.l.b16 %v4733
    %v4920 = vunpack.c.h.b16 %v4733
    %v4921 = vunpack.c.l.b16 %v4734
    %v4922 = vunpack.c.h.b16 %v4734
    %v4923 = vunpack.c.l.b16 %v4735
    %v4924 = vunpack.c.h.b16 %v4735
    %v4925 = vunpack.c.l.b16 %v4736
    %v4926 = vunpack.c.h.b16 %v4736
    %v4927 = vunpack.c.l.b16 %v4737
    %v4928 = vunpack.c.h.b16 %v4737
    %v4929 = vunpack.c.l.b16 %v4738
    %v4930 = vunpack.c.h.b16 %v4738
    %v4931 = vunpack.c.l.b16 %v4739
    %v4932 = vunpack.c.h.b16 %v4739
    %v4933 = vunpack.c.l.b16 %v4740
    %v4934 = vunpack.c.h.b16 %v4740
    %v4935 = vunpack.c.l.b16 %v4741
    %v4936 = vunpack.c.h.b16 %v4741
    %v4937 = vunpack.c.l.b16 %v4742
    %v4938 = vunpack.c.h.b16 %v4742
    %v4939 = vunpack.c.l.b16 %v4743
    %v4940 = vunpack.c.h.b16 %v4743
    %v4941 = vunpack.c.l.b16 %v4744
    %v4942 = vunpack.c.h.b16 %v4744
    %v4943 = vunpack.c.l.b16 %v4745
    %v4944 = vunpack.c.h.b16 %v4745
    %v4945 = vunpack.c.l.b16 %v4746
    %v4946 = vunpack.c.h.b16 %v4746
    %v4947 = vunpack.c.l.b16 %v4747
    %v4948 = vunpack.c.h.b16 %v4747
    %v4949 = vunpack.c.l.b16 %v4748
    %v4950 = vunpack.c.h.b16 %v4748
    %v4951 = vunpack.c.l.b16 %v4749
    %v4952 = vunpack.c.h.b16 %v4749
    %v4953 = vunpack.c.l.b16 %v4750
    %v4954 = vunpack.c.h.b16 %v4750
    %v4955 = vpack.c.b16 %v4829, %v4827
    %v4956 = vpack.c.b16 %v4830, %v4828
    %v4957 = vpack.c.b16 %v4833, %v4831
    %v4958 = vpack.c.b16 %v4834, %v4832
    %v4959 = vpack.c.b16 %v4837, %v4835
    %v4960 = vpack.c.b16 %v4838, %v4836
    %v4961 = vpack.c.b16 %v4841, %v4839
    %v4962 = vpack.c.b16 %v4842, %v4840
    %v4963 = vpack.c.b16 %v4845, %v4843
    %v4964 = vpack.c.b16 %v4846, %v4844
    %v4965 = vpack.c.b16 %v4849, %v4847
    %v4966 = vpack.c.b16 %v4850, %v4848
    %v4967 = vpack.c.b16 %v4853, %v4851
    %v4968 = vpack.c.b16 %v4854, %v4852
    %v4969 = vpack.c.b16 %v4857, %v4855
    %v4970 = vpack.c.b16 %v4858, %v4856
    %v4971 = vpack.c.b16 %v4861, %v4859
    %v4972 = vpack.c.b16 %v4862, %v4860
    %v4973 = vpack.c.b16 %v4865, %v4863
    %v4974 = vpack.c.b16 %v4866, %v4864
    %v4975 = vpack.c.b16 %v4869, %v4867
    %v4976 = vpack.c.b16 %v4870, %v4868
    %v4977 = vpack.c.b16 %v4873, %v4871
    %v4978 = vpack.c.b16 %v4874, %v4872
    %v4979 = vpack.c.b16 %v4877, %v4875
    %v4980 = vpack.c.b16 %v4878, %v4876
    %v4981 = vpack.c.b16 %v4881, %v4879
    %v4982 = vpack.c.b16 %v4882, %v4880
    %v4983 = vpack.c.b16 %v4885, %v4883
    %v4984 = vpack.c.b16 %v4886, %v4884
    %v4985 = vpack.c.b16 %v4889, %v4887
    %v4986 = vpack.c.b16 %v4890, %v4888
    %v4987 = vpack.c.b16 %v4893, %v4891
    %v4988 = vpack.c.b16 %v4894, %v4892
    %v4989 = vpack.c.b16 %v4897, %v4895
    %v4990 = vpack.c.b16 %v4898, %v4896
    %v4991 = vpack.c.b16 %v4901, %v4899
    %v4992 = vpack.c.b16 %v4902, %v4900
    %v4993 = vpack.c.b16 %v4905, %v4903
    %v4994 = vpack.c.b16 %v4906, %v4904
    %v4995 = vpack.c.b16 %v4909, %v4907
    %v4996 = vpack.c.b16 %v4910, %v4908
    %v4997 = vpack.c.b16 %v4913, %v4911
    %v4998 = vpack.c.b16 %v4914, %v4912
    %v4999 = vpack.c.b16 %v4917, %v4915
    %v5000 = vpack.c.b16 %v4918, %v4916
    %v5001 = vpack.c.b16 %v4921, %v4919
    %v5002 = vpack.c.b16 %v4922, %v4920
    %v5003 = vpack.c.b16 %v4925, %v4923
    %v5004 = vpack.c.b16 %v4926, %v4924
    %v5005 = vpack.c.b16 %v4929, %v4927
    %v5006 = vpack.c.b16 %v4930, %v4928
    %v5007 = vpack.c.b16 %v4933, %v4931
    %v5008 = vpack.c.b16 %v4934, %v4932
    %v5009 = vpack.c.b16 %v4937, %v4935
    %v5010 = vpack.c.b16 %v4938, %v4936
    %v5011 = vpack.c.b16 %v4941, %v4939
    %v5012 = vpack.c.b16 %v4942, %v4940
    %v5013 = vpack.c.b16 %v4945, %v4943
    %v5014 = vpack.c.b16 %v4946, %v4944
    %v5015 = vpack.c.b16 %v4949, %v4947
    %v5016 = vpack.c.b16 %v4950, %v4948
    %v5017 = vpack.c.b16 %v4953, %v4951
    %v5018 = vpack.c.b16 %v4954, %v4952
    %5083 = vmatprep.subr.bf16.mxu0 %v4956
    %5084 = vmatpush1.bf16.msra.mxu0 %v4955
    %5085 = vmatprep.subr.bf16.mxu0 %v4958
    %5086 = vmatpush1.bf16.msra.mxu0 %v4957
    %5087 = vmatprep.subr.bf16.mxu0 %v4960
    %5088 = vmatpush1.bf16.msra.mxu0 %v4959
    %5089 = vmatprep.subr.bf16.mxu0 %v4962
    %5090 = vmatpush1.bf16.msra.mxu0 %v4961
    %5091 = vmatprep.subr.bf16.mxu0 %v4964
    %5092 = vmatpush1.bf16.msra.mxu0 %v4963
    %5093 = vmatprep.subr.bf16.mxu0 %v4966
    %5094 = vmatpush1.bf16.msra.mxu0 %v4965
    %5095 = vmatprep.subr.bf16.mxu0 %v4968
    %5096 = vmatpush1.bf16.msra.mxu0 %v4967
    %5097 = vmatprep.subr.bf16.mxu0 %v4970
    %5098 = vmatpush1.bf16.msra.mxu0 %v4969
    %5099 = vmatprep.subr.bf16.mxu0 %v4972
    %5100 = vmatpush1.bf16.msra.mxu0 %v4971
    %5101 = vmatprep.subr.bf16.mxu0 %v4974
    %5102 = vmatpush1.bf16.msra.mxu0 %v4973
    %5103 = vmatprep.subr.bf16.mxu0 %v4976
    %5104 = vmatpush1.bf16.msra.mxu0 %v4975
    %5105 = vmatprep.subr.bf16.mxu0 %v4978
    %5106 = vmatpush1.bf16.msra.mxu0 %v4977
    %5107 = vmatprep.subr.bf16.mxu0 %v4980
    %5108 = vmatpush1.bf16.msra.mxu0 %v4979
    %5109 = vmatprep.subr.bf16.mxu0 %v4982
    %5110 = vmatpush1.bf16.msra.mxu0 %v4981
    %5111 = vmatprep.subr.bf16.mxu0 %v4984
    %5112 = vmatpush1.bf16.msra.mxu0 %v4983
    %5113 = vmatprep.subr.bf16.mxu0 %v4986
    %5114 = vmatpush1.bf16.msra.mxu0 %v4985
    %5115 = vmatprep.mubr.bf16.mxu0 %v4656
    %5116 = vmatmul.mubr.bf16.gmra.mrb[0].mxu0 %v4655
    %v5117 = vpop.f32.mrb[0].mxu0
    %v5118 = vadd.f32 %v4756, %v5117
    %v5119 = vpop.f32.mrb[0].mxu0
    %v5120 = vadd.f32 %v4760, %v5119
    %v5121 = vpop.f32.mrb[0].mxu0
    %v5122 = vadd.f32 %v4756, %v5121
    %v5123 = vpop.f32.mrb[0].mxu0
    %v5124 = vadd.f32 %v4760, %v5123
    %5125 = vmatprep.mubr.bf16.mxu0 %v4660
    %5126 = vmatmul.mubr.bf16.gmra.mrb[0].mxu0 %v4659
    %v5127 = vpop.f32.mrb[0].mxu0
    %v5128 = vadd.f32 %v4756, %v5127
    %v5129 = vpop.f32.mrb[0].mxu0
    %v5130 = vadd.f32 %v4760, %v5129
    %v5131 = vpop.f32.mrb[0].mxu0
    %v5132 = vadd.f32 %v4756, %v5131
    %v5133 = vpop.f32.mrb[0].mxu0
    %v5134 = vadd.f32 %v4760, %v5133
    %5135 = vmatprep.mubr.bf16.mxu0 %v4664
    %5136 = vmatmul.mubr.bf16.gmra.mrb[0].mxu0 %v4663
    %v5137 = vpop.f32.mrb[0].mxu0
    %v5138 = vadd.f32 %v4756, %v5137
    %v5139 = vpop.f32.mrb[0].mxu0
    %v5140 = vadd.f32 %v4760, %v5139
    %v5141 = vpop.f32.mrb[0].mxu0
    %v5142 = vadd.f32 %v4756, %v5141
    %v5143 = vpop.f32.mrb[0].mxu0
    %v5144 = vadd.f32 %v4760, %v5143
    %5145 = vmatprep.mubr.bf16.mxu0 %v4668
    %5146 = vmatmul.mubr.bf16.gmra.mrb[0].mxu0 %v4667
    %v5147 = vpop.f32.mrb[0].mxu0
    %v5148 = vadd.f32 %v4756, %v5147
    %v5149 = vpop.f32.mrb[0].mxu0
    %v5150 = vadd.f32 %v4760, %v5149
    %v5151 = vpop.f32.mrb[0].mxu0
    %v5152 = vadd.f32 %v4756, %v5151
    %v5153 = vpop.f32.mrb[0].mxu0
    %v5154 = vadd.f32 %v4760, %v5153
    %5155 = vmatprep.mubr.bf16.mxu0 %v4672
    %5156 = vmatmul.mubr.bf16.gmra.mrb[0].mxu0 %v4671
    %v5157 = vpop.f32.mrb[0].mxu0
    %v5158 = vadd.f32 %v4756, %v5157
    %v5159 = vpop.f32.mrb[0].mxu0
    %v5160 = vadd.f32 %v4760, %v5159
    %v5161 = vpop.f32.mrb[0].mxu0
    %v5162 = vadd.f32 %v4756, %v5161
    %v5163 = vpop.f32.mrb[0].mxu0
    %v5164 = vadd.f32 %v4760, %v5163
    %5165 = vmatprep.mubr.bf16.mxu0 %v4676
    %5166 = vmatmul.mubr.bf16.gmra.mrb[0].mxu0 %v4675
    %v5167 = vpop.f32.mrb[0].mxu0
    %v5168 = vadd.f32 %v4756, %v5167
    %v5169 = vpop.f32.mrb[0].mxu0
    %v5170 = vadd.f32 %v4760, %v5169
    %v5171 = vpop.f32.mrb[0].mxu0
    %v5172 = vadd.f32 %v4756, %v5171
    %v5173 = vpop.f32.mrb[0].mxu0
    %v5174 = vadd.f32 %v4760, %v5173
    %5175 = vmatprep.mubr.bf16.mxu0 %v4680
    %5176 = vmatmul.mubr.bf16.gmra.mrb[0].mxu0 %v4679
    %v5177 = vpop.f32.mrb[0].mxu0
    %v5178 = vadd.f32 %v4756, %v5177
    %v5179 = vpop.f32.mrb[0].mxu0
    %v5180 = vadd.f32 %v4760, %v5179
    %v5181 = vpop.f32.mrb[0].mxu0
    %v5182 = vadd.f32 %v4756, %v5181
    %v5183 = vpop.f32.mrb[0].mxu0
    %v5184 = vadd.f32 %v4760, %v5183
    %5185 = vmatprep.mubr.bf16.mxu0 %v4684
    %5186 = vmatmul.mubr.bf16.gmra.mrb[0].mxu0 %v4683
    %v5187 = vpop.f32.mrb[0].mxu0
    %v5188 = vadd.f32 %v4756, %v5187
    %v5189 = vpop.f32.mrb[0].mxu0
    %v5190 = vadd.f32 %v4760, %v5189
    %v5191 = vpop.f32.mrb[0].mxu0
    %v5192 = vadd.f32 %v4756, %v5191
    %v5193 = vpop.f32.mrb[0].mxu0
    %v5194 = vadd.f32 %v4760, %v5193
    %5195 = vdwg.mxu0
    %5196 = vmatprep.subr.bf16.mxu0 %v4988
    %5197 = vmatpush1.bf16.msra.mxu0 %v4987
    %5198 = vmatprep.subr.bf16.mxu0 %v4990
    %5199 = vmatpush1.bf16.msra.mxu0 %v4989
    %5200 = vmatprep.subr.bf16.mxu0 %v4992
    %5201 = vmatpush1.bf16.msra.mxu0 %v4991
    %5202 = vmatprep.subr.bf16.mxu0 %v4994
    %5203 = vmatpush1.bf16.msra.mxu0 %v4993
    %5204 = vmatprep.subr.bf16.mxu0 %v4996
    %5205 = vmatpush1.bf16.msra.mxu0 %v4995
    %5206 = vmatprep.subr.bf16.mxu0 %v4998
    %5207 = vmatpush1.bf16.msra.mxu0 %v4997
    %5208 = vmatprep.subr.bf16.mxu0 %v5000
    %5209 = vmatpush1.bf16.msra.mxu0 %v4999
    %5210 = vmatprep.subr.bf16.mxu0 %v5002
    %5211 = vmatpush1.bf16.msra.mxu0 %v5001
    %5212 = vmatprep.subr.bf16.mxu0 %v5004
    %5213 = vmatpush1.bf16.msra.mxu0 %v5003
    %5214 = vmatprep.subr.bf16.mxu0 %v5006
    %5215 = vmatpush1.bf16.msra.mxu0 %v5005
    %5216 = vmatprep.subr.bf16.mxu0 %v5008
    %5217 = vmatpush1.bf16.msra.mxu0 %v5007
    %5218 = vmatprep.subr.bf16.mxu0 %v5010
    %5219 = vmatpush1.bf16.msra.mxu0 %v5009
    %5220 = vmatprep.subr.bf16.mxu0 %v5012
    %5221 = vmatpush1.bf16.msra.mxu0 %v5011
    %5222 = vmatprep.subr.bf16.mxu0 %v5014
    %5223 = vmatpush1.bf16.msra.mxu0 %v5013
    %5224 = vmatprep.subr.bf16.mxu0 %v5016
    %5225 = vmatpush1.bf16.msra.mxu0 %v5015
    %5226 = vmatprep.subr.bf16.mxu0 %v5018
    %5227 = vmatpush1.bf16.msra.mxu0 %v5017
    %5228 = vmatprep.mubr.bf16.mxu0 %v4658
    %5229 = vmatmul.mubr.bf16.gmra.mrb[0].mxu0 %v4657
    %v5230 = vpop.f32.mrb[0].mxu0
    %v5231 = vadd.f32 %v5118, %v5230
    %v5232 = vpop.f32.mrb[0].mxu0
    %v5233 = vadd.f32 %v5120, %v5232
    %v5234 = vpop.f32.mrb[0].mxu0
    %v5235 = vadd.f32 %v5122, %v5234
    %v5236 = vpop.f32.mrb[0].mxu0
    %v5237 = vadd.f32 %v5124, %v5236
    %5238 = vmatprep.mubr.bf16.mxu0 %v4662
    %5239 = vmatmul.mubr.bf16.gmra.mrb[0].mxu0 %v4661
    %v5240 = vpop.f32.mrb[0].mxu0
    %v5241 = vadd.f32 %v5128, %v5240
    %v5242 = vpop.f32.mrb[0].mxu0
    %v5243 = vadd.f32 %v5130, %v5242
    %v5244 = vpop.f32.mrb[0].mxu0
    %v5245 = vadd.f32 %v5132, %v5244
    %v5246 = vpop.f32.mrb[0].mxu0
    %v5247 = vadd.f32 %v5134, %v5246
    %5248 = vmatprep.mubr.bf16.mxu0 %v4666
    %5249 = vmatmul.mubr.bf16.gmra.mrb[0].mxu0 %v4665
    %v5250 = vpop.f32.mrb[0].mxu0
    %v5251 = vadd.f32 %v5138, %v5250
    %v5252 = vpop.f32.mrb[0].mxu0
    %v5253 = vadd.f32 %v5140, %v5252
    %v5254 = vpop.f32.mrb[0].mxu0
    %v5255 = vadd.f32 %v5142, %v5254
    %v5256 = vpop.f32.mrb[0].mxu0
    %v5257 = vadd.f32 %v5144, %v5256
    %5258 = vmatprep.mubr.bf16.mxu0 %v4670
    %5259 = vmatmul.mubr.bf16.gmra.mrb[0].mxu0 %v4669
    %v5260 = vpop.f32.mrb[0].mxu0
    %v5261 = vadd.f32 %v5148, %v5260
    %v5262 = vpop.f32.mrb[0].mxu0
    %v5263 = vadd.f32 %v5150, %v5262
    %v5264 = vpop.f32.mrb[0].mxu0
    %v5265 = vadd.f32 %v5152, %v5264
    %v5266 = vpop.f32.mrb[0].mxu0
    %v5267 = vadd.f32 %v5154, %v5266
    %5268 = vmatprep.mubr.bf16.mxu0 %v4674
    %5269 = vmatmul.mubr.bf16.gmra.mrb[0].mxu0 %v4673
    %v5270 = vpop.f32.mrb[0].mxu0
    %v5271 = vadd.f32 %v5158, %v5270
    %v5272 = vpop.f32.mrb[0].mxu0
    %v5273 = vadd.f32 %v5160, %v5272
    %v5274 = vpop.f32.mrb[0].mxu0
    %v5275 = vadd.f32 %v5162, %v5274
    %v5276 = vpop.f32.mrb[0].mxu0
    %v5277 = vadd.f32 %v5164, %v5276
    %5278 = vmatprep.mubr.bf16.mxu0 %v4678
    %5279 = vmatmul.mubr.bf16.gmra.mrb[0].mxu0 %v4677
    %v5280 = vpop.f32.mrb[0].mxu0
    %v5281 = vadd.f32 %v5168, %v5280
    %v5282 = vpop.f32.mrb[0].mxu0
    %v5283 = vadd.f32 %v5170, %v5282
    %v5284 = vpop.f32.mrb[0].mxu0
    %v5285 = vadd.f32 %v5172, %v5284
    %v5286 = vpop.f32.mrb[0].mxu0
    %v5287 = vadd.f32 %v5174, %v5286
    %5288 = vmatprep.mubr.bf16.mxu0 %v4682
    %5289 = vmatmul.mubr.bf16.gmra.mrb[0].mxu0 %v4681
    %v5290 = vpop.f32.mrb[0].mxu0
    %v5291 = vadd.f32 %v5178, %v5290
    %v5292 = vpop.f32.mrb[0].mxu0
    %v5293 = vadd.f32 %v5180, %v5292
    %v5294 = vpop.f32.mrb[0].mxu0
    %v5295 = vadd.f32 %v5182, %v5294
    %v5296 = vpop.f32.mrb[0].mxu0
    %v5297 = vadd.f32 %v5184, %v5296
    %5298 = vmatprep.mubr.bf16.mxu0 %v4686
    %5299 = vmatmul.mubr.bf16.gmra.mrb[0].mxu0 %v4685
    %v5300 = vpop.f32.mrb[0].mxu0
    %v5301 = vadd.f32 %v5188, %v5300
    %v5302 = vpop.f32.mrb[0].mxu0
    %v5303 = vadd.f32 %v5190, %v5302
    %v5304 = vpop.f32.mrb[0].mxu0
    %v5305 = vadd.f32 %v5192, %v5304
    %v5306 = vpop.f32.mrb[0].mxu0
    %v5307 = vadd.f32 %v5194, %v5306
    %5308 = vdwg.mxu0
    %vm5309 = vcmp.ge.f32.partialorder %v5231, 0.0
    %vm5310 = vcmp.ge.f32.partialorder %v5233, 0.0
    %vm5311 = vcmp.ge.f32.partialorder %v5235, 0.0
    %vm5312 = vcmp.ge.f32.partialorder %v5237, 0.0
    %vm5313 = vcmp.ge.f32.partialorder %v5241, 0.0
    %vm5314 = vcmp.ge.f32.partialorder %v5243, 0.0
    %vm5315 = vcmp.ge.f32.partialorder %v5245, 0.0
    %vm5316 = vcmp.ge.f32.partialorder %v5247, 0.0
    %vm5317 = vcmp.ge.f32.partialorder %v5251, 0.0
    %vm5318 = vcmp.ge.f32.partialorder %v5253, 0.0
    %vm5319 = vcmp.ge.f32.partialorder %v5255, 0.0
    %vm5320 = vcmp.ge.f32.partialorder %v5257, 0.0
    %vm5321 = vcmp.ge.f32.partialorder %v5261, 0.0
    %vm5322 = vcmp.ge.f32.partialorder %v5263, 0.0
    %vm5323 = vcmp.ge.f32.partialorder %v5265, 0.0
    %vm5324 = vcmp.ge.f32.partialorder %v5267, 0.0
    %vm5325 = vcmp.ge.f32.partialorder %v5271, 0.0
    %vm5326 = vcmp.ge.f32.partialorder %v5273, 0.0
    %vm5327 = vcmp.ge.f32.partialorder %v5275, 0.0
    %vm5328 = vcmp.ge.f32.partialorder %v5277, 0.0
    %vm5329 = vcmp.ge.f32.partialorder %v5281, 0.0
    %vm5330 = vcmp.ge.f32.partialorder %v5283, 0.0
    %vm5331 = vcmp.ge.f32.partialorder %v5285, 0.0
    %vm5332 = vcmp.ge.f32.partialorder %v5287, 0.0
    %vm5333 = vcmp.ge.f32.partialorder %v5291, 0.0
    %vm5334 = vcmp.ge.f32.partialorder %v5293, 0.0
    %vm5335 = vcmp.ge.f32.partialorder %v5295, 0.0
    %vm5336 = vcmp.ge.f32.partialorder %v5297, 0.0
    %vm5337 = vcmp.ge.f32.partialorder %v5301, 0.0
    %vm5338 = vcmp.ge.f32.partialorder %v5303, 0.0
    %vm5339 = vcmp.ge.f32.partialorder %v5305, 0.0
    %vm5340 = vcmp.ge.f32.partialorder %v5307, 0.0
    %v5341 = vstv %s178
    %v5342 = vmul.f32 %v5341, %v5231
    %v5343 = vmul.f32 %v5341, %v5233
    %v5344 = vmul.f32 %v5341, %v5235
    %v5345 = vmul.f32 %v5341, %v5237
    %v5346 = vmul.f32 %v5341, %v5241
    %v5347 = vmul.f32 %v5341, %v5243
    %v5348 = vmul.f32 %v5341, %v5245
    %v5349 = vmul.f32 %v5341, %v5247
    %v5350 = vmul.f32 %v5341, %v5251
    %v5351 = vmul.f32 %v5341, %v5253
    %v5352 = vmul.f32 %v5341, %v5255
    %v5353 = vmul.f32 %v5341, %v5257
    %v5354 = vmul.f32 %v5341, %v5261
    %v5355 = vmul.f32 %v5341, %v5263
    %v5356 = vmul.f32 %v5341, %v5265
    %v5357 = vmul.f32 %v5341, %v5267
    %v5358 = vmul.f32 %v5341, %v5271
    %v5359 = vmul.f32 %v5341, %v5273
    %v5360 = vmul.f32 %v5341, %v5275
    %v5361 = vmul.f32 %v5341, %v5277
    %v5362 = vmul.f32 %v5341, %v5281
    %v5363 = vmul.f32 %v5341, %v5283
    %v5364 = vmul.f32 %v5341, %v5285
    %v5365 = vmul.f32 %v5341, %v5287
    %v5366 = vmul.f32 %v5341, %v5291
    %v5367 = vmul.f32 %v5341, %v5293
    %v5368 = vmul.f32 %v5341, %v5295
    %v5369 = vmul.f32 %v5341, %v5297
    %v5370 = vmul.f32 %v5341, %v5301
    %v5371 = vmul.f32 %v5341, %v5303
    %v5372 = vmul.f32 %v5341, %v5305
    %v5373 = vmul.f32 %v5341, %v5307
    %v5374 = vsel %vm5309, %v5231, %v5342
    %v5375 = vsel %vm5310, %v5233, %v5343
    %v5376 = vsel %vm5311, %v5235, %v5344
    %v5377 = vsel %vm5312, %v5237, %v5345
    %v5378 = vsel %vm5313, %v5241, %v5346
    %v5379 = vsel %vm5314, %v5243, %v5347
    %v5380 = vsel %vm5315, %v5245, %v5348
    %v5381 = vsel %vm5316, %v5247, %v5349
    %v5382 = vsel %vm5317, %v5251, %v5350
    %v5383 = vsel %vm5318, %v5253, %v5351
    %v5384 = vsel %vm5319, %v5255, %v5352
    %v5385 = vsel %vm5320, %v5257, %v5353
    %v5386 = vsel %vm5321, %v5261, %v5354
    %v5387 = vsel %vm5322, %v5263, %v5355
    %v5388 = vsel %vm5323, %v5265, %v5356
    %v5389 = vsel %vm5324, %v5267, %v5357
    %v5390 = vsel %vm5325, %v5271, %v5358
    %v5391 = vsel %vm5326, %v5273, %v5359
    %v5392 = vsel %vm5327, %v5275, %v5360
    %v5393 = vsel %vm5328, %v5277, %v5361
    %v5394 = vsel %vm5329, %v5281, %v5362
    %v5395 = vsel %vm5330, %v5283, %v5363
    %v5396 = vsel %vm5331, %v5285, %v5364
    %v5397 = vsel %vm5332, %v5287, %v5365
    %v5398 = vsel %vm5333, %v5291, %v5366
    %v5399 = vsel %vm5334, %v5293, %v5367
    %v5400 = vsel %vm5335, %v5295, %v5368
    %v5401 = vsel %vm5336, %v5297, %v5369
    %v5402 = vsel %vm5337, %v5301, %v5370
    %v5403 = vsel %vm5338, %v5303, %v5371
    %v5404 = vsel %vm5339, %v5305, %v5372
    %v5405 = vsel %vm5340, %v5307, %v5373
    %v5406 = vpack.c.bf16 %v5376, %v5374
    %v5407 = vpack.c.bf16 %v5377, %v5375
    %v5408 = vpack.c.bf16 %v5380, %v5378
    %v5409 = vpack.c.bf16 %v5381, %v5379
    %v5410 = vpack.c.bf16 %v5384, %v5382
    %v5411 = vpack.c.bf16 %v5385, %v5383
    %v5412 = vpack.c.bf16 %v5388, %v5386
    %v5413 = vpack.c.bf16 %v5389, %v5387
    %v5414 = vpack.c.bf16 %v5392, %v5390
    %v5415 = vpack.c.bf16 %v5393, %v5391
    %v5416 = vpack.c.bf16 %v5396, %v5394
    %v5417 = vpack.c.bf16 %v5397, %v5395
    %v5418 = vpack.c.bf16 %v5400, %v5398
    %v5419 = vpack.c.bf16 %v5401, %v5399
    %v5420 = vpack.c.bf16 %v5404, %v5402
    %v5421 = vpack.c.bf16 %v5405, %v5403
    %v5422 = vld [vmem:[#allocation17] sm:$0xf]
    %v5423 = vld [vmem:[#allocation17 + $0x4] sm:$0xf]
    %v5424 = vld [vmem:[#allocation17 + $0x8] sm:$0xf]
    %v5425 = vld [vmem:[#allocation17 + $0xc] sm:$0xf]
    %v5426 = vld [vmem:[#allocation17 + $0x10] sm:$0xf]
    %v5427 = vld [vmem:[#allocation17 + $0x14] sm:$0xf]
    %v5428 = vld [vmem:[#allocation17 + $0x18] sm:$0xf]
    %v5429 = vld [vmem:[#allocation17 + $0x1c] sm:$0xf]
    %v5430 = vld [vmem:[#allocation17 + $0x20] sm:$0xf]
    %v5431 = vld [vmem:[#allocation17 + $0x24] sm:$0xf]
    %v5432 = vld [vmem:[#allocation17 + $0x28] sm:$0xf]
    %v5433 = vld [vmem:[#allocation17 + $0x2c] sm:$0xf]
    %v5434 = vld [vmem:[#allocation17 + $0x30] sm:$0xf]
    %v5435 = vld [vmem:[#allocation17 + $0x34] sm:$0xf]
    %v5436 = vld [vmem:[#allocation17 + $0x38] sm:$0xf]
    %v5437 = vld [vmem:[#allocation17 + $0x3c] sm:$0xf]
    %v5438 = vld [vmem:[#allocation17 + $0x40] sm:$0xf]
    %v5439 = vld [vmem:[#allocation17 + $0x44] sm:$0xf]
    %v5440 = vld [vmem:[#allocation17 + $0x48] sm:$0xf]
    %v5441 = vld [vmem:[#allocation17 + $0x4c] sm:$0xf]
    %v5442 = vld [vmem:[#allocation17 + $0x50] sm:$0xf]
    %v5443 = vld [vmem:[#allocation17 + $0x54] sm:$0xf]
    %v5444 = vld [vmem:[#allocation17 + $0x58] sm:$0xf]
    %v5445 = vld [vmem:[#allocation17 + $0x5c] sm:$0xf]
    %v5446 = vld [vmem:[#allocation17 + $0x60] sm:$0xf]
    %v5447 = vld [vmem:[#allocation17 + $0x64] sm:$0xf]
    %v5448 = vld [vmem:[#allocation17 + $0x68] sm:$0xf]
    %v5449 = vld [vmem:[#allocation17 + $0x6c] sm:$0xf]
    %v5450 = vld [vmem:[#allocation17 + $0x70] sm:$0xf]
    %v5451 = vld [vmem:[#allocation17 + $0x74] sm:$0xf]
    %v5452 = vld [vmem:[#allocation17 + $0x78] sm:$0xf]
    %v5453 = vld [vmem:[#allocation17 + $0x7c] sm:$0xf]
    %v5454 = vld [vmem:[%s9] sm:$0x1]
    %v5456 = vlaneseq
    %v5457 = vshrl.u32 %v5456, 7
    %v5458 = vsub.s32 0, %v5457
    %v5459 = vrot.slane %v5454, %v5458
    %v5493 = vunpack.c.l.b16 %v5422
    %v5494 = vunpack.c.l.b16 %v5423
    %v5495 = vunpack.c.l.b16 %v5424
    %v5496 = vunpack.c.l.b16 %v5425
    %v5497 = vunpack.c.l.b16 %v5426
    %v5498 = vunpack.c.l.b16 %v5427
    %v5499 = vunpack.c.l.b16 %v5428
    %v5500 = vunpack.c.l.b16 %v5429
    %v5501 = vunpack.c.l.b16 %v5430
    %v5502 = vunpack.c.l.b16 %v5431
    %v5503 = vunpack.c.l.b16 %v5432
    %v5504 = vunpack.c.l.b16 %v5433
    %v5505 = vunpack.c.l.b16 %v5434
    %v5506 = vunpack.c.l.b16 %v5435
    %v5507 = vunpack.c.l.b16 %v5436
    %v5508 = vunpack.c.l.b16 %v5437
    %v5509 = vunpack.c.l.b16 %v5438
    %v5510 = vunpack.c.l.b16 %v5439
    %v5511 = vunpack.c.l.b16 %v5440
    %v5512 = vunpack.c.l.b16 %v5441
    %v5513 = vunpack.c.l.b16 %v5442
    %v5514 = vunpack.c.l.b16 %v5443
    %v5515 = vunpack.c.l.b16 %v5444
    %v5516 = vunpack.c.l.b16 %v5445
    %v5517 = vunpack.c.l.b16 %v5446
    %v5518 = vunpack.c.l.b16 %v5447
    %v5519 = vunpack.c.l.b16 %v5448
    %v5520 = vunpack.c.l.b16 %v5449
    %v5521 = vunpack.c.l.b16 %v5450
    %v5522 = vunpack.c.l.b16 %v5451
    %v5523 = vunpack.c.l.b16 %v5452
    %v5524 = vunpack.c.l.b16 %v5453
    %v5525 = vpack.c.b16 %v5494, %v5493
    %v5526 = vpack.c.b16 %v5496, %v5495
    %v5527 = vpack.c.b16 %v5498, %v5497
    %v5528 = vpack.c.b16 %v5500, %v5499
    %v5529 = vpack.c.b16 %v5502, %v5501
    %v5530 = vpack.c.b16 %v5504, %v5503
    %v5531 = vpack.c.b16 %v5506, %v5505
    %v5532 = vpack.c.b16 %v5508, %v5507
    %v5533 = vpack.c.b16 %v5510, %v5509
    %v5534 = vpack.c.b16 %v5512, %v5511
    %v5535 = vpack.c.b16 %v5514, %v5513
    %v5536 = vpack.c.b16 %v5516, %v5515
    %v5537 = vpack.c.b16 %v5518, %v5517
    %v5538 = vpack.c.b16 %v5520, %v5519
    %v5539 = vpack.c.b16 %v5522, %v5521
    %v5540 = vpack.c.b16 %v5524, %v5523
    %5557 = vmatprep.subr.bf16.mxu0 0
    %5558 = vmatpush1.bf16.msra.mxu0 %v5525
    %5559 = vmatprep.subr.bf16.mxu0 0
    %5560 = vmatpush1.bf16.msra.mxu0 %v5526
    %5561 = vmatprep.subr.bf16.mxu0 0
    %5562 = vmatpush1.bf16.msra.mxu0 %v5527
    %5563 = vmatprep.subr.bf16.mxu0 0
    %5564 = vmatpush1.bf16.msra.mxu0 %v5528
    %5565 = vmatprep.subr.bf16.mxu0 0
    %5566 = vmatpush1.bf16.msra.mxu0 %v5529
    %5567 = vmatprep.subr.bf16.mxu0 0
    %5568 = vmatpush1.bf16.msra.mxu0 %v5530
    %5569 = vmatprep.subr.bf16.mxu0 0
    %5570 = vmatpush1.bf16.msra.mxu0 %v5531
    %5571 = vmatprep.subr.bf16.mxu0 0
    %5572 = vmatpush1.bf16.msra.mxu0 %v5532
    %5573 = vmatprep.subr.bf16.mxu0 0
    %5574 = vmatpush1.bf16.msra.mxu0 %v5533
    %5575 = vmatprep.subr.bf16.mxu0 0
    %5576 = vmatpush1.bf16.msra.mxu0 %v5534
    %5577 = vmatprep.subr.bf16.mxu0 0
    %5578 = vmatpush1.bf16.msra.mxu0 %v5535
    %5579 = vmatprep.subr.bf16.mxu0 0
    %5580 = vmatpush1.bf16.msra.mxu0 %v5536
    %5581 = vmatprep.subr.bf16.mxu0 0
    %5582 = vmatpush1.bf16.msra.mxu0 %v5537
    %5583 = vmatprep.subr.bf16.mxu0 0
    %5584 = vmatpush1.bf16.msra.mxu0 %v5538
    %5585 = vmatprep.subr.bf16.mxu0 0
    %5586 = vmatpush1.bf16.msra.mxu0 %v5539
    %5587 = vmatprep.subr.bf16.mxu0 0
    %5588 = vmatpush1.bf16.msra.mxu0 %v5540
    %5589 = vmatprep.mubr.bf16.mxu0 %v5407
    %5590 = vmatmul.mubr.bf16.gmra.mrb[0].mxu0 %v5406
    %v5591 = vpop.f32.mrb[0].mxu0
    %v5592 = vadd.f32 %v5459, %v5591
    %v5593 = vpop.f32.mrb[0].mxu0
    %v5594 = vpop.f32.mrb[0].mxu0
    %v5595 = vadd.f32 %v5459, %v5594
    %v5596 = vpop.f32.mrb[0].mxu0
    %5597 = vmatprep.mubr.bf16.mxu0 %v5409
    %5598 = vmatmul.mubr.bf16.gmra.mrb[0].mxu0 %v5408
    %v5599 = vpop.f32.mrb[0].mxu0
    %v5600 = vadd.f32 %v5459, %v5599
    %v5601 = vpop.f32.mrb[0].mxu0
    %v5602 = vpop.f32.mrb[0].mxu0
    %v5603 = vadd.f32 %v5459, %v5602
    %v5604 = vpop.f32.mrb[0].mxu0
    %5605 = vmatprep.mubr.bf16.mxu0 %v5411
    %5606 = vmatmul.mubr.bf16.gmra.mrb[0].mxu0 %v5410
    %v5607 = vpop.f32.mrb[0].mxu0
    %v5608 = vadd.f32 %v5459, %v5607
    %v5609 = vpop.f32.mrb[0].mxu0
    %v5610 = vpop.f32.mrb[0].mxu0
    %v5611 = vadd.f32 %v5459, %v5610
    %v5612 = vpop.f32.mrb[0].mxu0
    %5613 = vmatprep.mubr.bf16.mxu0 %v5413
    %5614 = vmatmul.mubr.bf16.gmra.mrb[0].mxu0 %v5412
    %v5615 = vpop.f32.mrb[0].mxu0
    %v5616 = vadd.f32 %v5459, %v5615
    %v5617 = vpop.f32.mrb[0].mxu0
    %v5618 = vpop.f32.mrb[0].mxu0
    %v5619 = vadd.f32 %v5459, %v5618
    %v5620 = vpop.f32.mrb[0].mxu0
    %5621 = vmatprep.mubr.bf16.mxu0 %v5415
    %5622 = vmatmul.mubr.bf16.gmra.mrb[0].mxu0 %v5414
    %v5623 = vpop.f32.mrb[0].mxu0
    %v5624 = vadd.f32 %v5459, %v5623
    %v5625 = vpop.f32.mrb[0].mxu0
    %v5626 = vpop.f32.mrb[0].mxu0
    %v5627 = vadd.f32 %v5459, %v5626
    %v5628 = vpop.f32.mrb[0].mxu0
    %5629 = vmatprep.mubr.bf16.mxu0 %v5417
    %5630 = vmatmul.mubr.bf16.gmra.mrb[0].mxu0 %v5416
    %v5631 = vpop.f32.mrb[0].mxu0
    %v5632 = vadd.f32 %v5459, %v5631
    %v5633 = vpop.f32.mrb[0].mxu0
    %v5634 = vpop.f32.mrb[0].mxu0
    %v5635 = vadd.f32 %v5459, %v5634
    %v5636 = vpop.f32.mrb[0].mxu0
    %5637 = vmatprep.mubr.bf16.mxu0 %v5419
    %5638 = vmatmul.mubr.bf16.gmra.mrb[0].mxu0 %v5418
    %v5639 = vpop.f32.mrb[0].mxu0
    %v5640 = vadd.f32 %v5459, %v5639
    %v5641 = vpop.f32.mrb[0].mxu0
    %v5642 = vpop.f32.mrb[0].mxu0
    %v5643 = vadd.f32 %v5459, %v5642
    %v5644 = vpop.f32.mrb[0].mxu0
    %5645 = vmatprep.mubr.bf16.mxu0 %v5421
    %5646 = vmatmul.mubr.bf16.gmra.mrb[0].mxu0 %v5420
    %v5647 = vpop.f32.mrb[0].mxu0
    %v5648 = vadd.f32 %v5459, %v5647
    %v5649 = vpop.f32.mrb[0].mxu0
    %v5650 = vpop.f32.mrb[0].mxu0
    %v5651 = vadd.f32 %v5459, %v5650
    %v5652 = vpop.f32.mrb[0].mxu0
    %5653 = vdwg.mxu0
    %v5654 = vtanh.pop %v5592
    %v5655 = vtanh.pop %v5595
    %v5656 = vtanh.pop %v5600
    %v5657 = vtanh.pop %v5603
    %v5658 = vtanh.pop %v5608
    %v5659 = vtanh.pop %v5611
    %v5660 = vtanh.pop %v5616
    %v5661 = vtanh.pop %v5619
    %v5662 = vtanh.pop %v5624
    %v5663 = vtanh.pop %v5627
    %v5664 = vtanh.pop %v5632
    %v5665 = vtanh.pop %v5635
    %v5666 = vtanh.pop %v5640
    %v5667 = vtanh.pop %v5643
    %v5668 = vtanh.pop %v5648
    %v5669 = vtanh.pop %v5651
    %v5670 = vld [vmem:[%s10] sm:$0x1]
    %v5671 = vld [vmem:[#allocation5] sm:$0x1]
    %5673 = vset.pattern.permute.xlu0 0
    %5674 = vperm.xlu0 %5673, %v5671
    %v5675 = vpop.permute.xlu0 %5674
    %v5677 = vlaneseq
    %v5678 = vshrl.u32 %v5677, 7
    %v5679 = vsub.s32 0, %v5678
    %v5680 = vrot.slane %v5675, %v5679
    %5681 = vmatprep.subr.mxu0 0.0
    %5682 = vmatpush1.xpose.msra.mxu0 %v5654
    %5683 = vmatprep.subr.mxu0 0.0
    %5684 = vmatpush1.xpose.msra.mxu0 %v5655
    %5685 = vmatprep.subr.mxu0 0.0
    %5686 = vmatpush1.xpose.msra.mxu0 %v5656
    %5687 = vmatprep.subr.mxu0 0.0
    %5688 = vmatpush1.xpose.msra.mxu0 %v5657
    %5689 = vmatprep.subr.mxu0 0.0
    %5690 = vmatpush1.xpose.msra.mxu0 %v5658
    %5691 = vmatprep.subr.mxu0 0.0
    %5692 = vmatpush1.xpose.msra.mxu0 %v5659
    %5693 = vmatprep.subr.mxu0 0.0
    %5694 = vmatpush1.xpose.msra.mxu0 %v5660
    %5695 = vmatprep.subr.mxu0 0.0
    %5696 = vmatpush1.xpose.msra.mxu0 %v5661
    %5697 = vmatprep.subr.mxu0 0.0
    %5698 = vmatpush1.xpose.msra.mxu0 %v5662
    %5699 = vmatprep.subr.mxu0 0.0
    %5700 = vmatpush1.xpose.msra.mxu0 %v5663
    %5701 = vmatprep.subr.mxu0 0.0
    %5702 = vmatpush1.xpose.msra.mxu0 %v5664
    %5703 = vmatprep.subr.mxu0 0.0
    %5704 = vmatpush1.xpose.msra.mxu0 %v5665
    %5705 = vmatprep.subr.mxu0 0.0
    %5706 = vmatpush1.xpose.msra.mxu0 %v5666
    %5707 = vmatprep.subr.mxu0 0.0
    %5708 = vmatpush1.xpose.msra.mxu0 %v5667
    %5709 = vmatprep.subr.mxu0 0.0
    %5710 = vmatpush1.xpose.msra.mxu0 %v5668
    %5711 = vmatprep.subr.mxu0 0.0
    %5712 = vmatpush1.xpose.msra.mxu0 %v5669
    %5713 = vmatprep.subr.mxu0 0.0
    %5714 = vmatpush1.xpose.msra.mxu0 0.0
    %5715 = vmatprep.subr.mxu0 0.0
    %5716 = vmatpush1.xpose.msra.mxu0 0.0
    %5717 = vmatprep.subr.mxu0 0.0
    %5718 = vmatpush1.xpose.msra.mxu0 0.0
    %5719 = vmatprep.subr.mxu0 0.0
    %5720 = vmatpush1.xpose.msra.mxu0 0.0
    %5721 = vmatprep.subr.mxu0 0.0
    %5722 = vmatpush1.xpose.msra.mxu0 0.0
    %5723 = vmatprep.subr.mxu0 0.0
    %5724 = vmatpush1.xpose.msra.mxu0 0.0
    %5725 = vmatprep.subr.mxu0 0.0
    %5726 = vmatpush1.xpose.msra.mxu0 0.0
    %5727 = vmatprep.subr.mxu0 0.0
    %5728 = vmatpush1.xpose.msra.mxu0 0.0
    %5729 = vmatprep.subr.mxu0 0.0
    %5730 = vmatpush1.xpose.msra.mxu0 0.0
    %5731 = vmatprep.subr.mxu0 0.0
    %5732 = vmatpush1.xpose.msra.mxu0 0.0
    %5733 = vmatprep.subr.mxu0 0.0
    %5734 = vmatpush1.xpose.msra.mxu0 0.0
    %5735 = vmatprep.subr.mxu0 0.0
    %5736 = vmatpush1.xpose.msra.mxu0 0.0
    %5737 = vmatprep.subr.mxu0 0.0
    %5738 = vmatpush1.xpose.msra.mxu0 0.0
    %5739 = vmatprep.subr.mxu0 0.0
    %5740 = vmatpush1.xpose.msra.mxu0 0.0
    %5741 = vmatprep.subr.mxu0 0.0
    %5742 = vmatpush1.xpose.msra.mxu0 0.0
    %5743 = vmatprep.subr.mxu0 0.0
    %5744 = vmatpush1.xpose.msra.mxu0 0.0
    %5745 = vmatprep.mubr.f32.mxu0 0.0
    %5746 = vmatmul.mubr.f32.gmra.mrb[0].mxu0 %v5670
    %v5747 = vpop.f32.mrb[0].mxu0
    %v5748 = vadd.f32 %v5680, %v5747
    %v5749 = vpop.f32.mrb[0].mxu0
    %5750 = vdwg.mxu0
    %s5751 = smul.u32 0, 128
    %v5752 = vlaneseq
    %v5753 = vand.u32 %v5752, 127
    %v5754 = vstv %s5751
    %v5755 = vadd.s32 %v5754, %v5753
    %vm5756 = vcmp.lt.s32.totalorder %v5755, 8
    %v5757 = vsel %vm5756, %v5748, -1e+30
    %v5758 = vld [vmem:[#allocation2] sm:$0x1]
    %vm5759 = vcmask 1040384
    %v5760 = vsel %vm5759, %v5757, -inf
    %5761 = vmax.xlane.f32.xlu0 %v5760
    %v5762 = vpop.xlane.xlu0 %5761
    %v5763 = vmax.f32 %v5758, %v5762
    %v5764 = vsub.f32 %v5758, %v5763
    %v5765 = vmul.f32 %v5764, 1.442695
    %v5766 = vpow.pop %v5765
    %5768 = vset.pattern.permute.xlu0 0
    %5769 = vperm.xlu0 %5768, %v5763
    %v5770 = vpop.permute.xlu0 %5769
    %v5772 = vlaneseq
    %v5773 = vshrl.u32 %v5772, 7
    %v5774 = vsub.s32 0, %v5773
    %v5775 = vrot.slane %v5770, %v5774
    %v5776 = vsub.f32 %v5757, %v5775
    %v5777 = vmul.f32 %v5776, 1.442695
    %v5778 = vpow.pop %v5777
    %v5779 = vld [vmem:[#allocation3] sm:$0x1]
    %v5780 = vmul.f32 %v5779, %v5766
    %v5781 = vsel %vm5759, %v5778, 0.0
    %5782 = vadd.xlane.f32.xlu0 %v5781
    %v5783 = vpop.xlane.xlu0 %5782
    %v5784 = vadd.f32 %v5780, %v5783
    %vm5785 = vcmask 0
    %5786 = vst.msk [vmem:[#allocation3] sm:$0x1] %vm5785, %v5784
    %v5787 = vld [vmem:[#allocation4] sm:$0x3]
    %5789 = vset.pattern.permute.xlu0 0
    %5790 = vperm.xlu0 %5789, %v5766
    %v5791 = vpop.permute.xlu0 %5790
    %v5793 = vlaneseq
    %v5794 = vshrl.u32 %v5793, 7
    %v5795 = vsub.s32 0, %v5794
    %v5796 = vrot.slane %v5791, %v5795
    %v5797 = vmul.f32 %v5787, %v5796
    %5798 = vmatprep.subr.mxu0 %v5375
    %5799 = vmatpush1.msra.mxu0 %v5374
    %5800 = vmatprep.subr.mxu0 %v5377
    %5801 = vmatpush1.msra.mxu0 %v5376
    %5802 = vmatprep.subr.mxu0 %v5379
    %5803 = vmatpush1.msra.mxu0 %v5378
    %5804 = vmatprep.subr.mxu0 %v5381
    %5805 = vmatpush1.msra.mxu0 %v5380
    %5806 = vmatprep.subr.mxu0 %v5383
    %5807 = vmatpush1.msra.mxu0 %v5382
    %5808 = vmatprep.subr.mxu0 %v5385
    %5809 = vmatpush1.msra.mxu0 %v5384
    %5810 = vmatprep.subr.mxu0 %v5387
    %5811 = vmatpush1.msra.mxu0 %v5386
    %5812 = vmatprep.subr.mxu0 %v5389
    %5813 = vmatpush1.msra.mxu0 %v5388
    %5814 = vmatprep.subr.mxu0 %v5391
    %5815 = vmatpush1.msra.mxu0 %v5390
    %5816 = vmatprep.subr.mxu0 %v5393
    %5817 = vmatpush1.msra.mxu0 %v5392
    %5818 = vmatprep.subr.mxu0 %v5395
    %5819 = vmatpush1.msra.mxu0 %v5394
    %5820 = vmatprep.subr.mxu0 %v5397
    %5821 = vmatpush1.msra.mxu0 %v5396
    %5822 = vmatprep.subr.mxu0 %v5399
    %5823 = vmatpush1.msra.mxu0 %v5398
    %5824 = vmatprep.subr.mxu0 %v5401
    %5825 = vmatpush1.msra.mxu0 %v5400
    %5826 = vmatprep.subr.mxu0 %v5403
    %5827 = vmatpush1.msra.mxu0 %v5402
    %5828 = vmatprep.subr.mxu0 %v5405
    %5829 = vmatpush1.msra.mxu0 %v5404
    %5830 = vmatprep.subr.mxu0 0.0
    %5831 = vmatpush1.msra.mxu0 0.0
    %5832 = vmatprep.subr.mxu0 0.0
    %5833 = vmatpush1.msra.mxu0 0.0
    %5834 = vmatprep.subr.mxu0 0.0
    %5835 = vmatpush1.msra.mxu0 0.0
    %5836 = vmatprep.subr.mxu0 0.0
    %5837 = vmatpush1.msra.mxu0 0.0
    %5838 = vmatprep.subr.mxu0 0.0
    %5839 = vmatpush1.msra.mxu0 0.0
    %5840 = vmatprep.subr.mxu0 0.0
    %5841 = vmatpush1.msra.mxu0 0.0
    %5842 = vmatprep.subr.mxu0 0.0
    %5843 = vmatpush1.msra.mxu0 0.0
    %5844 = vmatprep.subr.mxu0 0.0
    %5845 = vmatpush1.msra.mxu0 0.0
    %5846 = vmatprep.subr.mxu0 0.0
    %5847 = vmatpush1.msra.mxu0 0.0
    %5848 = vmatprep.subr.mxu0 0.0
    %5849 = vmatpush1.msra.mxu0 0.0
    %5850 = vmatprep.subr.mxu0 0.0
    %5851 = vmatpush1.msra.mxu0 0.0
    %5852 = vmatprep.subr.mxu0 0.0
    %5853 = vmatpush1.msra.mxu0 0.0
    %5854 = vmatprep.subr.mxu0 0.0
    %5855 = vmatpush1.msra.mxu0 0.0
    %5856 = vmatprep.subr.mxu0 0.0
    %5857 = vmatpush1.msra.mxu0 0.0
    %5858 = vmatprep.subr.mxu0 0.0
    %5859 = vmatpush1.msra.mxu0 0.0
    %5860 = vmatprep.subr.mxu0 0.0
    %5861 = vmatpush1.msra.mxu0 0.0
    %5862 = vmatprep.mubr.f32.mxu0 0.0
    %5863 = vmatmul.mubr.f32.gmra.mrb[0].mxu0 %v5778
    %v5864 = vpop.f32.mrb[0].mxu0
    %v5865 = vadd.f32 0.0, %v5864
    %v5866 = vpop.f32.mrb[0].mxu0
    %v5867 = vadd.f32 0.0, %v5866
    %5868 = vdwg.mxu0
    %v5871 = vcombine.low %v5865, %v5867
    %v5873 = vunpack.c.l.s4 1966171168
    %v5874 = vunpack.c.0.s8 %v5873
    %v5875 = vlaneseq
    %v5876 = vshrl.u32 %v5875, 7
    %v5877 = vsub.s32 %v5874, %v5876
    %v5878 = vrot.slane %v5871, %v5877
    %v5880 = vunpack.c.l.s4 1966171168
    %v5881 = vunpack.c.0.s8 %v5880
    %v5882 = vlaneseq
    %v5883 = vshrl.u32 %v5882, 7
    %v5884 = vsub.s32 %v5881, %v5883
    %v5885 = vrot.slane %v5878, %v5884
    %v5887 = vadd.f32 %v5797, %v5885
    %v5888 = vlaneseq
    %vm5889 = vcmp.ge.s32.totalorder %v5888, 0
    %vm5890 = vcmp.lt.s32.totalorder %v5888, 256
    %vm5891 = vmand %vm5889, %vm5890
    %5892 = vst.msk [vmem:[#allocation4] sm:$0x3] %vm5891, %v5887
    %5893 = vst.msk [vmem:[#allocation2] sm:$0x1] %vm5785, %v5763
    %5894 = vst [vmem:[#allocation22] sm:$0x1] %v5757
    // Predicated region
    $region110: #{tpu_custom_call.1} parent=1 // pred_check
      %p5895 = pneg %p181
    $region111: #{tpu_custom_call.1} parent=1 // pred_check_branch
      %5897 = sbr.rel (%p5895) target = $region113
    $region112: #{tpu_custom_call.1} parent=1 // pred_region
      %v5898 = vld [vmem:[#allocation3] sm:$0x1]
      %v5899 = vrcp.pop %v5898
      %v5900 = vld [vmem:[#allocation2] sm:$0x1]
      %v5901 = vld [vmem:[#allocation22] sm:$0x1]
      %5903 = vset.pattern.permute.xlu0 0
      %5904 = vperm.xlu0 %5903, %v5900
      %v5905 = vpop.permute.xlu0 %5904
      %v5907 = vlaneseq
      %v5908 = vshrl.u32 %v5907, 7
      %v5909 = vsub.s32 0, %v5908
      %v5910 = vrot.slane %v5905, %v5909
      %v5911 = vsub.f32 %v5901, %v5910
      %v5912 = vmul.f32 %v5911, 1.442695
      %v5913 = vpow.pop %v5912
      %5915 = vset.pattern.permute.xlu0 0
      %5916 = vperm.xlu0 %5915, %v5899
      %v5917 = vpop.permute.xlu0 %5916
      %v5919 = vlaneseq
      %v5920 = vshrl.u32 %v5919, 7
      %v5921 = vsub.s32 0, %v5920
      %v5922 = vrot.slane %v5917, %v5921
      %v5923 = vmul.f32 %v5913, %v5922
      %5924 = vst [vmem:[#allocation22] sm:$0x1] %v5923
      %v5925 = vld [vmem:[#allocation4] sm:$0x3]
      %v5926 = vmul.f32 %v5925, %v5922
      %v5928 = vlaneseq
      %v5929 = vshrl.u32 %v5928, 7
      %v5930 = vsub.s32 0, %v5929
      %v5931 = vrot.slane %v5926, %v5930
      %v5932 = vlaneseq
      %v5933 = vshrl.u32 %v5932, 7
      %v5934 = vsub.s32 1, %v5933
      %v5935 = vrot.slane %v5926, %v5934
      %v5938 = vpack.c.bf16 %v5931, %v5931
      %v5939 = vpack.c.bf16 %v5935, %v5935
      %v5940 = vld [vmem:[#allocation18] sm:$0xf]
      %v5941 = vld [vmem:[#allocation18 + $0x4] sm:$0xf]
      %v5942 = vld [vmem:[#allocation18 + $0x8] sm:$0xf]
      %v5943 = vld [vmem:[#allocation18 + $0xc] sm:$0xf]
      %v5944 = vld [vmem:[#allocation18 + $0x10] sm:$0xf]
      %v5945 = vld [vmem:[#allocation18 + $0x14] sm:$0xf]
      %v5946 = vld [vmem:[#allocation18 + $0x18] sm:$0xf]
      %v5947 = vld [vmem:[#allocation18 + $0x1c] sm:$0xf]
      %v5948 = vld [vmem:[#allocation18 + $0x20] sm:$0xf]
      %v5949 = vld [vmem:[#allocation18 + $0x24] sm:$0xf]
      %v5950 = vld [vmem:[#allocation18 + $0x28] sm:$0xf]
      %v5951 = vld [vmem:[#allocation18 + $0x2c] sm:$0xf]
      %v5952 = vld [vmem:[#allocation18 + $0x30] sm:$0xf]
      %v5953 = vld [vmem:[#allocation18 + $0x34] sm:$0xf]
      %v5954 = vld [vmem:[#allocation18 + $0x38] sm:$0xf]
      %v5955 = vld [vmem:[#allocation18 + $0x3c] sm:$0xf]
      %v5956 = vld [vmem:[#allocation18 + $0x40] sm:$0xf]
      %v5957 = vld [vmem:[#allocation18 + $0x44] sm:$0xf]
      %v5958 = vld [vmem:[#allocation18 + $0x48] sm:$0xf]
      %v5959 = vld [vmem:[#allocation18 + $0x4c] sm:$0xf]
      %v5960 = vld [vmem:[#allocation18 + $0x50] sm:$0xf]
      %v5961 = vld [vmem:[#allocation18 + $0x54] sm:$0xf]
      %v5962 = vld [vmem:[#allocation18 + $0x58] sm:$0xf]
      %v5963 = vld [vmem:[#allocation18 + $0x5c] sm:$0xf]
      %v5964 = vld [vmem:[#allocation18 + $0x60] sm:$0xf]
      %v5965 = vld [vmem:[#allocation18 + $0x64] sm:$0xf]
      %v5966 = vld [vmem:[#allocation18 + $0x68] sm:$0xf]
      %v5967 = vld [vmem:[#allocation18 + $0x6c] sm:$0xf]
      %v5968 = vld [vmem:[#allocation18 + $0x70] sm:$0xf]
      %v5969 = vld [vmem:[#allocation18 + $0x74] sm:$0xf]
      %v5970 = vld [vmem:[#allocation18 + $0x78] sm:$0xf]
      %v5971 = vld [vmem:[#allocation18 + $0x7c] sm:$0xf]
      %v5972 = vld [vmem:[%s13] sm:$0x1]
      %v6005 = vunpack.c.l.b16 %v5940
      %v6006 = vunpack.c.l.b16 %v5941
      %v6007 = vunpack.c.l.b16 %v5942
      %v6008 = vunpack.c.l.b16 %v5943
      %v6009 = vunpack.c.l.b16 %v5944
      %v6010 = vunpack.c.l.b16 %v5945
      %v6011 = vunpack.c.l.b16 %v5946
      %v6012 = vunpack.c.l.b16 %v5947
      %v6013 = vunpack.c.l.b16 %v5948
      %v6014 = vunpack.c.l.b16 %v5949
      %v6015 = vunpack.c.l.b16 %v5950
      %v6016 = vunpack.c.l.b16 %v5951
      %v6017 = vunpack.c.l.b16 %v5952
      %v6018 = vunpack.c.l.b16 %v5953
      %v6019 = vunpack.c.l.b16 %v5954
      %v6020 = vunpack.c.l.b16 %v5955
      %v6021 = vunpack.c.l.b16 %v5956
      %v6022 = vunpack.c.l.b16 %v5957
      %v6023 = vunpack.c.l.b16 %v5958
      %v6024 = vunpack.c.l.b16 %v5959
      %v6025 = vunpack.c.l.b16 %v5960
      %v6026 = vunpack.c.l.b16 %v5961
      %v6027 = vunpack.c.l.b16 %v5962
      %v6028 = vunpack.c.l.b16 %v5963
      %v6029 = vunpack.c.l.b16 %v5964
      %v6030 = vunpack.c.l.b16 %v5965
      %v6031 = vunpack.c.l.b16 %v5966
      %v6032 = vunpack.c.l.b16 %v5967
      %v6033 = vunpack.c.l.b16 %v5968
      %v6034 = vunpack.c.l.b16 %v5969
      %v6035 = vunpack.c.l.b16 %v5970
      %v6036 = vunpack.c.l.b16 %v5971
      %v6037 = vpack.c.b16 %v6006, %v6005
      %v6038 = vpack.c.b16 %v6008, %v6007
      %v6039 = vpack.c.b16 %v6010, %v6009
      %v6040 = vpack.c.b16 %v6012, %v6011
      %v6041 = vpack.c.b16 %v6014, %v6013
      %v6042 = vpack.c.b16 %v6016, %v6015
      %v6043 = vpack.c.b16 %v6018, %v6017
      %v6044 = vpack.c.b16 %v6020, %v6019
      %v6045 = vpack.c.b16 %v6022, %v6021
      %v6046 = vpack.c.b16 %v6024, %v6023
      %v6047 = vpack.c.b16 %v6026, %v6025
      %v6048 = vpack.c.b16 %v6028, %v6027
      %v6049 = vpack.c.b16 %v6030, %v6029
      %v6050 = vpack.c.b16 %v6032, %v6031
      %v6051 = vpack.c.b16 %v6034, %v6033
      %v6052 = vpack.c.b16 %v6036, %v6035
      %6069 = vmatprep.subr.bf16.mxu0 0
      %6070 = vmatpush1.bf16.msra.mxu0 %v6037
      %6071 = vmatprep.subr.bf16.mxu0 0
      %6072 = vmatpush1.bf16.msra.mxu0 %v6038
      %6073 = vmatprep.subr.bf16.mxu0 0
      %6074 = vmatpush1.bf16.msra.mxu0 %v6039
      %6075 = vmatprep.subr.bf16.mxu0 0
      %6076 = vmatpush1.bf16.msra.mxu0 %v6040
      %6077 = vmatprep.subr.bf16.mxu0 0
      %6078 = vmatpush1.bf16.msra.mxu0 %v6041
      %6079 = vmatprep.subr.bf16.mxu0 0
      %6080 = vmatpush1.bf16.msra.mxu0 %v6042
      %6081 = vmatprep.subr.bf16.mxu0 0
      %6082 = vmatpush1.bf16.msra.mxu0 %v6043
      %6083 = vmatprep.subr.bf16.mxu0 0
      %6084 = vmatpush1.bf16.msra.mxu0 %v6044
      %6085 = vmatprep.subr.bf16.mxu0 0
      %6086 = vmatpush1.bf16.msra.mxu0 %v6045
      %6087 = vmatprep.subr.bf16.mxu0 0
      %6088 = vmatpush1.bf16.msra.mxu0 %v6046
      %6089 = vmatprep.subr.bf16.mxu0 0
      %6090 = vmatpush1.bf16.msra.mxu0 %v6047
      %6091 = vmatprep.subr.bf16.mxu0 0
      %6092 = vmatpush1.bf16.msra.mxu0 %v6048
      %6093 = vmatprep.subr.bf16.mxu0 0
      %6094 = vmatpush1.bf16.msra.mxu0 %v6049
      %6095 = vmatprep.subr.bf16.mxu0 0
      %6096 = vmatpush1.bf16.msra.mxu0 %v6050
      %6097 = vmatprep.subr.bf16.mxu0 0
      %6098 = vmatpush1.bf16.msra.mxu0 %v6051
      %6099 = vmatprep.subr.bf16.mxu0 0
      %6100 = vmatpush1.bf16.msra.mxu0 %v6052
      %6101 = vmatprep.mubr.bf16.mxu0 %v5939
      %6102 = vmatmul.mubr.bf16.gmra.mrb[0].mxu0 %v5938
      %v6103 = vpop.f32.mrb[0].mxu0
      %v6104 = vadd.f32 %v5972, %v6103
      %v6105 = vpop.f32.mrb[0].mxu0
      %v6106 = vpop.f32.mrb[0].mxu0
      %v6107 = vpop.f32.mrb[0].mxu0
      %6108 = vdwg.mxu0
      %vm6109 = vcmp.ge.f32.partialorder %v6104, 0.0
      %v6110 = vstv %s179
      %v6111 = vmul.f32 %v6110, %v6104
      %v6112 = vsel %vm6109, %v6104, %v6111
      %v6113 = vpack.c.bf16 %v6112, %v6112
      %v6114 = vld [vmem:[#allocation20] sm:$0xf]
      %v6115 = vld [vmem:[#allocation20 + $0x4] sm:$0xf]
      %v6116 = vld [vmem:[#allocation20 + $0x8] sm:$0xf]
      %v6117 = vld [vmem:[#allocation20 + $0xc] sm:$0xf]
      %v6118 = vld [vmem:[#allocation20 + $0x10] sm:$0xf]
      %v6119 = vld [vmem:[#allocation20 + $0x14] sm:$0xf]
      %v6120 = vld [vmem:[#allocation20 + $0x18] sm:$0xf]
      %v6121 = vld [vmem:[#allocation20 + $0x1c] sm:$0xf]
      %v6122 = vld [vmem:[#allocation20 + $0x20] sm:$0xf]
      %v6123 = vld [vmem:[#allocation20 + $0x24] sm:$0xf]
      %v6124 = vld [vmem:[#allocation20 + $0x28] sm:$0xf]
      %v6125 = vld [vmem:[#allocation20 + $0x2c] sm:$0xf]
      %v6126 = vld [vmem:[#allocation20 + $0x30] sm:$0xf]
      %v6127 = vld [vmem:[#allocation20 + $0x34] sm:$0xf]
      %v6128 = vld [vmem:[#allocation20 + $0x38] sm:$0xf]
      %v6129 = vld [vmem:[#allocation20 + $0x3c] sm:$0xf]
      %v6130 = vld [vmem:[%s15] sm:$0x1]
      %v6147 = vunpack.c.l.b16 %v6114
      %v6148 = vunpack.c.l.b16 %v6115
      %v6149 = vunpack.c.l.b16 %v6116
      %v6150 = vunpack.c.l.b16 %v6117
      %v6151 = vunpack.c.l.b16 %v6118
      %v6152 = vunpack.c.l.b16 %v6119
      %v6153 = vunpack.c.l.b16 %v6120
      %v6154 = vunpack.c.l.b16 %v6121
      %v6155 = vunpack.c.l.b16 %v6122
      %v6156 = vunpack.c.l.b16 %v6123
      %v6157 = vunpack.c.l.b16 %v6124
      %v6158 = vunpack.c.l.b16 %v6125
      %v6159 = vunpack.c.l.b16 %v6126
      %v6160 = vunpack.c.l.b16 %v6127
      %v6161 = vunpack.c.l.b16 %v6128
      %v6162 = vunpack.c.l.b16 %v6129
      %v6163 = vpack.c.b16 %v6148, %v6147
      %v6164 = vpack.c.b16 %v6150, %v6149
      %v6165 = vpack.c.b16 %v6152, %v6151
      %v6166 = vpack.c.b16 %v6154, %v6153
      %v6167 = vpack.c.b16 %v6156, %v6155
      %v6168 = vpack.c.b16 %v6158, %v6157
      %v6169 = vpack.c.b16 %v6160, %v6159
      %v6170 = vpack.c.b16 %v6162, %v6161
      %6179 = vmatprep.subr.bf16.mxu0 0
      %6180 = vmatpush1.bf16.msra.mxu0 %v6163
      %6181 = vmatprep.subr.bf16.mxu0 0
      %6182 = vmatpush1.bf16.msra.mxu0 %v6164
      %6183 = vmatprep.subr.bf16.mxu0 0
      %6184 = vmatpush1.bf16.msra.mxu0 %v6165
      %6185 = vmatprep.subr.bf16.mxu0 0
      %6186 = vmatpush1.bf16.msra.mxu0 %v6166
      %6187 = vmatprep.subr.bf16.mxu0 0
      %6188 = vmatpush1.bf16.msra.mxu0 %v6167
      %6189 = vmatprep.subr.bf16.mxu0 0
      %6190 = vmatpush1.bf16.msra.mxu0 %v6168
      %6191 = vmatprep.subr.bf16.mxu0 0
      %6192 = vmatpush1.bf16.msra.mxu0 %v6169
      %6193 = vmatprep.subr.bf16.mxu0 0
      %6194 = vmatpush1.bf16.msra.mxu0 %v6170
      %6195 = vmatprep.subr.bf16.mxu0 0
      %6196 = vmatpush1.bf16.msra.mxu0 0
      %6197 = vmatprep.subr.bf16.mxu0 0
      %6198 = vmatpush1.bf16.msra.mxu0 0
      %6199 = vmatprep.subr.bf16.mxu0 0
      %6200 = vmatpush1.bf16.msra.mxu0 0
      %6201 = vmatprep.subr.bf16.mxu0 0
      %6202 = vmatpush1.bf16.msra.mxu0 0
      %6203 = vmatprep.subr.bf16.mxu0 0
      %6204 = vmatpush1.bf16.msra.mxu0 0
      %6205 = vmatprep.subr.bf16.mxu0 0
      %6206 = vmatpush1.bf16.msra.mxu0 0
      %6207 = vmatprep.subr.bf16.mxu0 0
      %6208 = vmatpush1.bf16.msra.mxu0 0
      %6209 = vmatprep.subr.bf16.mxu0 0
      %6210 = vmatpush1.bf16.msra.mxu0 0
      %6211 = vmatprep.mubr.bf16.mxu0 0
      %6212 = vmatmul.mubr.bf16.gmra.mrb[0].mxu0 %v6113
      %v6213 = vpop.f32.mrb[0].mxu0
      %v6214 = vadd.f32 %v6130, %v6213
      %v6215 = vpop.f32.mrb[0].mxu0
      %v6216 = vpop.f32.mrb[0].mxu0
      %v6217 = vpop.f32.mrb[0].mxu0
      %6218 = vdwg.mxu0
      %vm6219 = vcmp.ge.f32.partialorder %v6214, 0.0
      %v6220 = vstv %s180
      %v6221 = vmul.f32 %v6220, %v6214
      %v6222 = vsel %vm6219, %v6214, %v6221
      %v6223 = vld [vmem:[%s16] sm:$0x1]
      %v6224 = vmul.f32 %v6222, %v6223
      %v6225 = vsel %vm5759, %v6224, 0.0
      %6226 = vadd.xlane.f32.xlu0 %v6225
      %v6227 = vpop.xlane.xlu0 %6226
      %v6228 = vld [vmem:[#allocation6] sm:$0x1]
      %v6229 = vadd.f32 %v6227, %v6228
      %v6230 = vsub.f32 0.0, %v6229
      %v6231 = vmul.f32 %v6230, 1.442695
      %v6232 = vpow.pop %v6231
      %v6233 = vadd.f32 %v6232, 1.0
      %v6234 = vrcp.pop %v6233
      %v6235 = vmul.f32 1.0, %v6234
      %6236 = vst.msk [vmem:[#allocation21] sm:$0x1] %vm5785, %v6235
    $region113: #{tpu_custom_call.1} parent=1 // pred_fallthru
      _
    // Predicated region
    $region114: #{tpu_custom_call.1} parent=1 // pred_check
      _
    $region115: #{tpu_custom_call.1} parent=1 // pred_check_branch
      %6238 = sbr.rel (0) target = $region117
    $region116: #{tpu_custom_call.1} parent=1 // pred_region
      %s6240 = ssub.s32 16, 16
      %6241 = vsyncadd [#allocation9], %s6240
      %s6243 = sshll.u32 [#allocation21], 4
      %s6244 = int_to_ptr.vmem [resolvable:$true] %s6243
      %6246 = dma.vmem_to_hbm [thread:$0]  %s6244, 16, %s18, [#allocation9]
    $region117: #{tpu_custom_call.1} parent=1 // pred_fallthru
      _
    // Predicated region
    $region118: #{tpu_custom_call.1} parent=1 // pred_check
      _
    $region119: #{tpu_custom_call.1} parent=1 // pred_check_branch
      %6248 = sbr.rel (0) target = $region121
    $region120: #{tpu_custom_call.1} parent=1 // pred_region
      %s6250 = ssub.s32 16, 16
      %6251 = vsyncadd [#allocation23], %s6250
      %s6253 = sshll.u32 [#allocation22], 4
      %s6254 = int_to_ptr.vmem [resolvable:$true] %s6253
      %6256 = dma.vmem_to_hbm [thread:$0]  %s6254, 16, %s19, [#allocation23]
    $region121: #{tpu_custom_call.1} parent=1 // pred_fallthru
      _
    // Predicated region
    $region122: #{tpu_custom_call.1} parent=1 // pred_check
      _
    $region123: #{tpu_custom_call.1} parent=1 // pred_check_branch
      %6258 = sbr.rel (0) target = $region125
    $region124: #{tpu_custom_call.1} parent=1 // pred_region
      %6259 = dma.done [#allocation9], 16
    $region125: #{tpu_custom_call.1} parent=1 // pred_fallthru
      _
    // Predicated region
    $region126: #{tpu_custom_call.1} parent=1 // pred_check
      _
    $region127: #{tpu_custom_call.1} parent=1 // pred_check_branch
      %6261 = sbr.rel (0) target = $region129
    $region128: #{tpu_custom_call.1} parent=1 // pred_region
      %6262 = dma.done [#allocation23], 16
    $region129: #{tpu_custom_call.1} parent=1 // pred_fallthru
      _
    %6263 = vsyncpa [#allocation8], 1
    %6264 = vsyncpa [#allocation13], 1
    %6265 = vsyncpa [#allocation16], 1
    %6266 = vsyncpa [#allocation19], 1
    %6267 = vsyncpa [#allocation9], 1
    %6268 = vsyncpa [#allocation23], 1
    %6269 = vsyncpa [#allocation10], 1

</llo_original>
